<compile_context>
chip_gen: v7x
topology: tpu7x:2x2x1
jax: 0.10.0
libtpu: 0.0.40
codegen_flags: <defaults>
</compile_context>

<pallas_src>
import functools

import numpy as np
import jax
import jax.numpy as jnp
from jax.experimental import pallas as pl
from jax.experimental.pallas import tpu as pltpu


def _fused_lstm_kernel(x_ref, wih0_ref, wihr_ref, whh_ref, b_ref,
                       h0_ref, c0_ref, out_ref, hN_ref, cN_ref, *scratch,
                       T, B, H, num_layers):
    """All layers + all timesteps of the LSTM in one kernel invocation.

    x_ref   : (T, B, D)        time-major input (exact, unpadded)
    wih0_ref: (D, 4H)          layer-0 W_ih^T, gate order i|f|o|g
    wihr_ref: (L-1 or 1, H, 4H) W_ih^T for layers >= 1
    whh_ref : (L, H, 4H)       W_hh^T
    b_ref   : (L, 1, 4H)       b_ih + b_hh
    h0/c0   : (L, B, H)
    out_ref : (T, B, H)        last layer's hidden sequence
    hN/cN   : (L, B, H)        final state per layer
    scratch : gx (T, B, 4H)  [, seq (T, B, H) if num_layers > 1]
    """
    gx_sc = scratch[0]
    seq_sc = scratch[1] if num_layers > 1 else None
    H3 = 3 * H

    for l in range(num_layers):
        b_l = b_ref[l]                                     # (1, 4H)

        # ---- phase 1: input projection (independent of the recurrence) ------
        # TODO(synk): for long T, flatten to one (T*B, K) matmul / time-chunk.
        if l == 0:
            w_in = wih0_ref[...]                           # (D, 4H)
            for t in range(T):
                gx_sc[t] = jnp.dot(x_ref[t], w_in,
                                   preferred_element_type=jnp.float32) + b_l
        else:
            w_in = wihr_ref[l - 1]                         # (H, 4H)
            for t in range(T):
                gx_sc[t] = jnp.dot(seq_sc[t], w_in,
                                   preferred_element_type=jnp.float32) + b_l

        # ---- phase 2: recurrence over time ----------------------------------
        w_rec = whh_ref[l]          # (H, 4H): loaded ONCE per layer, ~4 vregs
        h_prev = h0_ref[l]
        c_prev = c0_ref[l]
        for t in range(T):
            gates = gx_sc[t] + jnp.dot(h_prev, w_rec,
                                       preferred_element_type=jnp.float32)
            sig = jax.nn.sigmoid(gates[:, :H3])            # i | f | o (one EUP pass)
            g_g = jnp.tanh(gates[:, H3:])                  # g
            i_g = sig[:, :H]
            f_g = sig[:, H:2 * H]
            o_g = sig[:, 2 * H:H3]

            c_prev = f_g * c_prev + i_g * g_g
            h_prev = o_g * jnp.tanh(c_prev)

            if l == num_layers - 1:
                out_ref[t] = h_prev
            else:
                seq_sc[t] = h_prev                         # no pad needed

        hN_ref[l] = h_prev
        cN_ref[l] = c_prev


def fused_lstm_pallas(x, wih0, wihr, whh, bias, h0, c0):
    """x (T,B,D) time-major + packed weights + exact-shape state -> outputs."""
    T, B, D = x.shape
    num_layers, H, G4 = whh.shape

    kernel = functools.partial(_fused_lstm_kernel, T=T, B=B, H=H,
                               num_layers=num_layers)

    out_shapes = (
        jax.ShapeDtypeStruct((T, B, H), jnp.float32),          # out sequence
        jax.ShapeDtypeStruct((num_layers, B, H), jnp.float32), # h_N
        jax.ShapeDtypeStruct((num_layers, B, H), jnp.float32), # c_N
    )

    scratch_shapes = [pltpu.VMEM((T, B, G4), jnp.float32)]     # input-proj gates
    if num_layers > 1:
        scratch_shapes.append(pltpu.VMEM((T, B, H), jnp.float32))  # layer i/o

    # Explicit VMEM budget from the actual resident set (with headroom),
    # capped to v7x's 64 MiB physical VMEM.
    f32 = 4
    io_elems = (x.size + wih0.size + wihr.size + whh.size + bias.size
                + h0.size + c0.size + T * B * H + 2 * num_layers * B * H)
    scratch_elems = T * B * G4 + (T * B * H if num_layers > 1 else 0)
    vmem_limit = int(min(64 * 2 ** 20,
                         max(2 * f32 * io_elems + f32 * scratch_elems + (4 << 20),
                             16 << 20)))

    grid_spec = pltpu.PrefetchScalarGridSpec(
        num_scalar_prefetch=0,
        grid=(1,),
        in_specs=[
            pl.BlockSpec((T, B, D), lambda i: (0, 0, 0)),          # x
            pl.BlockSpec(wih0.shape, lambda i: (0, 0)),            # layer-0 W_ih^T
            pl.BlockSpec(wihr.shape, lambda i: (0, 0, 0)),         # W_ih^T, l>=1
            pl.BlockSpec(whh.shape, lambda i: (0, 0, 0)),          # W_hh^T
            pl.BlockSpec(bias.shape, lambda i: (0, 0, 0)),         # bias
            pl.BlockSpec(h0.shape, lambda i: (0, 0, 0)),           # h0
            pl.BlockSpec(c0.shape, lambda i: (0, 0, 0)),           # c0
        ],
        out_specs=[
            pl.BlockSpec((T, B, H), lambda i: (0, 0, 0)),
            pl.BlockSpec((num_layers, B, H), lambda i: (0, 0, 0)),
            pl.BlockSpec((num_layers, B, H), lambda i: (0, 0, 0)),
        ],
        scratch_shapes=scratch_shapes,
    )

    return pl.pallas_call(
        kernel,
        out_shape=out_shapes,
        grid_spec=grid_spec,
        compiler_params=pltpu.CompilerParams(
            dimension_semantics=("arbitrary",),
            vmem_limit_bytes=vmem_limit),
    )(x, wih0, wihr, whh, bias, h0, c0)


@jax.jit
def _state_action_lstm_forward(action, latent, h0, c0, wih0, wihr, whh, bias):
    """Jitted forward: concat + transpose + fused kernel + transpose back."""
    in_al = jnp.concatenate([action, latent], axis=-1).astype(jnp.float32)
    x = jnp.transpose(in_al, (1, 0, 2))                     # (T, B, D)
    out_t, hN, cN = fused_lstm_pallas(
        x, wih0, wihr, whh, bias,
        h0.astype(jnp.float32), c0.astype(jnp.float32))
    return jnp.transpose(out_t, (1, 0, 2)), hN, cN          # (B, T, H)


class StateActionLSTMPallas:
    """Mirrors StateActionLSTM.forward: concat(action, latent) -> multi-layer LSTM."""

    def __init__(self, latent_size, action_size, hidden_size, num_layers, key):
        self.latent_size = latent_size
        self.action_size = action_size
        self.hidden_size = hidden_size
        self.num_layers = num_layers

        D_in = latent_size + action_size
        H = hidden_size
        G4 = 4 * H

        # Raw PyTorch-layout parameters (also used by the reference check).
        self.params = []
        k = 1.0 / jnp.sqrt(hidden_size)
        for layer in range(num_layers):
            in_sz = D_in if layer == 0 else hidden_size
            key, k1, k2, k3, k4 = jax.random.split(key, 5)
            w_ih = jax.random.uniform(k1, (4 * H, in_sz), jnp.float32, -k, k)
            w_hh = jax.random.uniform(k2, (4 * H, H), jnp.float32, -k, k)
            b_ih = jax.random.uniform(k3, (4 * H,), jnp.float32, -k, k)
            b_hh = jax.random.uniform(k4, (4 * H,), jnp.float32, -k, k)
            self.params.append((w_ih, w_hh, b_ih, b_hh))

        # Pack weights once: transpose, gate-reorder i|f|g|o -> i|f|o|g,
        # gates packed contiguously (width H each, no per-gate padding).
        # NOTE: storing these as bf16 halves weight VMEM / doubles MXU rate,
        #       but breaks the 1e-4 check vs. the f32 reference -> kept f32.
        order = (0, 1, 3, 2)   # dst gate slots <- src PyTorch gates

        def repack_cols(w):    # (4H, X) -> (X, 4H) gate-reordered
            w = np.asarray(w)
            return np.concatenate([w[g * H:(g + 1) * H] for g in order], axis=0).T

        def repack_vec(b):     # (4H,) -> (1, 4H) gate-reordered
            b = np.asarray(b)
            return np.concatenate([b[g * H:(g + 1) * H] for g in order])[None, :]

        wihr = np.zeros((max(num_layers - 1, 1), H, G4), np.float32)
        whh = np.zeros((num_layers, H, G4), np.float32)
        bias = np.zeros((num_layers, 1, G4), np.float32)
        for l, (w_ih, w_hh, b_ih, b_hh) in enumerate(self.params):
            if l > 0:
                wihr[l - 1] = repack_cols(w_ih)
            whh[l] = repack_cols(w_hh)
            bias[l] = repack_vec(b_ih + b_hh)

        self.wih0 = jnp.asarray(repack_cols(self.params[0][0]), jnp.float32)
        self.wihr = jnp.asarray(wihr)
        self.whh = jnp.asarray(whh)
        self.bias = jnp.asarray(bias)

    def init_hs(self, batch_size, key):
        k1, k2 = jax.random.split(key)
        self.h_0 = jax.random.normal(
            k1, (self.num_layers, batch_size, self.hidden_size), jnp.float32)
        self.c_0 = jax.random.normal(
            k2, (self.num_layers, batch_size, self.hidden_size), jnp.float32)

    def forward(self, action, latent):
        # action: (B, T, A), latent: (B, T, L)   [batch_first=True]
        out, h_new, c_new = _state_action_lstm_forward(
            action, latent, self.h_0, self.c_0,
            self.wih0, self.wihr, self.whh, self.bias)
        # State update happens outside the jitted function (jit/vmap-safe).
        self.h_0, self.c_0 = h_new, c_new
        return out


def _lstm_reference(in_al, params, h0, c0):
    """Pure-JAX reference (PyTorch nn.LSTM gate order i,f,g,o) for verification."""
    x = jnp.transpose(in_al, (1, 0, 2))                     # (T, B, D)
    H = h0.shape[-1]
    hp = jax.lax.Precision.HIGHEST
    for layer, (w_ih, w_hh, b_ih, b_hh) in enumerate(params):
        h, c = h0[layer], c0[layer]
        outs = []
        for t in range(x.shape[0]):
            g = (jnp.dot(x[t], w_ih.T, precision=hp)
                 + jnp.dot(h, w_hh.T, precision=hp) + b_ih + b_hh)
            i = jax.nn.sigmoid(g[:, 0 * H:1 * H])
            f = jax.nn.sigmoid(g[:, 1 * H:2 * H])
            gg = jnp.tanh(g[:, 2 * H:3 * H])
            o = jax.nn.sigmoid(g[:, 3 * H:4 * H])
            c = f * c + i * gg
            h = o * jnp.tanh(c)
            outs.append(h)
        x = jnp.stack(outs, axis=0)
    return jnp.transpose(x, (1, 0, 2))


if __name__ == "__main__":
    # Small shapes implied by the forward: action (B,T,A), latent (B,T,L).
    B, T = 2, 8
    latent_size, action_size, hidden_size, num_layers = 32, 2, 32, 2

    key = jax.random.PRNGKey(0)
    k_mod, k_hs, k_a, k_l = jax.random.split(key, 4)

    model = StateActionLSTMPallas(latent_size, action_size, hidden_size,
                                  num_layers, k_mod)
    model.init_hs(B, k_hs)

    action = jax.random.normal(k_a, (B, T, action_size), jnp.float32)
    latent = jax.random.normal(k_l, (B, T, latent_size), jnp.float32)

    h0_ref, c0_ref = model.h_0, model.c_0
    outs = model.forward(action, latent)
    outs = jax.block_until_ready(outs)

    # Verify against pure-JAX reference.
    in_al = jnp.concatenate([action, latent], axis=-1)
    ref = _lstm_reference(in_al, model.params, h0_ref, c0_ref)
    assert outs.shape == (B, T, hidden_size)
    assert jnp.allclose(outs, ref, atol=1e-4, rtol=1e-4), "mismatch vs reference"

    # TODO(synk): Encoder/ResNet/VAE pretrained-checkpoint branches of the
    # original module load .pt files and are outside forward(); not ported.
    print("KERNEL_OK")
</pallas_src>

<mosaic_0001>
module attributes {stable_mosaic.version = 11 : i64} {
  func.func @_fused_lstm_kernel(%arg0: i32, %arg1: memref<8x2x34xf32, #tpu.memory_space<vmem>>, %arg2: memref<34x128xf32, #tpu.memory_space<vmem>>, %arg3: memref<1x32x128xf32, #tpu.memory_space<vmem>>, %arg4: memref<2x32x128xf32, #tpu.memory_space<vmem>>, %arg5: memref<2x1x128xf32, #tpu.memory_space<vmem>>, %arg6: memref<2x2x32xf32, #tpu.memory_space<vmem>>, %arg7: memref<2x2x32xf32, #tpu.memory_space<vmem>>, %arg8: memref<8x2x32xf32, #tpu.memory_space<vmem>>, %arg9: memref<2x2x32xf32, #tpu.memory_space<vmem>>, %arg10: memref<2x2x32xf32, #tpu.memory_space<vmem>>, %arg11: memref<8x2x128xf32, #tpu.memory_space<vmem>>, %arg12: memref<8x2x32xf32, #tpu.memory_space<vmem>>) attributes {dimension_semantics = [#tpu.dimension_semantics<arbitrary>], iteration_bounds = array<i64: 1>, scalar_prefetch = 0 : i64, scratch_operands = 2 : i64, tpu.core_type = #tpu.core_type<tc>, window_params = [{pipeline_mode = #tpu.pipeline_mode<synchronous>, transform_indices = @transform_0, window_bounds = array<i64: 8, 2, 34>}, {pipeline_mode = #tpu.pipeline_mode<synchronous>, transform_indices = @transform_1, window_bounds = array<i64: 34, 128>}, {pipeline_mode = #tpu.pipeline_mode<synchronous>, transform_indices = @transform_2, window_bounds = array<i64: 1, 32, 128>}, {pipeline_mode = #tpu.pipeline_mode<synchronous>, transform_indices = @transform_3, window_bounds = array<i64: 2, 32, 128>}, {pipeline_mode = #tpu.pipeline_mode<synchronous>, transform_indices = @transform_4, window_bounds = array<i64: 2, 1, 128>}, {pipeline_mode = #tpu.pipeline_mode<synchronous>, transform_indices = @transform_5, window_bounds = array<i64: 2, 2, 32>}, {pipeline_mode = #tpu.pipeline_mode<synchronous>, transform_indices = @transform_6, window_bounds = array<i64: 2, 2, 32>}, {pipeline_mode = #tpu.pipeline_mode<synchronous>, transform_indices = @transform_7, window_bounds = array<i64: 8, 2, 32>}, {pipeline_mode = #tpu.pipeline_mode<synchronous>, transform_indices = @transform_8, window_bounds = array<i64: 2, 2, 32>}, {pipeline_mode = #tpu.pipeline_mode<synchronous>, transform_indices = @transform_9, window_bounds = array<i64: 2, 2, 32>}]} {
    %c0 = arith.constant 0 : index
    %c0_0 = arith.constant 0 : index
    %c0_1 = arith.constant 0 : index
    %0 = vector.load %arg5[%c0, %c0_0, %c0_1] : memref<2x1x128xf32, #tpu.memory_space<vmem>>, vector<1x1x128xf32>
    %1 = vector.shape_cast %0 : vector<1x1x128xf32> to vector<1x128xf32>
    %c0_2 = arith.constant 0 : index
    %c0_3 = arith.constant 0 : index
    %2 = vector.load %arg2[%c0_2, %c0_3] : memref<34x128xf32, #tpu.memory_space<vmem>>, vector<34x128xf32>
    %c0_4 = arith.constant 0 : index
    %c0_5 = arith.constant 0 : index
    %c0_6 = arith.constant 0 : index
    %3 = vector.load %arg1[%c0_4, %c0_5, %c0_6] : memref<8x2x34xf32, #tpu.memory_space<vmem>>, vector<1x2x34xf32>
    %4 = vector.shape_cast %3 : vector<1x2x34xf32> to vector<2x34xf32>
    %cst = arith.constant dense<0.000000e+00> : vector<2x128xf32>
    %5 = tpu.matmul %4, %2, %cst {dimension_numbers = #tpu.dot_dimension_numbers<[1], [0], [0], [1], [0, 0, 1, 1], [], []>} : vector<2x34xf32>, vector<34x128xf32>, vector<2x128xf32> -> vector<2x128xf32>
    %6 = vector.broadcast %1 : vector<1x128xf32> to vector<2x128xf32>
    %7 = arith.addf %5, %6 : vector<2x128xf32>
    %c0_7 = arith.constant 0 : index
    %c0_8 = arith.constant 0 : index
    %c0_9 = arith.constant 0 : index
    %8 = vector.load %arg11[%c0_7, %c0_8, %c0_9] : memref<8x2x128xf32, #tpu.memory_space<vmem>>, vector<1x2x128xf32>
    %9 = vector.shape_cast %8 : vector<1x2x128xf32> to vector<2x128xf32>
    %10 = vector.shape_cast %7 : vector<2x128xf32> to vector<1x2x128xf32>
    tpu.vector_store %arg11[%c0_7, %c0_8, %c0_9], %10 {strides = array<i32>} : memref<8x2x128xf32, #tpu.memory_space<vmem>>, vector<1x2x128xf32>,
    %c1 = arith.constant 1 : index
    %c0_10 = arith.constant 0 : index
    %c0_11 = arith.constant 0 : index
    %11 = vector.load %arg1[%c1, %c0_10, %c0_11] : memref<8x2x34xf32, #tpu.memory_space<vmem>>, vector<1x2x34xf32>
    %12 = vector.shape_cast %11 : vector<1x2x34xf32> to vector<2x34xf32>
    %cst_12 = arith.constant dense<0.000000e+00> : vector<2x128xf32>
    %13 = tpu.matmul %12, %2, %cst_12 {dimension_numbers = #tpu.dot_dimension_numbers<[1], [0], [0], [1], [0, 0, 1, 1], [], []>} : vector<2x34xf32>, vector<34x128xf32>, vector<2x128xf32> -> vector<2x128xf32>
    %14 = vector.broadcast %1 : vector<1x128xf32> to vector<2x128xf32>
    %15 = arith.addf %13, %14 : vector<2x128xf32>
    %c1_13 = arith.constant 1 : index
    %c0_14 = arith.constant 0 : index
    %c0_15 = arith.constant 0 : index
    %16 = vector.load %arg11[%c1_13, %c0_14, %c0_15] : memref<8x2x128xf32, #tpu.memory_space<vmem>>, vector<1x2x128xf32>
    %17 = vector.shape_cast %16 : vector<1x2x128xf32> to vector<2x128xf32>
    %18 = vector.shape_cast %15 : vector<2x128xf32> to vector<1x2x128xf32>
    tpu.vector_store %arg11[%c1_13, %c0_14, %c0_15], %18 {strides = array<i32>} : memref<8x2x128xf32, #tpu.memory_space<vmem>>, vector<1x2x128xf32>,
    %c2 = arith.constant 2 : index
    %c0_16 = arith.constant 0 : index
    %c0_17 = arith.constant 0 : index
    %19 = vector.load %arg1[%c2, %c0_16, %c0_17] : memref<8x2x34xf32, #tpu.memory_space<vmem>>, vector<1x2x34xf32>
    %20 = vector.shape_cast %19 : vector<1x2x34xf32> to vector<2x34xf32>
    %cst_18 = arith.constant dense<0.000000e+00> : vector<2x128xf32>
    %21 = tpu.matmul %20, %2, %cst_18 {dimension_numbers = #tpu.dot_dimension_numbers<[1], [0], [0], [1], [0, 0, 1, 1], [], []>} : vector<2x34xf32>, vector<34x128xf32>, vector<2x128xf32> -> vector<2x128xf32>
    %22 = vector.broadcast %1 : vector<1x128xf32> to vector<2x128xf32>
    %23 = arith.addf %21, %22 : vector<2x128xf32>
    %c2_19 = arith.constant 2 : index
    %c0_20 = arith.constant 0 : index
    %c0_21 = arith.constant 0 : index
    %24 = vector.load %arg11[%c2_19, %c0_20, %c0_21] : memref<8x2x128xf32, #tpu.memory_space<vmem>>, vector<1x2x128xf32>
    %25 = vector.shape_cast %24 : vector<1x2x128xf32> to vector<2x128xf32>
    %26 = vector.shape_cast %23 : vector<2x128xf32> to vector<1x2x128xf32>
    tpu.vector_store %arg11[%c2_19, %c0_20, %c0_21], %26 {strides = array<i32>} : memref<8x2x128xf32, #tpu.memory_space<vmem>>, vector<1x2x128xf32>,
    %c3 = arith.constant 3 : index
    %c0_22 = arith.constant 0 : index
    %c0_23 = arith.constant 0 : index
    %27 = vector.load %arg1[%c3, %c0_22, %c0_23] : memref<8x2x34xf32, #tpu.memory_space<vmem>>, vector<1x2x34xf32>
    %28 = vector.shape_cast %27 : vector<1x2x34xf32> to vector<2x34xf32>
    %cst_24 = arith.constant dense<0.000000e+00> : vector<2x128xf32>
    %29 = tpu.matmul %28, %2, %cst_24 {dimension_numbers = #tpu.dot_dimension_numbers<[1], [0], [0], [1], [0, 0, 1, 1], [], []>} : vector<2x34xf32>, vector<34x128xf32>, vector<2x128xf32> -> vector<2x128xf32>
    %30 = vector.broadcast %1 : vector<1x128xf32> to vector<2x128xf32>
    %31 = arith.addf %29, %30 : vector<2x128xf32>
    %c3_25 = arith.constant 3 : index
    %c0_26 = arith.constant 0 : index
    %c0_27 = arith.constant 0 : index
    %32 = vector.load %arg11[%c3_25, %c0_26, %c0_27] : memref<8x2x128xf32, #tpu.memory_space<vmem>>, vector<1x2x128xf32>
    %33 = vector.shape_cast %32 : vector<1x2x128xf32> to vector<2x128xf32>
    %34 = vector.shape_cast %31 : vector<2x128xf32> to vector<1x2x128xf32>
    tpu.vector_store %arg11[%c3_25, %c0_26, %c0_27], %34 {strides = array<i32>} : memref<8x2x128xf32, #tpu.memory_space<vmem>>, vector<1x2x128xf32>,
    %c4 = arith.constant 4 : index
    %c0_28 = arith.constant 0 : index
    %c0_29 = arith.constant 0 : index
    %35 = vector.load %arg1[%c4, %c0_28, %c0_29] : memref<8x2x34xf32, #tpu.memory_space<vmem>>, vector<1x2x34xf32>
    %36 = vector.shape_cast %35 : vector<1x2x34xf32> to vector<2x34xf32>
    %cst_30 = arith.constant dense<0.000000e+00> : vector<2x128xf32>
    %37 = tpu.matmul %36, %2, %cst_30 {dimension_numbers = #tpu.dot_dimension_numbers<[1], [0], [0], [1], [0, 0, 1, 1], [], []>} : vector<2x34xf32>, vector<34x128xf32>, vector<2x128xf32> -> vector<2x128xf32>
    %38 = vector.broadcast %1 : vector<1x128xf32> to vector<2x128xf32>
    %39 = arith.addf %37, %38 : vector<2x128xf32>
    %c4_31 = arith.constant 4 : index
    %c0_32 = arith.constant 0 : index
    %c0_33 = arith.constant 0 : index
    %40 = vector.load %arg11[%c4_31, %c0_32, %c0_33] : memref<8x2x128xf32, #tpu.memory_space<vmem>>, vector<1x2x128xf32>
    %41 = vector.shape_cast %40 : vector<1x2x128xf32> to vector<2x128xf32>
    %42 = vector.shape_cast %39 : vector<2x128xf32> to vector<1x2x128xf32>
    tpu.vector_store %arg11[%c4_31, %c0_32, %c0_33], %42 {strides = array<i32>} : memref<8x2x128xf32, #tpu.memory_space<vmem>>, vector<1x2x128xf32>,
    %c5 = arith.constant 5 : index
    %c0_34 = arith.constant 0 : index
    %c0_35 = arith.constant 0 : index
    %43 = vector.load %arg1[%c5, %c0_34, %c0_35] : memref<8x2x34xf32, #tpu.memory_space<vmem>>, vector<1x2x34xf32>
    %44 = vector.shape_cast %43 : vector<1x2x34xf32> to vector<2x34xf32>
    %cst_36 = arith.constant dense<0.000000e+00> : vector<2x128xf32>
    %45 = tpu.matmul %44, %2, %cst_36 {dimension_numbers = #tpu.dot_dimension_numbers<[1], [0], [0], [1], [0, 0, 1, 1], [], []>} : vector<2x34xf32>, vector<34x128xf32>, vector<2x128xf32> -> vector<2x128xf32>
    %46 = vector.broadcast %1 : vector<1x128xf32> to vector<2x128xf32>
    %47 = arith.addf %45, %46 : vector<2x128xf32>
    %c5_37 = arith.constant 5 : index
    %c0_38 = arith.constant 0 : index
    %c0_39 = arith.constant 0 : index
    %48 = vector.load %arg11[%c5_37, %c0_38, %c0_39] : memref<8x2x128xf32, #tpu.memory_space<vmem>>, vector<1x2x128xf32>
    %49 = vector.shape_cast %48 : vector<1x2x128xf32> to vector<2x128xf32>
    %50 = vector.shape_cast %47 : vector<2x128xf32> to vector<1x2x128xf32>
    tpu.vector_store %arg11[%c5_37, %c0_38, %c0_39], %50 {strides = array<i32>} : memref<8x2x128xf32, #tpu.memory_space<vmem>>, vector<1x2x128xf32>,
    %c6 = arith.constant 6 : index
    %c0_40 = arith.constant 0 : index
    %c0_41 = arith.constant 0 : index
    %51 = vector.load %arg1[%c6, %c0_40, %c0_41] : memref<8x2x34xf32, #tpu.memory_space<vmem>>, vector<1x2x34xf32>
    %52 = vector.shape_cast %51 : vector<1x2x34xf32> to vector<2x34xf32>
    %cst_42 = arith.constant dense<0.000000e+00> : vector<2x128xf32>
    %53 = tpu.matmul %52, %2, %cst_42 {dimension_numbers = #tpu.dot_dimension_numbers<[1], [0], [0], [1], [0, 0, 1, 1], [], []>} : vector<2x34xf32>, vector<34x128xf32>, vector<2x128xf32> -> vector<2x128xf32>
    %54 = vector.broadcast %1 : vector<1x128xf32> to vector<2x128xf32>
    %55 = arith.addf %53, %54 : vector<2x128xf32>
    %c6_43 = arith.constant 6 : index
    %c0_44 = arith.constant 0 : index
    %c0_45 = arith.constant 0 : index
    %56 = vector.load %arg11[%c6_43, %c0_44, %c0_45] : memref<8x2x128xf32, #tpu.memory_space<vmem>>, vector<1x2x128xf32>
    %57 = vector.shape_cast %56 : vector<1x2x128xf32> to vector<2x128xf32>
    %58 = vector.shape_cast %55 : vector<2x128xf32> to vector<1x2x128xf32>
    tpu.vector_store %arg11[%c6_43, %c0_44, %c0_45], %58 {strides = array<i32>} : memref<8x2x128xf32, #tpu.memory_space<vmem>>, vector<1x2x128xf32>,
    %c7 = arith.constant 7 : index
    %c0_46 = arith.constant 0 : index
    %c0_47 = arith.constant 0 : index
    %59 = vector.load %arg1[%c7, %c0_46, %c0_47] : memref<8x2x34xf32, #tpu.memory_space<vmem>>, vector<1x2x34xf32>
    %60 = vector.shape_cast %59 : vector<1x2x34xf32> to vector<2x34xf32>
    %cst_48 = arith.constant dense<0.000000e+00> : vector<2x128xf32>
    %61 = tpu.matmul %60, %2, %cst_48 {dimension_numbers = #tpu.dot_dimension_numbers<[1], [0], [0], [1], [0, 0, 1, 1], [], []>} : vector<2x34xf32>, vector<34x128xf32>, vector<2x128xf32> -> vector<2x128xf32>
    %62 = vector.broadcast %1 : vector<1x128xf32> to vector<2x128xf32>
    %63 = arith.addf %61, %62 : vector<2x128xf32>
    %c7_49 = arith.constant 7 : index
    %c0_50 = arith.constant 0 : index
    %c0_51 = arith.constant 0 : index
    %64 = vector.load %arg11[%c7_49, %c0_50, %c0_51] : memref<8x2x128xf32, #tpu.memory_space<vmem>>, vector<1x2x128xf32>
    %65 = vector.shape_cast %64 : vector<1x2x128xf32> to vector<2x128xf32>
    %66 = vector.shape_cast %63 : vector<2x128xf32> to vector<1x2x128xf32>
    tpu.vector_store %arg11[%c7_49, %c0_50, %c0_51], %66 {strides = array<i32>} : memref<8x2x128xf32, #tpu.memory_space<vmem>>, vector<1x2x128xf32>,
    %c0_52 = arith.constant 0 : index
    %c0_53 = arith.constant 0 : index
    %c0_54 = arith.constant 0 : index
    %67 = vector.load %arg4[%c0_52, %c0_53, %c0_54] : memref<2x32x128xf32, #tpu.memory_space<vmem>>, vector<1x32x128xf32>
    %68 = vector.shape_cast %67 : vector<1x32x128xf32> to vector<32x128xf32>
    %c0_55 = arith.constant 0 : index
    %c0_56 = arith.constant 0 : index
    %c0_57 = arith.constant 0 : index
    %69 = vector.load %arg6[%c0_55, %c0_56, %c0_57] : memref<2x2x32xf32, #tpu.memory_space<vmem>>, vector<1x2x32xf32>
    %70 = vector.shape_cast %69 : vector<1x2x32xf32> to vector<2x32xf32>
    %c0_58 = arith.constant 0 : index
    %c0_59 = arith.constant 0 : index
    %c0_60 = arith.constant 0 : index
    %71 = vector.load %arg7[%c0_58, %c0_59, %c0_60] : memref<2x2x32xf32, #tpu.memory_space<vmem>>, vector<1x2x32xf32>
    %72 = vector.shape_cast %71 : vector<1x2x32xf32> to vector<2x32xf32>
    %c0_61 = arith.constant 0 : index
    %c0_62 = arith.constant 0 : index
    %c0_63 = arith.constant 0 : index
    %73 = vector.load %arg11[%c0_61, %c0_62, %c0_63] : memref<8x2x128xf32, #tpu.memory_space<vmem>>, vector<1x2x128xf32>
    %74 = vector.shape_cast %73 : vector<1x2x128xf32> to vector<2x128xf32>
    %cst_64 = arith.constant dense<0.000000e+00> : vector<2x128xf32>
    %75 = tpu.matmul %70, %68, %cst_64 {dimension_numbers = #tpu.dot_dimension_numbers<[1], [0], [0], [1], [0, 0, 1, 1], [], []>} : vector<2x32xf32>, vector<32x128xf32>, vector<2x128xf32> -> vector<2x128xf32>
    %76 = arith.addf %74, %75 : vector<2x128xf32>
    %77 = vector.extract_strided_slice %76 {offsets = [0, 0], sizes = [2, 96], strides = [1, 1]} : vector<2x128xf32> to vector<2x96xf32>
    %78 = arith.negf %77 : vector<2x96xf32>
    %79 = math.exp %78 : vector<2x96xf32>
    %cst_65 = arith.constant 1.000000e+00 : f32
    %80 = vector.broadcast %cst_65 : f32 to vector<2x96xf32>
    %81 = arith.addf %80, %79 : vector<2x96xf32>
    %82 = arith.divf %80, %81 : vector<2x96xf32>
    %83 = vector.extract_strided_slice %76 {offsets = [0, 96], sizes = [2, 32], strides = [1, 1]} : vector<2x128xf32> to vector<2x32xf32>
    %84 = math.tanh %83 : vector<2x32xf32>
    %85 = vector.extract_strided_slice %82 {offsets = [0, 0], sizes = [2, 32], strides = [1, 1]} : vector<2x96xf32> to vector<2x32xf32>
    %86 = vector.extract_strided_slice %82 {offsets = [0, 32], sizes = [2, 32], strides = [1, 1]} : vector<2x96xf32> to vector<2x32xf32>
    %87 = vector.extract_strided_slice %82 {offsets = [0, 64], sizes = [2, 32], strides = [1, 1]} : vector<2x96xf32> to vector<2x32xf32>
    %88 = arith.mulf %86, %72 : vector<2x32xf32>
    %89 = arith.mulf %85, %84 : vector<2x32xf32>
    %90 = arith.addf %88, %89 : vector<2x32xf32>
    %91 = math.tanh %90 : vector<2x32xf32>
    %92 = arith.mulf %87, %91 : vector<2x32xf32>
    %c0_66 = arith.constant 0 : index
    %c0_67 = arith.constant 0 : index
    %c0_68 = arith.constant 0 : index
    %93 = vector.load %arg12[%c0_66, %c0_67, %c0_68] : memref<8x2x32xf32, #tpu.memory_space<vmem>>, vector<1x2x32xf32>
    %94 = vector.shape_cast %93 : vector<1x2x32xf32> to vector<2x32xf32>
    %95 = vector.shape_cast %92 : vector<2x32xf32> to vector<1x2x32xf32>
    tpu.vector_store %arg12[%c0_66, %c0_67, %c0_68], %95 {strides = array<i32>} : memref<8x2x32xf32, #tpu.memory_space<vmem>>, vector<1x2x32xf32>,
    %c1_69 = arith.constant 1 : index
    %c0_70 = arith.constant 0 : index
    %c0_71 = arith.constant 0 : index
    %96 = vector.load %arg11[%c1_69, %c0_70, %c0_71] : memref<8x2x128xf32, #tpu.memory_space<vmem>>, vector<1x2x128xf32>
    %97 = vector.shape_cast %96 : vector<1x2x128xf32> to vector<2x128xf32>
    %cst_72 = arith.constant dense<0.000000e+00> : vector<2x128xf32>
    %98 = tpu.matmul %92, %68, %cst_72 {dimension_numbers = #tpu.dot_dimension_numbers<[1], [0], [0], [1], [0, 0, 1, 1], [], []>} : vector<2x32xf32>, vector<32x128xf32>, vector<2x128xf32> -> vector<2x128xf32>
    %99 = arith.addf %97, %98 : vector<2x128xf32>
    %100 = vector.extract_strided_slice %99 {offsets = [0, 0], sizes = [2, 96], strides = [1, 1]} : vector<2x128xf32> to vector<2x96xf32>
    %101 = arith.negf %100 : vector<2x96xf32>
    %102 = math.exp %101 : vector<2x96xf32>
    %cst_73 = arith.constant 1.000000e+00 : f32
    %103 = vector.broadcast %cst_73 : f32 to vector<2x96xf32>
    %104 = arith.addf %103, %102 : vector<2x96xf32>
    %105 = arith.divf %103, %104 : vector<2x96xf32>
    %106 = vector.extract_strided_slice %99 {offsets = [0, 96], sizes = [2, 32], strides = [1, 1]} : vector<2x128xf32> to vector<2x32xf32>
    %107 = math.tanh %106 : vector<2x32xf32>
    %108 = vector.extract_strided_slice %105 {offsets = [0, 0], sizes = [2, 32], strides = [1, 1]} : vector<2x96xf32> to vector<2x32xf32>
    %109 = vector.extract_strided_slice %105 {offsets = [0, 32], sizes = [2, 32], strides = [1, 1]} : vector<2x96xf32> to vector<2x32xf32>
    %110 = vector.extract_strided_slice %105 {offsets = [0, 64], sizes = [2, 32], strides = [1, 1]} : vector<2x96xf32> to vector<2x32xf32>
    %111 = arith.mulf %109, %90 : vector<2x32xf32>
    %112 = arith.mulf %108, %107 : vector<2x32xf32>
    %113 = arith.addf %111, %112 : vector<2x32xf32>
    %114 = math.tanh %113 : vector<2x32xf32>
    %115 = arith.mulf %110, %114 : vector<2x32xf32>
    %c1_74 = arith.constant 1 : index
    %c0_75 = arith.constant 0 : index
    %c0_76 = arith.constant 0 : index
    %116 = vector.load %arg12[%c1_74, %c0_75, %c0_76] : memref<8x2x32xf32, #tpu.memory_space<vmem>>, vector<1x2x32xf32>
    %117 = vector.shape_cast %116 : vector<1x2x32xf32> to vector<2x32xf32>
    %118 = vector.shape_cast %115 : vector<2x32xf32> to vector<1x2x32xf32>
    tpu.vector_store %arg12[%c1_74, %c0_75, %c0_76], %118 {strides = array<i32>} : memref<8x2x32xf32, #tpu.memory_space<vmem>>, vector<1x2x32xf32>,
    %c2_77 = arith.constant 2 : index
    %c0_78 = arith.constant 0 : index
    %c0_79 = arith.constant 0 : index
    %119 = vector.load %arg11[%c2_77, %c0_78, %c0_79] : memref<8x2x128xf32, #tpu.memory_space<vmem>>, vector<1x2x128xf32>
    %120 = vector.shape_cast %119 : vector<1x2x128xf32> to vector<2x128xf32>
    %cst_80 = arith.constant dense<0.000000e+00> : vector<2x128xf32>
    %121 = tpu.matmul %115, %68, %cst_80 {dimension_numbers = #tpu.dot_dimension_numbers<[1], [0], [0], [1], [0, 0, 1, 1], [], []>} : vector<2x32xf32>, vector<32x128xf32>, vector<2x128xf32> -> vector<2x128xf32>
    %122 = arith.addf %120, %121 : vector<2x128xf32>
    %123 = vector.extract_strided_slice %122 {offsets = [0, 0], sizes = [2, 96], strides = [1, 1]} : vector<2x128xf32> to vector<2x96xf32>
    %124 = arith.negf %123 : vector<2x96xf32>
    %125 = math.exp %124 : vector<2x96xf32>
    %cst_81 = arith.constant 1.000000e+00 : f32
    %126 = vector.broadcast %cst_81 : f32 to vector<2x96xf32>
    %127 = arith.addf %126, %125 : vector<2x96xf32>
    %128 = arith.divf %126, %127 : vector<2x96xf32>
    %129 = vector.extract_strided_slice %122 {offsets = [0, 96], sizes = [2, 32], strides = [1, 1]} : vector<2x128xf32> to vector<2x32xf32>
    %130 = math.tanh %129 : vector<2x32xf32>
    %131 = vector.extract_strided_slice %128 {offsets = [0, 0], sizes = [2, 32], strides = [1, 1]} : vector<2x96xf32> to vector<2x32xf32>
    %132 = vector.extract_strided_slice %128 {offsets = [0, 32], sizes = [2, 32], strides = [1, 1]} : vector<2x96xf32> to vector<2x32xf32>
    %133 = vector.extract_strided_slice %128 {offsets = [0, 64], sizes = [2, 32], strides = [1, 1]} : vector<2x96xf32> to vector<2x32xf32>
    %134 = arith.mulf %132, %113 : vector<2x32xf32>
    %135 = arith.mulf %131, %130 : vector<2x32xf32>
    %136 = arith.addf %134, %135 : vector<2x32xf32>
    %137 = math.tanh %136 : vector<2x32xf32>
    %138 = arith.mulf %133, %137 : vector<2x32xf32>
    %c2_82 = arith.constant 2 : index
    %c0_83 = arith.constant 0 : index
    %c0_84 = arith.constant 0 : index
    %139 = vector.load %arg12[%c2_82, %c0_83, %c0_84] : memref<8x2x32xf32, #tpu.memory_space<vmem>>, vector<1x2x32xf32>
    %140 = vector.shape_cast %139 : vector<1x2x32xf32> to vector<2x32xf32>
    %141 = vector.shape_cast %138 : vector<2x32xf32> to vector<1x2x32xf32>
    tpu.vector_store %arg12[%c2_82, %c0_83, %c0_84], %141 {strides = array<i32>} : memref<8x2x32xf32, #tpu.memory_space<vmem>>, vector<1x2x32xf32>,
    %c3_85 = arith.constant 3 : index
    %c0_86 = arith.constant 0 : index
    %c0_87 = arith.constant 0 : index
    %142 = vector.load %arg11[%c3_85, %c0_86, %c0_87] : memref<8x2x128xf32, #tpu.memory_space<vmem>>, vector<1x2x128xf32>
    %143 = vector.shape_cast %142 : vector<1x2x128xf32> to vector<2x128xf32>
    %cst_88 = arith.constant dense<0.000000e+00> : vector<2x128xf32>
    %144 = tpu.matmul %138, %68, %cst_88 {dimension_numbers = #tpu.dot_dimension_numbers<[1], [0], [0], [1], [0, 0, 1, 1], [], []>} : vector<2x32xf32>, vector<32x128xf32>, vector<2x128xf32> -> vector<2x128xf32>
    %145 = arith.addf %143, %144 : vector<2x128xf32>
    %146 = vector.extract_strided_slice %145 {offsets = [0, 0], sizes = [2, 96], strides = [1, 1]} : vector<2x128xf32> to vector<2x96xf32>
    %147 = arith.negf %146 : vector<2x96xf32>
    %148 = math.exp %147 : vector<2x96xf32>
    %cst_89 = arith.constant 1.000000e+00 : f32
    %149 = vector.broadcast %cst_89 : f32 to vector<2x96xf32>
    %150 = arith.addf %149, %148 : vector<2x96xf32>
    %151 = arith.divf %149, %150 : vector<2x96xf32>
    %152 = vector.extract_strided_slice %145 {offsets = [0, 96], sizes = [2, 32], strides = [1, 1]} : vector<2x128xf32> to vector<2x32xf32>
    %153 = math.tanh %152 : vector<2x32xf32>
    %154 = vector.extract_strided_slice %151 {offsets = [0, 0], sizes = [2, 32], strides = [1, 1]} : vector<2x96xf32> to vector<2x32xf32>
    %155 = vector.extract_strided_slice %151 {offsets = [0, 32], sizes = [2, 32], strides = [1, 1]} : vector<2x96xf32> to vector<2x32xf32>
    %156 = vector.extract_strided_slice %151 {offsets = [0, 64], sizes = [2, 32], strides = [1, 1]} : vector<2x96xf32> to vector<2x32xf32>
    %157 = arith.mulf %155, %136 : vector<2x32xf32>
    %158 = arith.mulf %154, %153 : vector<2x32xf32>
    %159 = arith.addf %157, %158 : vector<2x32xf32>
    %160 = math.tanh %159 : vector<2x32xf32>
    %161 = arith.mulf %156, %160 : vector<2x32xf32>
    %c3_90 = arith.constant 3 : index
    %c0_91 = arith.constant 0 : index
    %c0_92 = arith.constant 0 : index
    %162 = vector.load %arg12[%c3_90, %c0_91, %c0_92] : memref<8x2x32xf32, #tpu.memory_space<vmem>>, vector<1x2x32xf32>
    %163 = vector.shape_cast %162 : vector<1x2x32xf32> to vector<2x32xf32>
    %164 = vector.shape_cast %161 : vector<2x32xf32> to vector<1x2x32xf32>
    tpu.vector_store %arg12[%c3_90, %c0_91, %c0_92], %164 {strides = array<i32>} : memref<8x2x32xf32, #tpu.memory_space<vmem>>, vector<1x2x32xf32>,
    %c4_93 = arith.constant 4 : index
    %c0_94 = arith.constant 0 : index
    %c0_95 = arith.constant 0 : index
    %165 = vector.load %arg11[%c4_93, %c0_94, %c0_95] : memref<8x2x128xf32, #tpu.memory_space<vmem>>, vector<1x2x128xf32>
    %166 = vector.shape_cast %165 : vector<1x2x128xf32> to vector<2x128xf32>
    %cst_96 = arith.constant dense<0.000000e+00> : vector<2x128xf32>
    %167 = tpu.matmul %161, %68, %cst_96 {dimension_numbers = #tpu.dot_dimension_numbers<[1], [0], [0], [1], [0, 0, 1, 1], [], []>} : vector<2x32xf32>, vector<32x128xf32>, vector<2x128xf32> -> vector<2x128xf32>
    %168 = arith.addf %166, %167 : vector<2x128xf32>
    %169 = vector.extract_strided_slice %168 {offsets = [0, 0], sizes = [2, 96], strides = [1, 1]} : vector<2x128xf32> to vector<2x96xf32>
    %170 = arith.negf %169 : vector<2x96xf32>
    %171 = math.exp %170 : vector<2x96xf32>
    %cst_97 = arith.constant 1.000000e+00 : f32
    %172 = vector.broadcast %cst_97 : f32 to vector<2x96xf32>
    %173 = arith.addf %172, %171 : vector<2x96xf32>
    %174 = arith.divf %172, %173 : vector<2x96xf32>
    %175 = vector.extract_strided_slice %168 {offsets = [0, 96], sizes = [2, 32], strides = [1, 1]} : vector<2x128xf32> to vector<2x32xf32>
    %176 = math.tanh %175 : vector<2x32xf32>
    %177 = vector.extract_strided_slice %174 {offsets = [0, 0], sizes = [2, 32], strides = [1, 1]} : vector<2x96xf32> to vector<2x32xf32>
    %178 = vector.extract_strided_slice %174 {offsets = [0, 32], sizes = [2, 32], strides = [1, 1]} : vector<2x96xf32> to vector<2x32xf32>
    %179 = vector.extract_strided_slice %174 {offsets = [0, 64], sizes = [2, 32], strides = [1, 1]} : vector<2x96xf32> to vector<2x32xf32>
    %180 = arith.mulf %178, %159 : vector<2x32xf32>
    %181 = arith.mulf %177, %176 : vector<2x32xf32>
    %182 = arith.addf %180, %181 : vector<2x32xf32>
    %183 = math.tanh %182 : vector<2x32xf32>
    %184 = arith.mulf %179, %183 : vector<2x32xf32>
    %c4_98 = arith.constant 4 : index
    %c0_99 = arith.constant 0 : index
    %c0_100 = arith.constant 0 : index
    %185 = vector.load %arg12[%c4_98, %c0_99, %c0_100] : memref<8x2x32xf32, #tpu.memory_space<vmem>>, vector<1x2x32xf32>
    %186 = vector.shape_cast %185 : vector<1x2x32xf32> to vector<2x32xf32>
    %187 = vector.shape_cast %184 : vector<2x32xf32> to vector<1x2x32xf32>
    tpu.vector_store %arg12[%c4_98, %c0_99, %c0_100], %187 {strides = array<i32>} : memref<8x2x32xf32, #tpu.memory_space<vmem>>, vector<1x2x32xf32>,
    %c5_101 = arith.constant 5 : index
    %c0_102 = arith.constant 0 : index
    %c0_103 = arith.constant 0 : index
    %188 = vector.load %arg11[%c5_101, %c0_102, %c0_103] : memref<8x2x128xf32, #tpu.memory_space<vmem>>, vector<1x2x128xf32>
    %189 = vector.shape_cast %188 : vector<1x2x128xf32> to vector<2x128xf32>
    %cst_104 = arith.constant dense<0.000000e+00> : vector<2x128xf32>
    %190 = tpu.matmul %184, %68, %cst_104 {dimension_numbers = #tpu.dot_dimension_numbers<[1], [0], [0], [1], [0, 0, 1, 1], [], []>} : vector<2x32xf32>, vector<32x128xf32>, vector<2x128xf32> -> vector<2x128xf32>
    %191 = arith.addf %189, %190 : vector<2x128xf32>
    %192 = vector.extract_strided_slice %191 {offsets = [0, 0], sizes = [2, 96], strides = [1, 1]} : vector<2x128xf32> to vector<2x96xf32>
    %193 = arith.negf %192 : vector<2x96xf32>
    %194 = math.exp %193 : vector<2x96xf32>
    %cst_105 = arith.constant 1.000000e+00 : f32
    %195 = vector.broadcast %cst_105 : f32 to vector<2x96xf32>
    %196 = arith.addf %195, %194 : vector<2x96xf32>
    %197 = arith.divf %195, %196 : vector<2x96xf32>
    %198 = vector.extract_strided_slice %191 {offsets = [0, 96], sizes = [2, 32], strides = [1, 1]} : vector<2x128xf32> to vector<2x32xf32>
    %199 = math.tanh %198 : vector<2x32xf32>
    %200 = vector.extract_strided_slice %197 {offsets = [0, 0], sizes = [2, 32], strides = [1, 1]} : vector<2x96xf32> to vector<2x32xf32>
    %201 = vector.extract_strided_slice %197 {offsets = [0, 32], sizes = [2, 32], strides = [1, 1]} : vector<2x96xf32> to vector<2x32xf32>
    %202 = vector.extract_strided_slice %197 {offsets = [0, 64], sizes = [2, 32], strides = [1, 1]} : vector<2x96xf32> to vector<2x32xf32>
    %203 = arith.mulf %201, %182 : vector<2x32xf32>
    %204 = arith.mulf %200, %199 : vector<2x32xf32>
    %205 = arith.addf %203, %204 : vector<2x32xf32>
    %206 = math.tanh %205 : vector<2x32xf32>
    %207 = arith.mulf %202, %206 : vector<2x32xf32>
    %c5_106 = arith.constant 5 : index
    %c0_107 = arith.constant 0 : index
    %c0_108 = arith.constant 0 : index
    %208 = vector.load %arg12[%c5_106, %c0_107, %c0_108] : memref<8x2x32xf32, #tpu.memory_space<vmem>>, vector<1x2x32xf32>
    %209 = vector.shape_cast %208 : vector<1x2x32xf32> to vector<2x32xf32>
    %210 = vector.shape_cast %207 : vector<2x32xf32> to vector<1x2x32xf32>
    tpu.vector_store %arg12[%c5_106, %c0_107, %c0_108], %210 {strides = array<i32>} : memref<8x2x32xf32, #tpu.memory_space<vmem>>, vector<1x2x32xf32>,
    %c6_109 = arith.constant 6 : index
    %c0_110 = arith.constant 0 : index
    %c0_111 = arith.constant 0 : index
    %211 = vector.load %arg11[%c6_109, %c0_110, %c0_111] : memref<8x2x128xf32, #tpu.memory_space<vmem>>, vector<1x2x128xf32>
    %212 = vector.shape_cast %211 : vector<1x2x128xf32> to vector<2x128xf32>
    %cst_112 = arith.constant dense<0.000000e+00> : vector<2x128xf32>
    %213 = tpu.matmul %207, %68, %cst_112 {dimension_numbers = #tpu.dot_dimension_numbers<[1], [0], [0], [1], [0, 0, 1, 1], [], []>} : vector<2x32xf32>, vector<32x128xf32>, vector<2x128xf32> -> vector<2x128xf32>
    %214 = arith.addf %212, %213 : vector<2x128xf32>
    %215 = vector.extract_strided_slice %214 {offsets = [0, 0], sizes = [2, 96], strides = [1, 1]} : vector<2x128xf32> to vector<2x96xf32>
    %216 = arith.negf %215 : vector<2x96xf32>
    %217 = math.exp %216 : vector<2x96xf32>
    %cst_113 = arith.constant 1.000000e+00 : f32
    %218 = vector.broadcast %cst_113 : f32 to vector<2x96xf32>
    %219 = arith.addf %218, %217 : vector<2x96xf32>
    %220 = arith.divf %218, %219 : vector<2x96xf32>
    %221 = vector.extract_strided_slice %214 {offsets = [0, 96], sizes = [2, 32], strides = [1, 1]} : vector<2x128xf32> to vector<2x32xf32>
    %222 = math.tanh %221 : vector<2x32xf32>
    %223 = vector.extract_strided_slice %220 {offsets = [0, 0], sizes = [2, 32], strides = [1, 1]} : vector<2x96xf32> to vector<2x32xf32>
    %224 = vector.extract_strided_slice %220 {offsets = [0, 32], sizes = [2, 32], strides = [1, 1]} : vector<2x96xf32> to vector<2x32xf32>
    %225 = vector.extract_strided_slice %220 {offsets = [0, 64], sizes = [2, 32], strides = [1, 1]} : vector<2x96xf32> to vector<2x32xf32>
    %226 = arith.mulf %224, %205 : vector<2x32xf32>
    %227 = arith.mulf %223, %222 : vector<2x32xf32>
    %228 = arith.addf %226, %227 : vector<2x32xf32>
    %229 = math.tanh %228 : vector<2x32xf32>
    %230 = arith.mulf %225, %229 : vector<2x32xf32>
    %c6_114 = arith.constant 6 : index
    %c0_115 = arith.constant 0 : index
    %c0_116 = arith.constant 0 : index
    %231 = vector.load %arg12[%c6_114, %c0_115, %c0_116] : memref<8x2x32xf32, #tpu.memory_space<vmem>>, vector<1x2x32xf32>
    %232 = vector.shape_cast %231 : vector<1x2x32xf32> to vector<2x32xf32>
    %233 = vector.shape_cast %230 : vector<2x32xf32> to vector<1x2x32xf32>
    tpu.vector_store %arg12[%c6_114, %c0_115, %c0_116], %233 {strides = array<i32>} : memref<8x2x32xf32, #tpu.memory_space<vmem>>, vector<1x2x32xf32>,
    %c7_117 = arith.constant 7 : index
    %c0_118 = arith.constant 0 : index
    %c0_119 = arith.constant 0 : index
    %234 = vector.load %arg11[%c7_117, %c0_118, %c0_119] : memref<8x2x128xf32, #tpu.memory_space<vmem>>, vector<1x2x128xf32>
    %235 = vector.shape_cast %234 : vector<1x2x128xf32> to vector<2x128xf32>
    %cst_120 = arith.constant dense<0.000000e+00> : vector<2x128xf32>
    %236 = tpu.matmul %230, %68, %cst_120 {dimension_numbers = #tpu.dot_dimension_numbers<[1], [0], [0], [1], [0, 0, 1, 1], [], []>} : vector<2x32xf32>, vector<32x128xf32>, vector<2x128xf32> -> vector<2x128xf32>
    %237 = arith.addf %235, %236 : vector<2x128xf32>
    %238 = vector.extract_strided_slice %237 {offsets = [0, 0], sizes = [2, 96], strides = [1, 1]} : vector<2x128xf32> to vector<2x96xf32>
    %239 = arith.negf %238 : vector<2x96xf32>
    %240 = math.exp %239 : vector<2x96xf32>
    %cst_121 = arith.constant 1.000000e+00 : f32
    %241 = vector.broadcast %cst_121 : f32 to vector<2x96xf32>
    %242 = arith.addf %241, %240 : vector<2x96xf32>
    %243 = arith.divf %241, %242 : vector<2x96xf32>
    %244 = vector.extract_strided_slice %237 {offsets = [0, 96], sizes = [2, 32], strides = [1, 1]} : vector<2x128xf32> to vector<2x32xf32>
    %245 = math.tanh %244 : vector<2x32xf32>
    %246 = vector.extract_strided_slice %243 {offsets = [0, 0], sizes = [2, 32], strides = [1, 1]} : vector<2x96xf32> to vector<2x32xf32>
    %247 = vector.extract_strided_slice %243 {offsets = [0, 32], sizes = [2, 32], strides = [1, 1]} : vector<2x96xf32> to vector<2x32xf32>
    %248 = vector.extract_strided_slice %243 {offsets = [0, 64], sizes = [2, 32], strides = [1, 1]} : vector<2x96xf32> to vector<2x32xf32>
    %249 = arith.mulf %247, %228 : vector<2x32xf32>
    %250 = arith.mulf %246, %245 : vector<2x32xf32>
    %251 = arith.addf %249, %250 : vector<2x32xf32>
    %252 = math.tanh %251 : vector<2x32xf32>
    %253 = arith.mulf %248, %252 : vector<2x32xf32>
    %c7_122 = arith.constant 7 : index
    %c0_123 = arith.constant 0 : index
    %c0_124 = arith.constant 0 : index
    %254 = vector.load %arg12[%c7_122, %c0_123, %c0_124] : memref<8x2x32xf32, #tpu.memory_space<vmem>>, vector<1x2x32xf32>
    %255 = vector.shape_cast %254 : vector<1x2x32xf32> to vector<2x32xf32>
    %256 = vector.shape_cast %253 : vector<2x32xf32> to vector<1x2x32xf32>
    tpu.vector_store %arg12[%c7_122, %c0_123, %c0_124], %256 {strides = array<i32>} : memref<8x2x32xf32, #tpu.memory_space<vmem>>, vector<1x2x32xf32>,
    %c0_125 = arith.constant 0 : index
    %c0_126 = arith.constant 0 : index
    %c0_127 = arith.constant 0 : index
    %257 = vector.load %arg9[%c0_125, %c0_126, %c0_127] : memref<2x2x32xf32, #tpu.memory_space<vmem>>, vector<1x2x32xf32>
    %258 = vector.shape_cast %257 : vector<1x2x32xf32> to vector<2x32xf32>
    %259 = vector.shape_cast %253 : vector<2x32xf32> to vector<1x2x32xf32>
    tpu.vector_store %arg9[%c0_125, %c0_126, %c0_127], %259 {strides = array<i32>} : memref<2x2x32xf32, #tpu.memory_space<vmem>>, vector<1x2x32xf32>,
    %c0_128 = arith.constant 0 : index
    %c0_129 = arith.constant 0 : index
    %c0_130 = arith.constant 0 : index
    %260 = vector.load %arg10[%c0_128, %c0_129, %c0_130] : memref<2x2x32xf32, #tpu.memory_space<vmem>>, vector<1x2x32xf32>
    %261 = vector.shape_cast %260 : vector<1x2x32xf32> to vector<2x32xf32>
    %262 = vector.shape_cast %251 : vector<2x32xf32> to vector<1x2x32xf32>
    tpu.vector_store %arg10[%c0_128, %c0_129, %c0_130], %262 {strides = array<i32>} : memref<2x2x32xf32, #tpu.memory_space<vmem>>, vector<1x2x32xf32>,
    %c1_131 = arith.constant 1 : index
    %c0_132 = arith.constant 0 : index
    %c0_133 = arith.constant 0 : index
    %263 = vector.load %arg5[%c1_131, %c0_132, %c0_133] : memref<2x1x128xf32, #tpu.memory_space<vmem>>, vector<1x1x128xf32>
    %264 = vector.shape_cast %263 : vector<1x1x128xf32> to vector<1x128xf32>
    %c0_134 = arith.constant 0 : index
    %c0_135 = arith.constant 0 : index
    %c0_136 = arith.constant 0 : index
    %265 = vector.load %arg3[%c0_134, %c0_135, %c0_136] : memref<1x32x128xf32, #tpu.memory_space<vmem>>, vector<1x32x128xf32>
    %266 = vector.shape_cast %265 : vector<1x32x128xf32> to vector<32x128xf32>
    %c0_137 = arith.constant 0 : index
    %c0_138 = arith.constant 0 : index
    %c0_139 = arith.constant 0 : index
    %267 = vector.load %arg12[%c0_137, %c0_138, %c0_139] : memref<8x2x32xf32, #tpu.memory_space<vmem>>, vector<1x2x32xf32>
    %268 = vector.shape_cast %267 : vector<1x2x32xf32> to vector<2x32xf32>
    %cst_140 = arith.constant dense<0.000000e+00> : vector<2x128xf32>
    %269 = tpu.matmul %268, %266, %cst_140 {dimension_numbers = #tpu.dot_dimension_numbers<[1], [0], [0], [1], [0, 0, 1, 1], [], []>} : vector<2x32xf32>, vector<32x128xf32>, vector<2x128xf32> -> vector<2x128xf32>
    %270 = vector.broadcast %264 : vector<1x128xf32> to vector<2x128xf32>
    %271 = arith.addf %269, %270 : vector<2x128xf32>
    %c0_141 = arith.constant 0 : index
    %c0_142 = arith.constant 0 : index
    %c0_143 = arith.constant 0 : index
    %272 = vector.load %arg11[%c0_141, %c0_142, %c0_143] : memref<8x2x128xf32, #tpu.memory_space<vmem>>, vector<1x2x128xf32>
    %273 = vector.shape_cast %272 : vector<1x2x128xf32> to vector<2x128xf32>
    %274 = vector.shape_cast %271 : vector<2x128xf32> to vector<1x2x128xf32>
    tpu.vector_store %arg11[%c0_141, %c0_142, %c0_143], %274 {strides = array<i32>} : memref<8x2x128xf32, #tpu.memory_space<vmem>>, vector<1x2x128xf32>,
    %c1_144 = arith.constant 1 : index
    %c0_145 = arith.constant 0 : index
    %c0_146 = arith.constant 0 : index
    %275 = vector.load %arg12[%c1_144, %c0_145, %c0_146] : memref<8x2x32xf32, #tpu.memory_space<vmem>>, vector<1x2x32xf32>
    %276 = vector.shape_cast %275 : vector<1x2x32xf32> to vector<2x32xf32>
    %cst_147 = arith.constant dense<0.000000e+00> : vector<2x128xf32>
    %277 = tpu.matmul %276, %266, %cst_147 {dimension_numbers = #tpu.dot_dimension_numbers<[1], [0], [0], [1], [0, 0, 1, 1], [], []>} : vector<2x32xf32>, vector<32x128xf32>, vector<2x128xf32> -> vector<2x128xf32>
    %278 = vector.broadcast %264 : vector<1x128xf32> to vector<2x128xf32>
    %279 = arith.addf %277, %278 : vector<2x128xf32>
    %c1_148 = arith.constant 1 : index
    %c0_149 = arith.constant 0 : index
    %c0_150 = arith.constant 0 : index
    %280 = vector.load %arg11[%c1_148, %c0_149, %c0_150] : memref<8x2x128xf32, #tpu.memory_space<vmem>>, vector<1x2x128xf32>
    %281 = vector.shape_cast %280 : vector<1x2x128xf32> to vector<2x128xf32>
    %282 = vector.shape_cast %279 : vector<2x128xf32> to vector<1x2x128xf32>
    tpu.vector_store %arg11[%c1_148, %c0_149, %c0_150], %282 {strides = array<i32>} : memref<8x2x128xf32, #tpu.memory_space<vmem>>, vector<1x2x128xf32>,
    %c2_151 = arith.constant 2 : index
    %c0_152 = arith.constant 0 : index
    %c0_153 = arith.constant 0 : index
    %283 = vector.load %arg12[%c2_151, %c0_152, %c0_153] : memref<8x2x32xf32, #tpu.memory_space<vmem>>, vector<1x2x32xf32>
    %284 = vector.shape_cast %283 : vector<1x2x32xf32> to vector<2x32xf32>
    %cst_154 = arith.constant dense<0.000000e+00> : vector<2x128xf32>
    %285 = tpu.matmul %284, %266, %cst_154 {dimension_numbers = #tpu.dot_dimension_numbers<[1], [0], [0], [1], [0, 0, 1, 1], [], []>} : vector<2x32xf32>, vector<32x128xf32>, vector<2x128xf32> -> vector<2x128xf32>
    %286 = vector.broadcast %264 : vector<1x128xf32> to vector<2x128xf32>
    %287 = arith.addf %285, %286 : vector<2x128xf32>
    %c2_155 = arith.constant 2 : index
    %c0_156 = arith.constant 0 : index
    %c0_157 = arith.constant 0 : index
    %288 = vector.load %arg11[%c2_155, %c0_156, %c0_157] : memref<8x2x128xf32, #tpu.memory_space<vmem>>, vector<1x2x128xf32>
    %289 = vector.shape_cast %288 : vector<1x2x128xf32> to vector<2x128xf32>
    %290 = vector.shape_cast %287 : vector<2x128xf32> to vector<1x2x128xf32>
    tpu.vector_store %arg11[%c2_155, %c0_156, %c0_157], %290 {strides = array<i32>} : memref<8x2x128xf32, #tpu.memory_space<vmem>>, vector<1x2x128xf32>,
    %c3_158 = arith.constant 3 : index
    %c0_159 = arith.constant 0 : index
    %c0_160 = arith.constant 0 : index
    %291 = vector.load %arg12[%c3_158, %c0_159, %c0_160] : memref<8x2x32xf32, #tpu.memory_space<vmem>>, vector<1x2x32xf32>
    %292 = vector.shape_cast %291 : vector<1x2x32xf32> to vector<2x32xf32>
    %cst_161 = arith.constant dense<0.000000e+00> : vector<2x128xf32>
    %293 = tpu.matmul %292, %266, %cst_161 {dimension_numbers = #tpu.dot_dimension_numbers<[1], [0], [0], [1], [0, 0, 1, 1], [], []>} : vector<2x32xf32>, vector<32x128xf32>, vector<2x128xf32> -> vector<2x128xf32>
    %294 = vector.broadcast %264 : vector<1x128xf32> to vector<2x128xf32>
    %295 = arith.addf %293, %294 : vector<2x128xf32>
    %c3_162 = arith.constant 3 : index
    %c0_163 = arith.constant 0 : index
    %c0_164 = arith.constant 0 : index
    %296 = vector.load %arg11[%c3_162, %c0_163, %c0_164] : memref<8x2x128xf32, #tpu.memory_space<vmem>>, vector<1x2x128xf32>
    %297 = vector.shape_cast %296 : vector<1x2x128xf32> to vector<2x128xf32>
    %298 = vector.shape_cast %295 : vector<2x128xf32> to vector<1x2x128xf32>
    tpu.vector_store %arg11[%c3_162, %c0_163, %c0_164], %298 {strides = array<i32>} : memref<8x2x128xf32, #tpu.memory_space<vmem>>, vector<1x2x128xf32>,
    %c4_165 = arith.constant 4 : index
    %c0_166 = arith.constant 0 : index
    %c0_167 = arith.constant 0 : index
    %299 = vector.load %arg12[%c4_165, %c0_166, %c0_167] : memref<8x2x32xf32, #tpu.memory_space<vmem>>, vector<1x2x32xf32>
    %300 = vector.shape_cast %299 : vector<1x2x32xf32> to vector<2x32xf32>
    %cst_168 = arith.constant dense<0.000000e+00> : vector<2x128xf32>
    %301 = tpu.matmul %300, %266, %cst_168 {dimension_numbers = #tpu.dot_dimension_numbers<[1], [0], [0], [1], [0, 0, 1, 1], [], []>} : vector<2x32xf32>, vector<32x128xf32>, vector<2x128xf32> -> vector<2x128xf32>
    %302 = vector.broadcast %264 : vector<1x128xf32> to vector<2x128xf32>
    %303 = arith.addf %301, %302 : vector<2x128xf32>
    %c4_169 = arith.constant 4 : index
    %c0_170 = arith.constant 0 : index
    %c0_171 = arith.constant 0 : index
    %304 = vector.load %arg11[%c4_169, %c0_170, %c0_171] : memref<8x2x128xf32, #tpu.memory_space<vmem>>, vector<1x2x128xf32>
    %305 = vector.shape_cast %304 : vector<1x2x128xf32> to vector<2x128xf32>
    %306 = vector.shape_cast %303 : vector<2x128xf32> to vector<1x2x128xf32>
    tpu.vector_store %arg11[%c4_169, %c0_170, %c0_171], %306 {strides = array<i32>} : memref<8x2x128xf32, #tpu.memory_space<vmem>>, vector<1x2x128xf32>,
    %c5_172 = arith.constant 5 : index
    %c0_173 = arith.constant 0 : index
    %c0_174 = arith.constant 0 : index
    %307 = vector.load %arg12[%c5_172, %c0_173, %c0_174] : memref<8x2x32xf32, #tpu.memory_space<vmem>>, vector<1x2x32xf32>
    %308 = vector.shape_cast %307 : vector<1x2x32xf32> to vector<2x32xf32>
    %cst_175 = arith.constant dense<0.000000e+00> : vector<2x128xf32>
    %309 = tpu.matmul %308, %266, %cst_175 {dimension_numbers = #tpu.dot_dimension_numbers<[1], [0], [0], [1], [0, 0, 1, 1], [], []>} : vector<2x32xf32>, vector<32x128xf32>, vector<2x128xf32> -> vector<2x128xf32>
    %310 = vector.broadcast %264 : vector<1x128xf32> to vector<2x128xf32>
    %311 = arith.addf %309, %310 : vector<2x128xf32>
    %c5_176 = arith.constant 5 : index
    %c0_177 = arith.constant 0 : index
    %c0_178 = arith.constant 0 : index
    %312 = vector.load %arg11[%c5_176, %c0_177, %c0_178] : memref<8x2x128xf32, #tpu.memory_space<vmem>>, vector<1x2x128xf32>
    %313 = vector.shape_cast %312 : vector<1x2x128xf32> to vector<2x128xf32>
    %314 = vector.shape_cast %311 : vector<2x128xf32> to vector<1x2x128xf32>
    tpu.vector_store %arg11[%c5_176, %c0_177, %c0_178], %314 {strides = array<i32>} : memref<8x2x128xf32, #tpu.memory_space<vmem>>, vector<1x2x128xf32>,
    %c6_179 = arith.constant 6 : index
    %c0_180 = arith.constant 0 : index
    %c0_181 = arith.constant 0 : index
    %315 = vector.load %arg12[%c6_179, %c0_180, %c0_181] : memref<8x2x32xf32, #tpu.memory_space<vmem>>, vector<1x2x32xf32>
    %316 = vector.shape_cast %315 : vector<1x2x32xf32> to vector<2x32xf32>
    %cst_182 = arith.constant dense<0.000000e+00> : vector<2x128xf32>
    %317 = tpu.matmul %316, %266, %cst_182 {dimension_numbers = #tpu.dot_dimension_numbers<[1], [0], [0], [1], [0, 0, 1, 1], [], []>} : vector<2x32xf32>, vector<32x128xf32>, vector<2x128xf32> -> vector<2x128xf32>
    %318 = vector.broadcast %264 : vector<1x128xf32> to vector<2x128xf32>
    %319 = arith.addf %317, %318 : vector<2x128xf32>
    %c6_183 = arith.constant 6 : index
    %c0_184 = arith.constant 0 : index
    %c0_185 = arith.constant 0 : index
    %320 = vector.load %arg11[%c6_183, %c0_184, %c0_185] : memref<8x2x128xf32, #tpu.memory_space<vmem>>, vector<1x2x128xf32>
    %321 = vector.shape_cast %320 : vector<1x2x128xf32> to vector<2x128xf32>
    %322 = vector.shape_cast %319 : vector<2x128xf32> to vector<1x2x128xf32>
    tpu.vector_store %arg11[%c6_183, %c0_184, %c0_185], %322 {strides = array<i32>} : memref<8x2x128xf32, #tpu.memory_space<vmem>>, vector<1x2x128xf32>,
    %c7_186 = arith.constant 7 : index
    %c0_187 = arith.constant 0 : index
    %c0_188 = arith.constant 0 : index
    %323 = vector.load %arg12[%c7_186, %c0_187, %c0_188] : memref<8x2x32xf32, #tpu.memory_space<vmem>>, vector<1x2x32xf32>
    %324 = vector.shape_cast %323 : vector<1x2x32xf32> to vector<2x32xf32>
    %cst_189 = arith.constant dense<0.000000e+00> : vector<2x128xf32>
    %325 = tpu.matmul %324, %266, %cst_189 {dimension_numbers = #tpu.dot_dimension_numbers<[1], [0], [0], [1], [0, 0, 1, 1], [], []>} : vector<2x32xf32>, vector<32x128xf32>, vector<2x128xf32> -> vector<2x128xf32>
    %326 = vector.broadcast %264 : vector<1x128xf32> to vector<2x128xf32>
    %327 = arith.addf %325, %326 : vector<2x128xf32>
    %c7_190 = arith.constant 7 : index
    %c0_191 = arith.constant 0 : index
    %c0_192 = arith.constant 0 : index
    %328 = vector.load %arg11[%c7_190, %c0_191, %c0_192] : memref<8x2x128xf32, #tpu.memory_space<vmem>>, vector<1x2x128xf32>
    %329 = vector.shape_cast %328 : vector<1x2x128xf32> to vector<2x128xf32>
    %330 = vector.shape_cast %327 : vector<2x128xf32> to vector<1x2x128xf32>
    tpu.vector_store %arg11[%c7_190, %c0_191, %c0_192], %330 {strides = array<i32>} : memref<8x2x128xf32, #tpu.memory_space<vmem>>, vector<1x2x128xf32>,
    %c1_193 = arith.constant 1 : index
    %c0_194 = arith.constant 0 : index
    %c0_195 = arith.constant 0 : index
    %331 = vector.load %arg4[%c1_193, %c0_194, %c0_195] : memref<2x32x128xf32, #tpu.memory_space<vmem>>, vector<1x32x128xf32>
    %332 = vector.shape_cast %331 : vector<1x32x128xf32> to vector<32x128xf32>
    %c1_196 = arith.constant 1 : index
    %c0_197 = arith.constant 0 : index
    %c0_198 = arith.constant 0 : index
    %333 = vector.load %arg6[%c1_196, %c0_197, %c0_198] : memref<2x2x32xf32, #tpu.memory_space<vmem>>, vector<1x2x32xf32>
    %334 = vector.shape_cast %333 : vector<1x2x32xf32> to vector<2x32xf32>
    %c1_199 = arith.constant 1 : index
    %c0_200 = arith.constant 0 : index
    %c0_201 = arith.constant 0 : index
    %335 = vector.load %arg7[%c1_199, %c0_200, %c0_201] : memref<2x2x32xf32, #tpu.memory_space<vmem>>, vector<1x2x32xf32>
    %336 = vector.shape_cast %335 : vector<1x2x32xf32> to vector<2x32xf32>
    %c0_202 = arith.constant 0 : index
    %c0_203 = arith.constant 0 : index
    %c0_204 = arith.constant 0 : index
    %337 = vector.load %arg11[%c0_202, %c0_203, %c0_204] : memref<8x2x128xf32, #tpu.memory_space<vmem>>, vector<1x2x128xf32>
    %338 = vector.shape_cast %337 : vector<1x2x128xf32> to vector<2x128xf32>
    %cst_205 = arith.constant dense<0.000000e+00> : vector<2x128xf32>
    %339 = tpu.matmul %334, %332, %cst_205 {dimension_numbers = #tpu.dot_dimension_numbers<[1], [0], [0], [1], [0, 0, 1, 1], [], []>} : vector<2x32xf32>, vector<32x128xf32>, vector<2x128xf32> -> vector<2x128xf32>
    %340 = arith.addf %338, %339 : vector<2x128xf32>
    %341 = vector.extract_strided_slice %340 {offsets = [0, 0], sizes = [2, 96], strides = [1, 1]} : vector<2x128xf32> to vector<2x96xf32>
    %342 = arith.negf %341 : vector<2x96xf32>
    %343 = math.exp %342 : vector<2x96xf32>
    %cst_206 = arith.constant 1.000000e+00 : f32
    %344 = vector.broadcast %cst_206 : f32 to vector<2x96xf32>
    %345 = arith.addf %344, %343 : vector<2x96xf32>
    %346 = arith.divf %344, %345 : vector<2x96xf32>
    %347 = vector.extract_strided_slice %340 {offsets = [0, 96], sizes = [2, 32], strides = [1, 1]} : vector<2x128xf32> to vector<2x32xf32>
    %348 = math.tanh %347 : vector<2x32xf32>
    %349 = vector.extract_strided_slice %346 {offsets = [0, 0], sizes = [2, 32], strides = [1, 1]} : vector<2x96xf32> to vector<2x32xf32>
    %350 = vector.extract_strided_slice %346 {offsets = [0, 32], sizes = [2, 32], strides = [1, 1]} : vector<2x96xf32> to vector<2x32xf32>
    %351 = vector.extract_strided_slice %346 {offsets = [0, 64], sizes = [2, 32], strides = [1, 1]} : vector<2x96xf32> to vector<2x32xf32>
    %352 = arith.mulf %350, %336 : vector<2x32xf32>
    %353 = arith.mulf %349, %348 : vector<2x32xf32>
    %354 = arith.addf %352, %353 : vector<2x32xf32>
    %355 = math.tanh %354 : vector<2x32xf32>
    %356 = arith.mulf %351, %355 : vector<2x32xf32>
    %c0_207 = arith.constant 0 : index
    %c0_208 = arith.constant 0 : index
    %c0_209 = arith.constant 0 : index
    %357 = vector.load %arg8[%c0_207, %c0_208, %c0_209] : memref<8x2x32xf32, #tpu.memory_space<vmem>>, vector<1x2x32xf32>
    %358 = vector.shape_cast %357 : vector<1x2x32xf32> to vector<2x32xf32>
    %359 = vector.shape_cast %356 : vector<2x32xf32> to vector<1x2x32xf32>
    tpu.vector_store %arg8[%c0_207, %c0_208, %c0_209], %359 {strides = array<i32>} : memref<8x2x32xf32, #tpu.memory_space<vmem>>, vector<1x2x32xf32>,
    %c1_210 = arith.constant 1 : index
    %c0_211 = arith.constant 0 : index
    %c0_212 = arith.constant 0 : index
    %360 = vector.load %arg11[%c1_210, %c0_211, %c0_212] : memref<8x2x128xf32, #tpu.memory_space<vmem>>, vector<1x2x128xf32>
    %361 = vector.shape_cast %360 : vector<1x2x128xf32> to vector<2x128xf32>
    %cst_213 = arith.constant dense<0.000000e+00> : vector<2x128xf32>
    %362 = tpu.matmul %356, %332, %cst_213 {dimension_numbers = #tpu.dot_dimension_numbers<[1], [0], [0], [1], [0, 0, 1, 1], [], []>} : vector<2x32xf32>, vector<32x128xf32>, vector<2x128xf32> -> vector<2x128xf32>
    %363 = arith.addf %361, %362 : vector<2x128xf32>
    %364 = vector.extract_strided_slice %363 {offsets = [0, 0], sizes = [2, 96], strides = [1, 1]} : vector<2x128xf32> to vector<2x96xf32>
    %365 = arith.negf %364 : vector<2x96xf32>
    %366 = math.exp %365 : vector<2x96xf32>
    %cst_214 = arith.constant 1.000000e+00 : f32
    %367 = vector.broadcast %cst_214 : f32 to vector<2x96xf32>
    %368 = arith.addf %367, %366 : vector<2x96xf32>
    %369 = arith.divf %367, %368 : vector<2x96xf32>
    %370 = vector.extract_strided_slice %363 {offsets = [0, 96], sizes = [2, 32], strides = [1, 1]} : vector<2x128xf32> to vector<2x32xf32>
    %371 = math.tanh %370 : vector<2x32xf32>
    %372 = vector.extract_strided_slice %369 {offsets = [0, 0], sizes = [2, 32], strides = [1, 1]} : vector<2x96xf32> to vector<2x32xf32>
    %373 = vector.extract_strided_slice %369 {offsets = [0, 32], sizes = [2, 32], strides = [1, 1]} : vector<2x96xf32> to vector<2x32xf32>
    %374 = vector.extract_strided_slice %369 {offsets = [0, 64], sizes = [2, 32], strides = [1, 1]} : vector<2x96xf32> to vector<2x32xf32>
    %375 = arith.mulf %373, %354 : vector<2x32xf32>
    %376 = arith.mulf %372, %371 : vector<2x32xf32>
    %377 = arith.addf %375, %376 : vector<2x32xf32>
    %378 = math.tanh %377 : vector<2x32xf32>
    %379 = arith.mulf %374, %378 : vector<2x32xf32>
    %c1_215 = arith.constant 1 : index
    %c0_216 = arith.constant 0 : index
    %c0_217 = arith.constant 0 : index
    %380 = vector.load %arg8[%c1_215, %c0_216, %c0_217] : memref<8x2x32xf32, #tpu.memory_space<vmem>>, vector<1x2x32xf32>
    %381 = vector.shape_cast %380 : vector<1x2x32xf32> to vector<2x32xf32>
    %382 = vector.shape_cast %379 : vector<2x32xf32> to vector<1x2x32xf32>
    tpu.vector_store %arg8[%c1_215, %c0_216, %c0_217], %382 {strides = array<i32>} : memref<8x2x32xf32, #tpu.memory_space<vmem>>, vector<1x2x32xf32>,
    %c2_218 = arith.constant 2 : index
    %c0_219 = arith.constant 0 : index
    %c0_220 = arith.constant 0 : index
    %383 = vector.load %arg11[%c2_218, %c0_219, %c0_220] : memref<8x2x128xf32, #tpu.memory_space<vmem>>, vector<1x2x128xf32>
    %384 = vector.shape_cast %383 : vector<1x2x128xf32> to vector<2x128xf32>
    %cst_221 = arith.constant dense<0.000000e+00> : vector<2x128xf32>
    %385 = tpu.matmul %379, %332, %cst_221 {dimension_numbers = #tpu.dot_dimension_numbers<[1], [0], [0], [1], [0, 0, 1, 1], [], []>} : vector<2x32xf32>, vector<32x128xf32>, vector<2x128xf32> -> vector<2x128xf32>
    %386 = arith.addf %384, %385 : vector<2x128xf32>
    %387 = vector.extract_strided_slice %386 {offsets = [0, 0], sizes = [2, 96], strides = [1, 1]} : vector<2x128xf32> to vector<2x96xf32>
    %388 = arith.negf %387 : vector<2x96xf32>
    %389 = math.exp %388 : vector<2x96xf32>
    %cst_222 = arith.constant 1.000000e+00 : f32
    %390 = vector.broadcast %cst_222 : f32 to vector<2x96xf32>
    %391 = arith.addf %390, %389 : vector<2x96xf32>
    %392 = arith.divf %390, %391 : vector<2x96xf32>
    %393 = vector.extract_strided_slice %386 {offsets = [0, 96], sizes = [2, 32], strides = [1, 1]} : vector<2x128xf32> to vector<2x32xf32>
    %394 = math.tanh %393 : vector<2x32xf32>
    %395 = vector.extract_strided_slice %392 {offsets = [0, 0], sizes = [2, 32], strides = [1, 1]} : vector<2x96xf32> to vector<2x32xf32>
    %396 = vector.extract_strided_slice %392 {offsets = [0, 32], sizes = [2, 32], strides = [1, 1]} : vector<2x96xf32> to vector<2x32xf32>
    %397 = vector.extract_strided_slice %392 {offsets = [0, 64], sizes = [2, 32], strides = [1, 1]} : vector<2x96xf32> to vector<2x32xf32>
    %398 = arith.mulf %396, %377 : vector<2x32xf32>
    %399 = arith.mulf %395, %394 : vector<2x32xf32>
    %400 = arith.addf %398, %399 : vector<2x32xf32>
    %401 = math.tanh %400 : vector<2x32xf32>
    %402 = arith.mulf %397, %401 : vector<2x32xf32>
    %c2_223 = arith.constant 2 : index
    %c0_224 = arith.constant 0 : index
    %c0_225 = arith.constant 0 : index
    %403 = vector.load %arg8[%c2_223, %c0_224, %c0_225] : memref<8x2x32xf32, #tpu.memory_space<vmem>>, vector<1x2x32xf32>
    %404 = vector.shape_cast %403 : vector<1x2x32xf32> to vector<2x32xf32>
    %405 = vector.shape_cast %402 : vector<2x32xf32> to vector<1x2x32xf32>
    tpu.vector_store %arg8[%c2_223, %c0_224, %c0_225], %405 {strides = array<i32>} : memref<8x2x32xf32, #tpu.memory_space<vmem>>, vector<1x2x32xf32>,
    %c3_226 = arith.constant 3 : index
    %c0_227 = arith.constant 0 : index
    %c0_228 = arith.constant 0 : index
    %406 = vector.load %arg11[%c3_226, %c0_227, %c0_228] : memref<8x2x128xf32, #tpu.memory_space<vmem>>, vector<1x2x128xf32>
    %407 = vector.shape_cast %406 : vector<1x2x128xf32> to vector<2x128xf32>
    %cst_229 = arith.constant dense<0.000000e+00> : vector<2x128xf32>
    %408 = tpu.matmul %402, %332, %cst_229 {dimension_numbers = #tpu.dot_dimension_numbers<[1], [0], [0], [1], [0, 0, 1, 1], [], []>} : vector<2x32xf32>, vector<32x128xf32>, vector<2x128xf32> -> vector<2x128xf32>
    %409 = arith.addf %407, %408 : vector<2x128xf32>
    %410 = vector.extract_strided_slice %409 {offsets = [0, 0], sizes = [2, 96], strides = [1, 1]} : vector<2x128xf32> to vector<2x96xf32>
    %411 = arith.negf %410 : vector<2x96xf32>
    %412 = math.exp %411 : vector<2x96xf32>
    %cst_230 = arith.constant 1.000000e+00 : f32
    %413 = vector.broadcast %cst_230 : f32 to vector<2x96xf32>
    %414 = arith.addf %413, %412 : vector<2x96xf32>
    %415 = arith.divf %413, %414 : vector<2x96xf32>
    %416 = vector.extract_strided_slice %409 {offsets = [0, 96], sizes = [2, 32], strides = [1, 1]} : vector<2x128xf32> to vector<2x32xf32>
    %417 = math.tanh %416 : vector<2x32xf32>
    %418 = vector.extract_strided_slice %415 {offsets = [0, 0], sizes = [2, 32], strides = [1, 1]} : vector<2x96xf32> to vector<2x32xf32>
    %419 = vector.extract_strided_slice %415 {offsets = [0, 32], sizes = [2, 32], strides = [1, 1]} : vector<2x96xf32> to vector<2x32xf32>
    %420 = vector.extract_strided_slice %415 {offsets = [0, 64], sizes = [2, 32], strides = [1, 1]} : vector<2x96xf32> to vector<2x32xf32>
    %421 = arith.mulf %419, %400 : vector<2x32xf32>
    %422 = arith.mulf %418, %417 : vector<2x32xf32>
    %423 = arith.addf %421, %422 : vector<2x32xf32>
    %424 = math.tanh %423 : vector<2x32xf32>
    %425 = arith.mulf %420, %424 : vector<2x32xf32>
    %c3_231 = arith.constant 3 : index
    %c0_232 = arith.constant 0 : index
    %c0_233 = arith.constant 0 : index
    %426 = vector.load %arg8[%c3_231, %c0_232, %c0_233] : memref<8x2x32xf32, #tpu.memory_space<vmem>>, vector<1x2x32xf32>
    %427 = vector.shape_cast %426 : vector<1x2x32xf32> to vector<2x32xf32>
    %428 = vector.shape_cast %425 : vector<2x32xf32> to vector<1x2x32xf32>
    tpu.vector_store %arg8[%c3_231, %c0_232, %c0_233], %428 {strides = array<i32>} : memref<8x2x32xf32, #tpu.memory_space<vmem>>, vector<1x2x32xf32>,
    %c4_234 = arith.constant 4 : index
    %c0_235 = arith.constant 0 : index
    %c0_236 = arith.constant 0 : index
    %429 = vector.load %arg11[%c4_234, %c0_235, %c0_236] : memref<8x2x128xf32, #tpu.memory_space<vmem>>, vector<1x2x128xf32>
    %430 = vector.shape_cast %429 : vector<1x2x128xf32> to vector<2x128xf32>
    %cst_237 = arith.constant dense<0.000000e+00> : vector<2x128xf32>
    %431 = tpu.matmul %425, %332, %cst_237 {dimension_numbers = #tpu.dot_dimension_numbers<[1], [0], [0], [1], [0, 0, 1, 1], [], []>} : vector<2x32xf32>, vector<32x128xf32>, vector<2x128xf32> -> vector<2x128xf32>
    %432 = arith.addf %430, %431 : vector<2x128xf32>
    %433 = vector.extract_strided_slice %432 {offsets = [0, 0], sizes = [2, 96], strides = [1, 1]} : vector<2x128xf32> to vector<2x96xf32>
    %434 = arith.negf %433 : vector<2x96xf32>
    %435 = math.exp %434 : vector<2x96xf32>
    %cst_238 = arith.constant 1.000000e+00 : f32
    %436 = vector.broadcast %cst_238 : f32 to vector<2x96xf32>
    %437 = arith.addf %436, %435 : vector<2x96xf32>
    %438 = arith.divf %436, %437 : vector<2x96xf32>
    %439 = vector.extract_strided_slice %432 {offsets = [0, 96], sizes = [2, 32], strides = [1, 1]} : vector<2x128xf32> to vector<2x32xf32>
    %440 = math.tanh %439 : vector<2x32xf32>
    %441 = vector.extract_strided_slice %438 {offsets = [0, 0], sizes = [2, 32], strides = [1, 1]} : vector<2x96xf32> to vector<2x32xf32>
    %442 = vector.extract_strided_slice %438 {offsets = [0, 32], sizes = [2, 32], strides = [1, 1]} : vector<2x96xf32> to vector<2x32xf32>
    %443 = vector.extract_strided_slice %438 {offsets = [0, 64], sizes = [2, 32], strides = [1, 1]} : vector<2x96xf32> to vector<2x32xf32>
    %444 = arith.mulf %442, %423 : vector<2x32xf32>
    %445 = arith.mulf %441, %440 : vector<2x32xf32>
    %446 = arith.addf %444, %445 : vector<2x32xf32>
    %447 = math.tanh %446 : vector<2x32xf32>
    %448 = arith.mulf %443, %447 : vector<2x32xf32>
    %c4_239 = arith.constant 4 : index
    %c0_240 = arith.constant 0 : index
    %c0_241 = arith.constant 0 : index
    %449 = vector.load %arg8[%c4_239, %c0_240, %c0_241] : memref<8x2x32xf32, #tpu.memory_space<vmem>>, vector<1x2x32xf32>
    %450 = vector.shape_cast %449 : vector<1x2x32xf32> to vector<2x32xf32>
    %451 = vector.shape_cast %448 : vector<2x32xf32> to vector<1x2x32xf32>
    tpu.vector_store %arg8[%c4_239, %c0_240, %c0_241], %451 {strides = array<i32>} : memref<8x2x32xf32, #tpu.memory_space<vmem>>, vector<1x2x32xf32>,
    %c5_242 = arith.constant 5 : index
    %c0_243 = arith.constant 0 : index
    %c0_244 = arith.constant 0 : index
    %452 = vector.load %arg11[%c5_242, %c0_243, %c0_244] : memref<8x2x128xf32, #tpu.memory_space<vmem>>, vector<1x2x128xf32>
    %453 = vector.shape_cast %452 : vector<1x2x128xf32> to vector<2x128xf32>
    %cst_245 = arith.constant dense<0.000000e+00> : vector<2x128xf32>
    %454 = tpu.matmul %448, %332, %cst_245 {dimension_numbers = #tpu.dot_dimension_numbers<[1], [0], [0], [1], [0, 0, 1, 1], [], []>} : vector<2x32xf32>, vector<32x128xf32>, vector<2x128xf32> -> vector<2x128xf32>
    %455 = arith.addf %453, %454 : vector<2x128xf32>
    %456 = vector.extract_strided_slice %455 {offsets = [0, 0], sizes = [2, 96], strides = [1, 1]} : vector<2x128xf32> to vector<2x96xf32>
    %457 = arith.negf %456 : vector<2x96xf32>
    %458 = math.exp %457 : vector<2x96xf32>
    %cst_246 = arith.constant 1.000000e+00 : f32
    %459 = vector.broadcast %cst_246 : f32 to vector<2x96xf32>
    %460 = arith.addf %459, %458 : vector<2x96xf32>
    %461 = arith.divf %459, %460 : vector<2x96xf32>
    %462 = vector.extract_strided_slice %455 {offsets = [0, 96], sizes = [2, 32], strides = [1, 1]} : vector<2x128xf32> to vector<2x32xf32>
    %463 = math.tanh %462 : vector<2x32xf32>
    %464 = vector.extract_strided_slice %461 {offsets = [0, 0], sizes = [2, 32], strides = [1, 1]} : vector<2x96xf32> to vector<2x32xf32>
    %465 = vector.extract_strided_slice %461 {offsets = [0, 32], sizes = [2, 32], strides = [1, 1]} : vector<2x96xf32> to vector<2x32xf32>
    %466 = vector.extract_strided_slice %461 {offsets = [0, 64], sizes = [2, 32], strides = [1, 1]} : vector<2x96xf32> to vector<2x32xf32>
    %467 = arith.mulf %465, %446 : vector<2x32xf32>
    %468 = arith.mulf %464, %463 : vector<2x32xf32>
    %469 = arith.addf %467, %468 : vector<2x32xf32>
    %470 = math.tanh %469 : vector<2x32xf32>
    %471 = arith.mulf %466, %470 : vector<2x32xf32>
    %c5_247 = arith.constant 5 : index
    %c0_248 = arith.constant 0 : index
    %c0_249 = arith.constant 0 : index
    %472 = vector.load %arg8[%c5_247, %c0_248, %c0_249] : memref<8x2x32xf32, #tpu.memory_space<vmem>>, vector<1x2x32xf32>
    %473 = vector.shape_cast %472 : vector<1x2x32xf32> to vector<2x32xf32>
    %474 = vector.shape_cast %471 : vector<2x32xf32> to vector<1x2x32xf32>
    tpu.vector_store %arg8[%c5_247, %c0_248, %c0_249], %474 {strides = array<i32>} : memref<8x2x32xf32, #tpu.memory_space<vmem>>, vector<1x2x32xf32>,
    %c6_250 = arith.constant 6 : index
    %c0_251 = arith.constant 0 : index
    %c0_252 = arith.constant 0 : index
    %475 = vector.load %arg11[%c6_250, %c0_251, %c0_252] : memref<8x2x128xf32, #tpu.memory_space<vmem>>, vector<1x2x128xf32>
    %476 = vector.shape_cast %475 : vector<1x2x128xf32> to vector<2x128xf32>
    %cst_253 = arith.constant dense<0.000000e+00> : vector<2x128xf32>
    %477 = tpu.matmul %471, %332, %cst_253 {dimension_numbers = #tpu.dot_dimension_numbers<[1], [0], [0], [1], [0, 0, 1, 1], [], []>} : vector<2x32xf32>, vector<32x128xf32>, vector<2x128xf32> -> vector<2x128xf32>
    %478 = arith.addf %476, %477 : vector<2x128xf32>
    %479 = vector.extract_strided_slice %478 {offsets = [0, 0], sizes = [2, 96], strides = [1, 1]} : vector<2x128xf32> to vector<2x96xf32>
    %480 = arith.negf %479 : vector<2x96xf32>
    %481 = math.exp %480 : vector<2x96xf32>
    %cst_254 = arith.constant 1.000000e+00 : f32
    %482 = vector.broadcast %cst_254 : f32 to vector<2x96xf32>
    %483 = arith.addf %482, %481 : vector<2x96xf32>
    %484 = arith.divf %482, %483 : vector<2x96xf32>
    %485 = vector.extract_strided_slice %478 {offsets = [0, 96], sizes = [2, 32], strides = [1, 1]} : vector<2x128xf32> to vector<2x32xf32>
    %486 = math.tanh %485 : vector<2x32xf32>
    %487 = vector.extract_strided_slice %484 {offsets = [0, 0], sizes = [2, 32], strides = [1, 1]} : vector<2x96xf32> to vector<2x32xf32>
    %488 = vector.extract_strided_slice %484 {offsets = [0, 32], sizes = [2, 32], strides = [1, 1]} : vector<2x96xf32> to vector<2x32xf32>
    %489 = vector.extract_strided_slice %484 {offsets = [0, 64], sizes = [2, 32], strides = [1, 1]} : vector<2x96xf32> to vector<2x32xf32>
    %490 = arith.mulf %488, %469 : vector<2x32xf32>
    %491 = arith.mulf %487, %486 : vector<2x32xf32>
    %492 = arith.addf %490, %491 : vector<2x32xf32>
    %493 = math.tanh %492 : vector<2x32xf32>
    %494 = arith.mulf %489, %493 : vector<2x32xf32>
    %c6_255 = arith.constant 6 : index
    %c0_256 = arith.constant 0 : index
    %c0_257 = arith.constant 0 : index
    %495 = vector.load %arg8[%c6_255, %c0_256, %c0_257] : memref<8x2x32xf32, #tpu.memory_space<vmem>>, vector<1x2x32xf32>
    %496 = vector.shape_cast %495 : vector<1x2x32xf32> to vector<2x32xf32>
    %497 = vector.shape_cast %494 : vector<2x32xf32> to vector<1x2x32xf32>
    tpu.vector_store %arg8[%c6_255, %c0_256, %c0_257], %497 {strides = array<i32>} : memref<8x2x32xf32, #tpu.memory_space<vmem>>, vector<1x2x32xf32>,
    %c7_258 = arith.constant 7 : index
    %c0_259 = arith.constant 0 : index
    %c0_260 = arith.constant 0 : index
    %498 = vector.load %arg11[%c7_258, %c0_259, %c0_260] : memref<8x2x128xf32, #tpu.memory_space<vmem>>, vector<1x2x128xf32>
    %499 = vector.shape_cast %498 : vector<1x2x128xf32> to vector<2x128xf32>
    %cst_261 = arith.constant dense<0.000000e+00> : vector<2x128xf32>
    %500 = tpu.matmul %494, %332, %cst_261 {dimension_numbers = #tpu.dot_dimension_numbers<[1], [0], [0], [1], [0, 0, 1, 1], [], []>} : vector<2x32xf32>, vector<32x128xf32>, vector<2x128xf32> -> vector<2x128xf32>
    %501 = arith.addf %499, %500 : vector<2x128xf32>
    %502 = vector.extract_strided_slice %501 {offsets = [0, 0], sizes = [2, 96], strides = [1, 1]} : vector<2x128xf32> to vector<2x96xf32>
    %503 = arith.negf %502 : vector<2x96xf32>
    %504 = math.exp %503 : vector<2x96xf32>
    %cst_262 = arith.constant 1.000000e+00 : f32
    %505 = vector.broadcast %cst_262 : f32 to vector<2x96xf32>
    %506 = arith.addf %505, %504 : vector<2x96xf32>
    %507 = arith.divf %505, %506 : vector<2x96xf32>
    %508 = vector.extract_strided_slice %501 {offsets = [0, 96], sizes = [2, 32], strides = [1, 1]} : vector<2x128xf32> to vector<2x32xf32>
    %509 = math.tanh %508 : vector<2x32xf32>
    %510 = vector.extract_strided_slice %507 {offsets = [0, 0], sizes = [2, 32], strides = [1, 1]} : vector<2x96xf32> to vector<2x32xf32>
    %511 = vector.extract_strided_slice %507 {offsets = [0, 32], sizes = [2, 32], strides = [1, 1]} : vector<2x96xf32> to vector<2x32xf32>
    %512 = vector.extract_strided_slice %507 {offsets = [0, 64], sizes = [2, 32], strides = [1, 1]} : vector<2x96xf32> to vector<2x32xf32>
    %513 = arith.mulf %511, %492 : vector<2x32xf32>
    %514 = arith.mulf %510, %509 : vector<2x32xf32>
    %515 = arith.addf %513, %514 : vector<2x32xf32>
    %516 = math.tanh %515 : vector<2x32xf32>
    %517 = arith.mulf %512, %516 : vector<2x32xf32>
    %c7_263 = arith.constant 7 : index
    %c0_264 = arith.constant 0 : index
    %c0_265 = arith.constant 0 : index
    %518 = vector.load %arg8[%c7_263, %c0_264, %c0_265] : memref<8x2x32xf32, #tpu.memory_space<vmem>>, vector<1x2x32xf32>
    %519 = vector.shape_cast %518 : vector<1x2x32xf32> to vector<2x32xf32>
    %520 = vector.shape_cast %517 : vector<2x32xf32> to vector<1x2x32xf32>
    tpu.vector_store %arg8[%c7_263, %c0_264, %c0_265], %520 {strides = array<i32>} : memref<8x2x32xf32, #tpu.memory_space<vmem>>, vector<1x2x32xf32>,
    %c1_266 = arith.constant 1 : index
    %c0_267 = arith.constant 0 : index
    %c0_268 = arith.constant 0 : index
    %521 = vector.load %arg9[%c1_266, %c0_267, %c0_268] : memref<2x2x32xf32, #tpu.memory_space<vmem>>, vector<1x2x32xf32>
    %522 = vector.shape_cast %521 : vector<1x2x32xf32> to vector<2x32xf32>
    %523 = vector.shape_cast %517 : vector<2x32xf32> to vector<1x2x32xf32>
    tpu.vector_store %arg9[%c1_266, %c0_267, %c0_268], %523 {strides = array<i32>} : memref<2x2x32xf32, #tpu.memory_space<vmem>>, vector<1x2x32xf32>,
    %c1_269 = arith.constant 1 : index
    %c0_270 = arith.constant 0 : index
    %c0_271 = arith.constant 0 : index
    %524 = vector.load %arg10[%c1_269, %c0_270, %c0_271] : memref<2x2x32xf32, #tpu.memory_space<vmem>>, vector<1x2x32xf32>
    %525 = vector.shape_cast %524 : vector<1x2x32xf32> to vector<2x32xf32>
    %526 = vector.shape_cast %515 : vector<2x32xf32> to vector<1x2x32xf32>
    tpu.vector_store %arg10[%c1_269, %c0_270, %c0_271], %526 {strides = array<i32>} : memref<2x2x32xf32, #tpu.memory_space<vmem>>, vector<1x2x32xf32>,
    return
  }
  func.func @transform_0(%arg0: i32) -> (i32, i32, i32) {
    %c0_i32 = arith.constant 0 : i32
    %c0_i32_0 = arith.constant 0 : i32
    %c0_i32_1 = arith.constant 0 : i32
    %c0_i32_2 = arith.constant 0 : i32
    return %c0_i32, %c0_i32_0, %c0_i32_1 : i32, i32, i32
  }
  func.func @transform_1(%arg0: i32) -> (i32, i32) {
    %c0_i32 = arith.constant 0 : i32
    %c0_i32_0 = arith.constant 0 : i32
    %c0_i32_1 = arith.constant 0 : i32
    return %c0_i32, %c0_i32_0 : i32, i32
  }
  func.func @transform_2(%arg0: i32) -> (i32, i32, i32) {
    %c0_i32 = arith.constant 0 : i32
    %c0_i32_0 = arith.constant 0 : i32
    %c0_i32_1 = arith.constant 0 : i32
    %c0_i32_2 = arith.constant 0 : i32
    return %c0_i32, %c0_i32_0, %c0_i32_1 : i32, i32, i32
  }
  func.func @transform_3(%arg0: i32) -> (i32, i32, i32) {
    %c0_i32 = arith.constant 0 : i32
    %c0_i32_0 = arith.constant 0 : i32
    %c0_i32_1 = arith.constant 0 : i32
    %c0_i32_2 = arith.constant 0 : i32
    return %c0_i32, %c0_i32_0, %c0_i32_1 : i32, i32, i32
  }
  func.func @transform_4(%arg0: i32) -> (i32, i32, i32) {
    %c0_i32 = arith.constant 0 : i32
    %c0_i32_0 = arith.constant 0 : i32
    %c0_i32_1 = arith.constant 0 : i32
    %c0_i32_2 = arith.constant 0 : i32
    return %c0_i32, %c0_i32_0, %c0_i32_1 : i32, i32, i32
  }
  func.func @transform_5(%arg0: i32) -> (i32, i32, i32) {
    %c0_i32 = arith.constant 0 : i32
    %c0_i32_0 = arith.constant 0 : i32
    %c0_i32_1 = arith.constant 0 : i32
    %c0_i32_2 = arith.constant 0 : i32
    return %c0_i32, %c0_i32_0, %c0_i32_1 : i32, i32, i32
  }
  func.func @transform_6(%arg0: i32) -> (i32, i32, i32) {
    %c0_i32 = arith.constant 0 : i32
    %c0_i32_0 = arith.constant 0 : i32
    %c0_i32_1 = arith.constant 0 : i32
    %c0_i32_2 = arith.constant 0 : i32
    return %c0_i32, %c0_i32_0, %c0_i32_1 : i32, i32, i32
  }
  func.func @transform_7(%arg0: i32) -> (i32, i32, i32) {
    %c0_i32 = arith.constant 0 : i32
    %c0_i32_0 = arith.constant 0 : i32
    %c0_i32_1 = arith.constant 0 : i32
    %c0_i32_2 = arith.constant 0 : i32
    return %c0_i32, %c0_i32_0, %c0_i32_1 : i32, i32, i32
  }
  func.func @transform_8(%arg0: i32) -> (i32, i32, i32) {
    %c0_i32 = arith.constant 0 : i32
    %c0_i32_0 = arith.constant 0 : i32
    %c0_i32_1 = arith.constant 0 : i32
    %c0_i32_2 = arith.constant 0 : i32
    return %c0_i32, %c0_i32_0, %c0_i32_1 : i32, i32, i32
  }
  func.func @transform_9(%arg0: i32) -> (i32, i32, i32) {
    %c0_i32 = arith.constant 0 : i32
    %c0_i32_0 = arith.constant 0 : i32
    %c0_i32_1 = arith.constant 0 : i32
    %c0_i32_2 = arith.constant 0 : i32
    return %c0_i32, %c0_i32_0, %c0_i32_1 : i32, i32, i32
  }
}

</mosaic_0001>

<llo_original>
// kernel: _state_action_lstm_forward.1
$region0: #{_state_action_lstm_forward.1}
  #allocation0 [shape = 'u32[]', space=smem, size = 0x4, offset = 0x4, fixed_abs, tag = 'smem constant byte address 0x4 - core index']
  #allocation1 [shape = 'u32[144,128]{1,0:T(1,128)}', space=vmem, size = 0x12000, scoped, tag = 'internal scratch']
  #allocation2 [shape = 'f32[8,2,128]{2,1,0:T(2,128)}', space=vmem, size = 0x2000, scoped, tag = 'scratch operand']
  #allocation3 [shape = 'f32[8,2,32]{2,1,0:T(2,128)}', space=vmem, size = 0x2000, scoped, tag = 'scratch operand']
  %s0 = inlined_call_operand.vmem [shape: f32[8,2,34], index: 0, kind: input, shape index: {}]
  %s1 = inlined_call_operand.vmem [shape: f32[34,128], index: 1, kind: input, shape index: {}]
  %s2 = inlined_call_operand.hbm [shape: f32[1,32,128], index: 2, kind: input, shape index: {}]
  %s3 = inlined_call_operand.vmem [shape: f32[2,32,128], index: 3, kind: input, shape index: {}]
  %s4 = inlined_call_operand.vmem [shape: f32[2,1,128], index: 4, kind: input, shape index: {}]
  %s5 = inlined_call_operand.vmem [shape: f32[2,2,32], index: 5, kind: input, shape index: {}]
  %s6 = inlined_call_operand.vmem [shape: f32[2,2,32], index: 6, kind: input, shape index: {}]
  %s7 = inlined_call_operand.vmem [shape: f32[8,2,32], index: 7, kind: output, shape index: {0}]
  %s8 = inlined_call_operand.hbm [shape: f32[2,2,32], index: 8, kind: output, shape index: {1}]
  %s9 = inlined_call_operand.hbm [shape: f32[2,2,32], index: 9, kind: output, shape index: {2}]
  %10 = xla_tuple %s7, %s8, %s9
  %s11 = sld [smem:[#allocation0]]
  $region58: #{_state_action_lstm_forward.1} parent=0
    _
  %s13 = ssub.s32 1, %s11
  %s14 = scalar_select 0, %s13, %s11
  $region1: #{_state_action_lstm_forward.1} parent=0
    #allocation4 [shape = 'u8[16384]{0}', space=vmem, size = 0x4000, scoped, tag = 'input window, operand 2, single buffered']
    #allocation5 [shape = 's32[1]{0}', space=sflag, size = 0x4, scoped, tag = 'scoped memory for _state_action_lstm_forward.1']
    #allocation6 [shape = 's32[1]{0}', space=sflag, size = 0x4, scoped, tag = 'scoped memory for _state_action_lstm_forward.1']
    #allocation7 [shape = 'u8[2048]{0}', space=vmem, size = 0x800, scoped, tag = 'output window, operand 1, single buffered']
    #allocation8 [shape = 'u8[2048]{0}', space=vmem, size = 0x800, scoped, tag = 'output window, operand 2, single buffered']
    #allocation9 [shape = 's32[1]{0}', space=sflag, size = 0x4, scoped, tag = 'scoped memory for _state_action_lstm_forward.1']
    %15 = vsyncpa [#allocation5], 0
    %16 = vsyncpa [#allocation6], 0
    %17 = vsyncpa [#allocation9], 0
    // Predicated region
    $region2: #{_state_action_lstm_forward.1} parent=1 // pred_check
      _
    $region3: #{_state_action_lstm_forward.1} parent=1 // pred_check_branch
      %19 = sbr.rel (0) target = $region5
    $region4: #{_state_action_lstm_forward.1} parent=1 // pred_region
      _
    $region5: #{_state_action_lstm_forward.1} parent=1 // pred_fallthru
      _
    // Predicated region
    $region6: #{_state_action_lstm_forward.1} parent=1 // pred_check
      _
    $region7: #{_state_action_lstm_forward.1} parent=1 // pred_check_branch
      %21 = sbr.rel (0) target = $region9
    $region8: #{_state_action_lstm_forward.1} parent=1 // pred_region
      _
    $region9: #{_state_action_lstm_forward.1} parent=1 // pred_fallthru
      _
    // Predicated region
    $region10: #{_state_action_lstm_forward.1} parent=1 // pred_check
      _
    $region11: #{_state_action_lstm_forward.1} parent=1 // pred_check_branch
      %23 = sbr.rel (0) target = $region13
    $region12: #{_state_action_lstm_forward.1} parent=1 // pred_region
      %s25 = ssub.s32 512, 512
      %26 = vsyncadd [#allocation5], %s25
      %s27 = sshll.u32 [#allocation4], 4
      %s28 = int_to_ptr.vmem [resolvable:$true] %s27
      %33 = dma.hbm_to_vmem [thread:$0]  %s2, 512, %s28, [#allocation5], 128, 128, 8
    $region13: #{_state_action_lstm_forward.1} parent=1 // pred_fallthru
      _
    // Predicated region
    $region14: #{_state_action_lstm_forward.1} parent=1 // pred_check
      _
    $region15: #{_state_action_lstm_forward.1} parent=1 // pred_check_branch
      %35 = sbr.rel (0) target = $region17
    $region16: #{_state_action_lstm_forward.1} parent=1 // pred_region
      _
    $region17: #{_state_action_lstm_forward.1} parent=1 // pred_fallthru
      _
    // Predicated region
    $region18: #{_state_action_lstm_forward.1} parent=1 // pred_check
      _
    $region19: #{_state_action_lstm_forward.1} parent=1 // pred_check_branch
      %37 = sbr.rel (0) target = $region21
    $region20: #{_state_action_lstm_forward.1} parent=1 // pred_region
      _
    $region21: #{_state_action_lstm_forward.1} parent=1 // pred_fallthru
      _
    // Predicated region
    $region22: #{_state_action_lstm_forward.1} parent=1 // pred_check
      _
    $region23: #{_state_action_lstm_forward.1} parent=1 // pred_check_branch
      %39 = sbr.rel (0) target = $region25
    $region24: #{_state_action_lstm_forward.1} parent=1 // pred_region
      _
    $region25: #{_state_action_lstm_forward.1} parent=1 // pred_fallthru
      _
    // Predicated region
    $region26: #{_state_action_lstm_forward.1} parent=1 // pred_check
      _
    $region27: #{_state_action_lstm_forward.1} parent=1 // pred_check_branch
      %41 = sbr.rel (0) target = $region29
    $region28: #{_state_action_lstm_forward.1} parent=1 // pred_region
      _
    $region29: #{_state_action_lstm_forward.1} parent=1 // pred_fallthru
      _
    // Predicated region
    $region30: #{_state_action_lstm_forward.1} parent=1 // pred_check
      _
    $region31: #{_state_action_lstm_forward.1} parent=1 // pred_check_branch
      %43 = sbr.rel (0) target = $region33
    $region32: #{_state_action_lstm_forward.1} parent=1 // pred_region
      %44 = dma.done [#allocation5], 512
    $region33: #{_state_action_lstm_forward.1} parent=1 // pred_fallthru
      _
    %v45 = vld [vmem:[%s4] sm:$0x1]
    %v46 = vld [vmem:[%s1] sm:$0xff]
    %v47 = vld [vmem:[%s1 + $0x8] sm:$0xff]
    %v48 = vld [vmem:[%s1 + $0x10] sm:$0xff]
    %v49 = vld [vmem:[%s1 + $0x18] sm:$0xff]
    %v50 = vld [vmem:[%s1 + $0x20] sm:$0x3]
    %v51 = vld [vmem:[%s0] sm:$0x3]
    %v53 = vlaneseq
    %v54 = vshrl.u32 %v53, 7
    %v55 = vsub.s32 0, %v54
    %v56 = vrot.slane %v45, %v55
    %vm58 = vcmask 277504
    %v60 = vsel %vm58, %v51, 0
    %vm62 = vcmask 1041408
    %v64 = vsel %vm62, %v50, 0
    %66 = vmatprep.subr.mxu0 0.0
    %67 = vmatpush1.msra.mxu0 %v46
    %68 = vmatprep.subr.mxu0 0.0
    %69 = vmatpush1.msra.mxu0 %v47
    %70 = vmatprep.subr.mxu0 0.0
    %71 = vmatpush1.msra.mxu0 %v48
    %72 = vmatprep.subr.mxu0 0.0
    %73 = vmatpush1.msra.mxu0 %v49
    %74 = vmatprep.subr.mxu0 0.0
    %75 = vmatpush1.msra.mxu0 %v64
    %76 = vmatprep.subr.mxu0 0.0
    %77 = vmatpush1.msra.mxu0 0.0
    %78 = vmatprep.subr.mxu0 0.0
    %79 = vmatpush1.msra.mxu0 0.0
    %80 = vmatprep.subr.mxu0 0.0
    %81 = vmatpush1.msra.mxu0 0.0
    %82 = vmatprep.subr.mxu0 0.0
    %83 = vmatpush1.msra.mxu0 0.0
    %84 = vmatprep.subr.mxu0 0.0
    %85 = vmatpush1.msra.mxu0 0.0
    %86 = vmatprep.subr.mxu0 0.0
    %87 = vmatpush1.msra.mxu0 0.0
    %88 = vmatprep.subr.mxu0 0.0
    %89 = vmatpush1.msra.mxu0 0.0
    %90 = vmatprep.subr.mxu0 0.0
    %91 = vmatpush1.msra.mxu0 0.0
    %92 = vmatprep.subr.mxu0 0.0
    %93 = vmatpush1.msra.mxu0 0.0
    %94 = vmatprep.subr.mxu0 0.0
    %95 = vmatpush1.msra.mxu0 0.0
    %96 = vmatprep.subr.mxu0 0.0
    %97 = vmatpush1.msra.mxu0 0.0
    %98 = vmatprep.subr.mxu0 0.0
    %99 = vmatpush1.msra.mxu0 0.0
    %100 = vmatprep.subr.mxu0 0.0
    %101 = vmatpush1.msra.mxu0 0.0
    %102 = vmatprep.subr.mxu0 0.0
    %103 = vmatpush1.msra.mxu0 0.0
    %104 = vmatprep.subr.mxu0 0.0
    %105 = vmatpush1.msra.mxu0 0.0
    %106 = vmatprep.subr.mxu0 0.0
    %107 = vmatpush1.msra.mxu0 0.0
    %108 = vmatprep.subr.mxu0 0.0
    %109 = vmatpush1.msra.mxu0 0.0
    %110 = vmatprep.subr.mxu0 0.0
    %111 = vmatpush1.msra.mxu0 0.0
    %112 = vmatprep.subr.mxu0 0.0
    %113 = vmatpush1.msra.mxu0 0.0
    %114 = vmatprep.subr.mxu0 0.0
    %115 = vmatpush1.msra.mxu0 0.0
    %116 = vmatprep.subr.mxu0 0.0
    %117 = vmatpush1.msra.mxu0 0.0
    %118 = vmatprep.subr.mxu0 0.0
    %119 = vmatpush1.msra.mxu0 0.0
    %120 = vmatprep.subr.mxu0 0.0
    %121 = vmatpush1.msra.mxu0 0.0
    %122 = vmatprep.subr.mxu0 0.0
    %123 = vmatpush1.msra.mxu0 0.0
    %124 = vmatprep.subr.mxu0 0.0
    %125 = vmatpush1.msra.mxu0 0.0
    %126 = vmatprep.subr.mxu0 0.0
    %127 = vmatpush1.msra.mxu0 0.0
    %128 = vmatprep.subr.mxu0 0.0
    %129 = vmatpush1.msra.mxu0 0.0
    %130 = vmatprep.mubr.f32.mxu0 0.0
    %131 = vmatmul.mubr.f32.gmra.mrb[0].mxu0 %v60
    %v132 = vpop.f32.mrb[0].mxu0
    %v133 = vadd.f32 %v56, %v132
    %v134 = vpop.f32.mrb[0].mxu0
    %135 = vdwg.mxu0
    %136 = vst [vmem:[#allocation2] sm:$0x3] %v133
    %s137 = scalar_lea.vmem %s0, 2
    %v138 = vld [vmem:[%s137] sm:$0x3]
    %v140 = vsel %vm58, %v138, 0
    %142 = vmatprep.subr.mxu0 0.0
    %143 = vmatpush1.msra.mxu0 %v46
    %144 = vmatprep.subr.mxu0 0.0
    %145 = vmatpush1.msra.mxu0 %v47
    %146 = vmatprep.subr.mxu0 0.0
    %147 = vmatpush1.msra.mxu0 %v48
    %148 = vmatprep.subr.mxu0 0.0
    %149 = vmatpush1.msra.mxu0 %v49
    %150 = vmatprep.subr.mxu0 0.0
    %151 = vmatpush1.msra.mxu0 %v64
    %152 = vmatprep.subr.mxu0 0.0
    %153 = vmatpush1.msra.mxu0 0.0
    %154 = vmatprep.subr.mxu0 0.0
    %155 = vmatpush1.msra.mxu0 0.0
    %156 = vmatprep.subr.mxu0 0.0
    %157 = vmatpush1.msra.mxu0 0.0
    %158 = vmatprep.subr.mxu0 0.0
    %159 = vmatpush1.msra.mxu0 0.0
    %160 = vmatprep.subr.mxu0 0.0
    %161 = vmatpush1.msra.mxu0 0.0
    %162 = vmatprep.subr.mxu0 0.0
    %163 = vmatpush1.msra.mxu0 0.0
    %164 = vmatprep.subr.mxu0 0.0
    %165 = vmatpush1.msra.mxu0 0.0
    %166 = vmatprep.subr.mxu0 0.0
    %167 = vmatpush1.msra.mxu0 0.0
    %168 = vmatprep.subr.mxu0 0.0
    %169 = vmatpush1.msra.mxu0 0.0
    %170 = vmatprep.subr.mxu0 0.0
    %171 = vmatpush1.msra.mxu0 0.0
    %172 = vmatprep.subr.mxu0 0.0
    %173 = vmatpush1.msra.mxu0 0.0
    %174 = vmatprep.subr.mxu0 0.0
    %175 = vmatpush1.msra.mxu0 0.0
    %176 = vmatprep.subr.mxu0 0.0
    %177 = vmatpush1.msra.mxu0 0.0
    %178 = vmatprep.subr.mxu0 0.0
    %179 = vmatpush1.msra.mxu0 0.0
    %180 = vmatprep.subr.mxu0 0.0
    %181 = vmatpush1.msra.mxu0 0.0
    %182 = vmatprep.subr.mxu0 0.0
    %183 = vmatpush1.msra.mxu0 0.0
    %184 = vmatprep.subr.mxu0 0.0
    %185 = vmatpush1.msra.mxu0 0.0
    %186 = vmatprep.subr.mxu0 0.0
    %187 = vmatpush1.msra.mxu0 0.0
    %188 = vmatprep.subr.mxu0 0.0
    %189 = vmatpush1.msra.mxu0 0.0
    %190 = vmatprep.subr.mxu0 0.0
    %191 = vmatpush1.msra.mxu0 0.0
    %192 = vmatprep.subr.mxu0 0.0
    %193 = vmatpush1.msra.mxu0 0.0
    %194 = vmatprep.subr.mxu0 0.0
    %195 = vmatpush1.msra.mxu0 0.0
    %196 = vmatprep.subr.mxu0 0.0
    %197 = vmatpush1.msra.mxu0 0.0
    %198 = vmatprep.subr.mxu0 0.0
    %199 = vmatpush1.msra.mxu0 0.0
    %200 = vmatprep.subr.mxu0 0.0
    %201 = vmatpush1.msra.mxu0 0.0
    %202 = vmatprep.subr.mxu0 0.0
    %203 = vmatpush1.msra.mxu0 0.0
    %204 = vmatprep.subr.mxu0 0.0
    %205 = vmatpush1.msra.mxu0 0.0
    %206 = vmatprep.mubr.f32.mxu0 0.0
    %207 = vmatmul.mubr.f32.gmra.mrb[0].mxu0 %v140
    %v208 = vpop.f32.mrb[0].mxu0
    %v209 = vadd.f32 %v56, %v208
    %v210 = vpop.f32.mrb[0].mxu0
    %211 = vdwg.mxu0
    %s212 = scalar_lea.vmem [#allocation2], 2
    %213 = vst [vmem:[%s212] sm:$0x3] %v209
    %s214 = scalar_lea.vmem %s0, 4
    %v215 = vld [vmem:[%s214] sm:$0x3]
    %v217 = vsel %vm58, %v215, 0
    %219 = vmatprep.subr.mxu0 0.0
    %220 = vmatpush1.msra.mxu0 %v46
    %221 = vmatprep.subr.mxu0 0.0
    %222 = vmatpush1.msra.mxu0 %v47
    %223 = vmatprep.subr.mxu0 0.0
    %224 = vmatpush1.msra.mxu0 %v48
    %225 = vmatprep.subr.mxu0 0.0
    %226 = vmatpush1.msra.mxu0 %v49
    %227 = vmatprep.subr.mxu0 0.0
    %228 = vmatpush1.msra.mxu0 %v64
    %229 = vmatprep.subr.mxu0 0.0
    %230 = vmatpush1.msra.mxu0 0.0
    %231 = vmatprep.subr.mxu0 0.0
    %232 = vmatpush1.msra.mxu0 0.0
    %233 = vmatprep.subr.mxu0 0.0
    %234 = vmatpush1.msra.mxu0 0.0
    %235 = vmatprep.subr.mxu0 0.0
    %236 = vmatpush1.msra.mxu0 0.0
    %237 = vmatprep.subr.mxu0 0.0
    %238 = vmatpush1.msra.mxu0 0.0
    %239 = vmatprep.subr.mxu0 0.0
    %240 = vmatpush1.msra.mxu0 0.0
    %241 = vmatprep.subr.mxu0 0.0
    %242 = vmatpush1.msra.mxu0 0.0
    %243 = vmatprep.subr.mxu0 0.0
    %244 = vmatpush1.msra.mxu0 0.0
    %245 = vmatprep.subr.mxu0 0.0
    %246 = vmatpush1.msra.mxu0 0.0
    %247 = vmatprep.subr.mxu0 0.0
    %248 = vmatpush1.msra.mxu0 0.0
    %249 = vmatprep.subr.mxu0 0.0
    %250 = vmatpush1.msra.mxu0 0.0
    %251 = vmatprep.subr.mxu0 0.0
    %252 = vmatpush1.msra.mxu0 0.0
    %253 = vmatprep.subr.mxu0 0.0
    %254 = vmatpush1.msra.mxu0 0.0
    %255 = vmatprep.subr.mxu0 0.0
    %256 = vmatpush1.msra.mxu0 0.0
    %257 = vmatprep.subr.mxu0 0.0
    %258 = vmatpush1.msra.mxu0 0.0
    %259 = vmatprep.subr.mxu0 0.0
    %260 = vmatpush1.msra.mxu0 0.0
    %261 = vmatprep.subr.mxu0 0.0
    %262 = vmatpush1.msra.mxu0 0.0
    %263 = vmatprep.subr.mxu0 0.0
    %264 = vmatpush1.msra.mxu0 0.0
    %265 = vmatprep.subr.mxu0 0.0
    %266 = vmatpush1.msra.mxu0 0.0
    %267 = vmatprep.subr.mxu0 0.0
    %268 = vmatpush1.msra.mxu0 0.0
    %269 = vmatprep.subr.mxu0 0.0
    %270 = vmatpush1.msra.mxu0 0.0
    %271 = vmatprep.subr.mxu0 0.0
    %272 = vmatpush1.msra.mxu0 0.0
    %273 = vmatprep.subr.mxu0 0.0
    %274 = vmatpush1.msra.mxu0 0.0
    %275 = vmatprep.subr.mxu0 0.0
    %276 = vmatpush1.msra.mxu0 0.0
    %277 = vmatprep.subr.mxu0 0.0
    %278 = vmatpush1.msra.mxu0 0.0
    %279 = vmatprep.subr.mxu0 0.0
    %280 = vmatpush1.msra.mxu0 0.0
    %281 = vmatprep.subr.mxu0 0.0
    %282 = vmatpush1.msra.mxu0 0.0
    %283 = vmatprep.mubr.f32.mxu0 0.0
    %284 = vmatmul.mubr.f32.gmra.mrb[0].mxu0 %v217
    %v285 = vpop.f32.mrb[0].mxu0
    %v286 = vadd.f32 %v56, %v285
    %v287 = vpop.f32.mrb[0].mxu0
    %288 = vdwg.mxu0
    %s289 = scalar_lea.vmem [#allocation2], 4
    %290 = vst [vmem:[%s289] sm:$0x3] %v286
    %s291 = scalar_lea.vmem %s0, 6
    %v292 = vld [vmem:[%s291] sm:$0x3]
    %v294 = vsel %vm58, %v292, 0
    %296 = vmatprep.subr.mxu0 0.0
    %297 = vmatpush1.msra.mxu0 %v46
    %298 = vmatprep.subr.mxu0 0.0
    %299 = vmatpush1.msra.mxu0 %v47
    %300 = vmatprep.subr.mxu0 0.0
    %301 = vmatpush1.msra.mxu0 %v48
    %302 = vmatprep.subr.mxu0 0.0
    %303 = vmatpush1.msra.mxu0 %v49
    %304 = vmatprep.subr.mxu0 0.0
    %305 = vmatpush1.msra.mxu0 %v64
    %306 = vmatprep.subr.mxu0 0.0
    %307 = vmatpush1.msra.mxu0 0.0
    %308 = vmatprep.subr.mxu0 0.0
    %309 = vmatpush1.msra.mxu0 0.0
    %310 = vmatprep.subr.mxu0 0.0
    %311 = vmatpush1.msra.mxu0 0.0
    %312 = vmatprep.subr.mxu0 0.0
    %313 = vmatpush1.msra.mxu0 0.0
    %314 = vmatprep.subr.mxu0 0.0
    %315 = vmatpush1.msra.mxu0 0.0
    %316 = vmatprep.subr.mxu0 0.0
    %317 = vmatpush1.msra.mxu0 0.0
    %318 = vmatprep.subr.mxu0 0.0
    %319 = vmatpush1.msra.mxu0 0.0
    %320 = vmatprep.subr.mxu0 0.0
    %321 = vmatpush1.msra.mxu0 0.0
    %322 = vmatprep.subr.mxu0 0.0
    %323 = vmatpush1.msra.mxu0 0.0
    %324 = vmatprep.subr.mxu0 0.0
    %325 = vmatpush1.msra.mxu0 0.0
    %326 = vmatprep.subr.mxu0 0.0
    %327 = vmatpush1.msra.mxu0 0.0
    %328 = vmatprep.subr.mxu0 0.0
    %329 = vmatpush1.msra.mxu0 0.0
    %330 = vmatprep.subr.mxu0 0.0
    %331 = vmatpush1.msra.mxu0 0.0
    %332 = vmatprep.subr.mxu0 0.0
    %333 = vmatpush1.msra.mxu0 0.0
    %334 = vmatprep.subr.mxu0 0.0
    %335 = vmatpush1.msra.mxu0 0.0
    %336 = vmatprep.subr.mxu0 0.0
    %337 = vmatpush1.msra.mxu0 0.0
    %338 = vmatprep.subr.mxu0 0.0
    %339 = vmatpush1.msra.mxu0 0.0
    %340 = vmatprep.subr.mxu0 0.0
    %341 = vmatpush1.msra.mxu0 0.0
    %342 = vmatprep.subr.mxu0 0.0
    %343 = vmatpush1.msra.mxu0 0.0
    %344 = vmatprep.subr.mxu0 0.0
    %345 = vmatpush1.msra.mxu0 0.0
    %346 = vmatprep.subr.mxu0 0.0
    %347 = vmatpush1.msra.mxu0 0.0
    %348 = vmatprep.subr.mxu0 0.0
    %349 = vmatpush1.msra.mxu0 0.0
    %350 = vmatprep.subr.mxu0 0.0
    %351 = vmatpush1.msra.mxu0 0.0
    %352 = vmatprep.subr.mxu0 0.0
    %353 = vmatpush1.msra.mxu0 0.0
    %354 = vmatprep.subr.mxu0 0.0
    %355 = vmatpush1.msra.mxu0 0.0
    %356 = vmatprep.subr.mxu0 0.0
    %357 = vmatpush1.msra.mxu0 0.0
    %358 = vmatprep.subr.mxu0 0.0
    %359 = vmatpush1.msra.mxu0 0.0
    %360 = vmatprep.mubr.f32.mxu0 0.0
    %361 = vmatmul.mubr.f32.gmra.mrb[0].mxu0 %v294
    %v362 = vpop.f32.mrb[0].mxu0
    %v363 = vadd.f32 %v56, %v362
    %v364 = vpop.f32.mrb[0].mxu0
    %365 = vdwg.mxu0
    %s366 = scalar_lea.vmem [#allocation2], 6
    %367 = vst [vmem:[%s366] sm:$0x3] %v363
    %s368 = scalar_lea.vmem %s0, 8
    %v369 = vld [vmem:[%s368] sm:$0x3]
    %v371 = vsel %vm58, %v369, 0
    %373 = vmatprep.subr.mxu0 0.0
    %374 = vmatpush1.msra.mxu0 %v46
    %375 = vmatprep.subr.mxu0 0.0
    %376 = vmatpush1.msra.mxu0 %v47
    %377 = vmatprep.subr.mxu0 0.0
    %378 = vmatpush1.msra.mxu0 %v48
    %379 = vmatprep.subr.mxu0 0.0
    %380 = vmatpush1.msra.mxu0 %v49
    %381 = vmatprep.subr.mxu0 0.0
    %382 = vmatpush1.msra.mxu0 %v64
    %383 = vmatprep.subr.mxu0 0.0
    %384 = vmatpush1.msra.mxu0 0.0
    %385 = vmatprep.subr.mxu0 0.0
    %386 = vmatpush1.msra.mxu0 0.0
    %387 = vmatprep.subr.mxu0 0.0
    %388 = vmatpush1.msra.mxu0 0.0
    %389 = vmatprep.subr.mxu0 0.0
    %390 = vmatpush1.msra.mxu0 0.0
    %391 = vmatprep.subr.mxu0 0.0
    %392 = vmatpush1.msra.mxu0 0.0
    %393 = vmatprep.subr.mxu0 0.0
    %394 = vmatpush1.msra.mxu0 0.0
    %395 = vmatprep.subr.mxu0 0.0
    %396 = vmatpush1.msra.mxu0 0.0
    %397 = vmatprep.subr.mxu0 0.0
    %398 = vmatpush1.msra.mxu0 0.0
    %399 = vmatprep.subr.mxu0 0.0
    %400 = vmatpush1.msra.mxu0 0.0
    %401 = vmatprep.subr.mxu0 0.0
    %402 = vmatpush1.msra.mxu0 0.0
    %403 = vmatprep.subr.mxu0 0.0
    %404 = vmatpush1.msra.mxu0 0.0
    %405 = vmatprep.subr.mxu0 0.0
    %406 = vmatpush1.msra.mxu0 0.0
    %407 = vmatprep.subr.mxu0 0.0
    %408 = vmatpush1.msra.mxu0 0.0
    %409 = vmatprep.subr.mxu0 0.0
    %410 = vmatpush1.msra.mxu0 0.0
    %411 = vmatprep.subr.mxu0 0.0
    %412 = vmatpush1.msra.mxu0 0.0
    %413 = vmatprep.subr.mxu0 0.0
    %414 = vmatpush1.msra.mxu0 0.0
    %415 = vmatprep.subr.mxu0 0.0
    %416 = vmatpush1.msra.mxu0 0.0
    %417 = vmatprep.subr.mxu0 0.0
    %418 = vmatpush1.msra.mxu0 0.0
    %419 = vmatprep.subr.mxu0 0.0
    %420 = vmatpush1.msra.mxu0 0.0
    %421 = vmatprep.subr.mxu0 0.0
    %422 = vmatpush1.msra.mxu0 0.0
    %423 = vmatprep.subr.mxu0 0.0
    %424 = vmatpush1.msra.mxu0 0.0
    %425 = vmatprep.subr.mxu0 0.0
    %426 = vmatpush1.msra.mxu0 0.0
    %427 = vmatprep.subr.mxu0 0.0
    %428 = vmatpush1.msra.mxu0 0.0
    %429 = vmatprep.subr.mxu0 0.0
    %430 = vmatpush1.msra.mxu0 0.0
    %431 = vmatprep.subr.mxu0 0.0
    %432 = vmatpush1.msra.mxu0 0.0
    %433 = vmatprep.subr.mxu0 0.0
    %434 = vmatpush1.msra.mxu0 0.0
    %435 = vmatprep.subr.mxu0 0.0
    %436 = vmatpush1.msra.mxu0 0.0
    %437 = vmatprep.mubr.f32.mxu0 0.0
    %438 = vmatmul.mubr.f32.gmra.mrb[0].mxu0 %v371
    %v439 = vpop.f32.mrb[0].mxu0
    %v440 = vadd.f32 %v56, %v439
    %v441 = vpop.f32.mrb[0].mxu0
    %442 = vdwg.mxu0
    %s443 = scalar_lea.vmem [#allocation2], 8
    %444 = vst [vmem:[%s443] sm:$0x3] %v440
    %s445 = scalar_lea.vmem %s0, 10
    %v446 = vld [vmem:[%s445] sm:$0x3]
    %v448 = vsel %vm58, %v446, 0
    %450 = vmatprep.subr.mxu0 0.0
    %451 = vmatpush1.msra.mxu0 %v46
    %452 = vmatprep.subr.mxu0 0.0
    %453 = vmatpush1.msra.mxu0 %v47
    %454 = vmatprep.subr.mxu0 0.0
    %455 = vmatpush1.msra.mxu0 %v48
    %456 = vmatprep.subr.mxu0 0.0
    %457 = vmatpush1.msra.mxu0 %v49
    %458 = vmatprep.subr.mxu0 0.0
    %459 = vmatpush1.msra.mxu0 %v64
    %460 = vmatprep.subr.mxu0 0.0
    %461 = vmatpush1.msra.mxu0 0.0
    %462 = vmatprep.subr.mxu0 0.0
    %463 = vmatpush1.msra.mxu0 0.0
    %464 = vmatprep.subr.mxu0 0.0
    %465 = vmatpush1.msra.mxu0 0.0
    %466 = vmatprep.subr.mxu0 0.0
    %467 = vmatpush1.msra.mxu0 0.0
    %468 = vmatprep.subr.mxu0 0.0
    %469 = vmatpush1.msra.mxu0 0.0
    %470 = vmatprep.subr.mxu0 0.0
    %471 = vmatpush1.msra.mxu0 0.0
    %472 = vmatprep.subr.mxu0 0.0
    %473 = vmatpush1.msra.mxu0 0.0
    %474 = vmatprep.subr.mxu0 0.0
    %475 = vmatpush1.msra.mxu0 0.0
    %476 = vmatprep.subr.mxu0 0.0
    %477 = vmatpush1.msra.mxu0 0.0
    %478 = vmatprep.subr.mxu0 0.0
    %479 = vmatpush1.msra.mxu0 0.0
    %480 = vmatprep.subr.mxu0 0.0
    %481 = vmatpush1.msra.mxu0 0.0
    %482 = vmatprep.subr.mxu0 0.0
    %483 = vmatpush1.msra.mxu0 0.0
    %484 = vmatprep.subr.mxu0 0.0
    %485 = vmatpush1.msra.mxu0 0.0
    %486 = vmatprep.subr.mxu0 0.0
    %487 = vmatpush1.msra.mxu0 0.0
    %488 = vmatprep.subr.mxu0 0.0
    %489 = vmatpush1.msra.mxu0 0.0
    %490 = vmatprep.subr.mxu0 0.0
    %491 = vmatpush1.msra.mxu0 0.0
    %492 = vmatprep.subr.mxu0 0.0
    %493 = vmatpush1.msra.mxu0 0.0
    %494 = vmatprep.subr.mxu0 0.0
    %495 = vmatpush1.msra.mxu0 0.0
    %496 = vmatprep.subr.mxu0 0.0
    %497 = vmatpush1.msra.mxu0 0.0
    %498 = vmatprep.subr.mxu0 0.0
    %499 = vmatpush1.msra.mxu0 0.0
    %500 = vmatprep.subr.mxu0 0.0
    %501 = vmatpush1.msra.mxu0 0.0
    %502 = vmatprep.subr.mxu0 0.0
    %503 = vmatpush1.msra.mxu0 0.0
    %504 = vmatprep.subr.mxu0 0.0
    %505 = vmatpush1.msra.mxu0 0.0
    %506 = vmatprep.subr.mxu0 0.0
    %507 = vmatpush1.msra.mxu0 0.0
    %508 = vmatprep.subr.mxu0 0.0
    %509 = vmatpush1.msra.mxu0 0.0
    %510 = vmatprep.subr.mxu0 0.0
    %511 = vmatpush1.msra.mxu0 0.0
    %512 = vmatprep.subr.mxu0 0.0
    %513 = vmatpush1.msra.mxu0 0.0
    %514 = vmatprep.mubr.f32.mxu0 0.0
    %515 = vmatmul.mubr.f32.gmra.mrb[0].mxu0 %v448
    %v516 = vpop.f32.mrb[0].mxu0
    %v517 = vadd.f32 %v56, %v516
    %v518 = vpop.f32.mrb[0].mxu0
    %519 = vdwg.mxu0
    %s520 = scalar_lea.vmem [#allocation2], 10
    %521 = vst [vmem:[%s520] sm:$0x3] %v517
    %s522 = scalar_lea.vmem %s0, 12
    %v523 = vld [vmem:[%s522] sm:$0x3]
    %v525 = vsel %vm58, %v523, 0
    %527 = vmatprep.subr.mxu0 0.0
    %528 = vmatpush1.msra.mxu0 %v46
    %529 = vmatprep.subr.mxu0 0.0
    %530 = vmatpush1.msra.mxu0 %v47
    %531 = vmatprep.subr.mxu0 0.0
    %532 = vmatpush1.msra.mxu0 %v48
    %533 = vmatprep.subr.mxu0 0.0
    %534 = vmatpush1.msra.mxu0 %v49
    %535 = vmatprep.subr.mxu0 0.0
    %536 = vmatpush1.msra.mxu0 %v64
    %537 = vmatprep.subr.mxu0 0.0
    %538 = vmatpush1.msra.mxu0 0.0
    %539 = vmatprep.subr.mxu0 0.0
    %540 = vmatpush1.msra.mxu0 0.0
    %541 = vmatprep.subr.mxu0 0.0
    %542 = vmatpush1.msra.mxu0 0.0
    %543 = vmatprep.subr.mxu0 0.0
    %544 = vmatpush1.msra.mxu0 0.0
    %545 = vmatprep.subr.mxu0 0.0
    %546 = vmatpush1.msra.mxu0 0.0
    %547 = vmatprep.subr.mxu0 0.0
    %548 = vmatpush1.msra.mxu0 0.0
    %549 = vmatprep.subr.mxu0 0.0
    %550 = vmatpush1.msra.mxu0 0.0
    %551 = vmatprep.subr.mxu0 0.0
    %552 = vmatpush1.msra.mxu0 0.0
    %553 = vmatprep.subr.mxu0 0.0
    %554 = vmatpush1.msra.mxu0 0.0
    %555 = vmatprep.subr.mxu0 0.0
    %556 = vmatpush1.msra.mxu0 0.0
    %557 = vmatprep.subr.mxu0 0.0
    %558 = vmatpush1.msra.mxu0 0.0
    %559 = vmatprep.subr.mxu0 0.0
    %560 = vmatpush1.msra.mxu0 0.0
    %561 = vmatprep.subr.mxu0 0.0
    %562 = vmatpush1.msra.mxu0 0.0
    %563 = vmatprep.subr.mxu0 0.0
    %564 = vmatpush1.msra.mxu0 0.0
    %565 = vmatprep.subr.mxu0 0.0
    %566 = vmatpush1.msra.mxu0 0.0
    %567 = vmatprep.subr.mxu0 0.0
    %568 = vmatpush1.msra.mxu0 0.0
    %569 = vmatprep.subr.mxu0 0.0
    %570 = vmatpush1.msra.mxu0 0.0
    %571 = vmatprep.subr.mxu0 0.0
    %572 = vmatpush1.msra.mxu0 0.0
    %573 = vmatprep.subr.mxu0 0.0
    %574 = vmatpush1.msra.mxu0 0.0
    %575 = vmatprep.subr.mxu0 0.0
    %576 = vmatpush1.msra.mxu0 0.0
    %577 = vmatprep.subr.mxu0 0.0
    %578 = vmatpush1.msra.mxu0 0.0
    %579 = vmatprep.subr.mxu0 0.0
    %580 = vmatpush1.msra.mxu0 0.0
    %581 = vmatprep.subr.mxu0 0.0
    %582 = vmatpush1.msra.mxu0 0.0
    %583 = vmatprep.subr.mxu0 0.0
    %584 = vmatpush1.msra.mxu0 0.0
    %585 = vmatprep.subr.mxu0 0.0
    %586 = vmatpush1.msra.mxu0 0.0
    %587 = vmatprep.subr.mxu0 0.0
    %588 = vmatpush1.msra.mxu0 0.0
    %589 = vmatprep.subr.mxu0 0.0
    %590 = vmatpush1.msra.mxu0 0.0
    %591 = vmatprep.mubr.f32.mxu0 0.0
    %592 = vmatmul.mubr.f32.gmra.mrb[0].mxu0 %v525
    %v593 = vpop.f32.mrb[0].mxu0
    %v594 = vadd.f32 %v56, %v593
    %v595 = vpop.f32.mrb[0].mxu0
    %596 = vdwg.mxu0
    %s597 = scalar_lea.vmem [#allocation2], 12
    %598 = vst [vmem:[%s597] sm:$0x3] %v594
    %s599 = scalar_lea.vmem %s0, 14
    %v600 = vld [vmem:[%s599] sm:$0x3]
    %v602 = vsel %vm58, %v600, 0
    %604 = vmatprep.subr.mxu0 0.0
    %605 = vmatpush1.msra.mxu0 %v46
    %606 = vmatprep.subr.mxu0 0.0
    %607 = vmatpush1.msra.mxu0 %v47
    %608 = vmatprep.subr.mxu0 0.0
    %609 = vmatpush1.msra.mxu0 %v48
    %610 = vmatprep.subr.mxu0 0.0
    %611 = vmatpush1.msra.mxu0 %v49
    %612 = vmatprep.subr.mxu0 0.0
    %613 = vmatpush1.msra.mxu0 %v64
    %614 = vmatprep.subr.mxu0 0.0
    %615 = vmatpush1.msra.mxu0 0.0
    %616 = vmatprep.subr.mxu0 0.0
    %617 = vmatpush1.msra.mxu0 0.0
    %618 = vmatprep.subr.mxu0 0.0
    %619 = vmatpush1.msra.mxu0 0.0
    %620 = vmatprep.subr.mxu0 0.0
    %621 = vmatpush1.msra.mxu0 0.0
    %622 = vmatprep.subr.mxu0 0.0
    %623 = vmatpush1.msra.mxu0 0.0
    %624 = vmatprep.subr.mxu0 0.0
    %625 = vmatpush1.msra.mxu0 0.0
    %626 = vmatprep.subr.mxu0 0.0
    %627 = vmatpush1.msra.mxu0 0.0
    %628 = vmatprep.subr.mxu0 0.0
    %629 = vmatpush1.msra.mxu0 0.0
    %630 = vmatprep.subr.mxu0 0.0
    %631 = vmatpush1.msra.mxu0 0.0
    %632 = vmatprep.subr.mxu0 0.0
    %633 = vmatpush1.msra.mxu0 0.0
    %634 = vmatprep.subr.mxu0 0.0
    %635 = vmatpush1.msra.mxu0 0.0
    %636 = vmatprep.subr.mxu0 0.0
    %637 = vmatpush1.msra.mxu0 0.0
    %638 = vmatprep.subr.mxu0 0.0
    %639 = vmatpush1.msra.mxu0 0.0
    %640 = vmatprep.subr.mxu0 0.0
    %641 = vmatpush1.msra.mxu0 0.0
    %642 = vmatprep.subr.mxu0 0.0
    %643 = vmatpush1.msra.mxu0 0.0
    %644 = vmatprep.subr.mxu0 0.0
    %645 = vmatpush1.msra.mxu0 0.0
    %646 = vmatprep.subr.mxu0 0.0
    %647 = vmatpush1.msra.mxu0 0.0
    %648 = vmatprep.subr.mxu0 0.0
    %649 = vmatpush1.msra.mxu0 0.0
    %650 = vmatprep.subr.mxu0 0.0
    %651 = vmatpush1.msra.mxu0 0.0
    %652 = vmatprep.subr.mxu0 0.0
    %653 = vmatpush1.msra.mxu0 0.0
    %654 = vmatprep.subr.mxu0 0.0
    %655 = vmatpush1.msra.mxu0 0.0
    %656 = vmatprep.subr.mxu0 0.0
    %657 = vmatpush1.msra.mxu0 0.0
    %658 = vmatprep.subr.mxu0 0.0
    %659 = vmatpush1.msra.mxu0 0.0
    %660 = vmatprep.subr.mxu0 0.0
    %661 = vmatpush1.msra.mxu0 0.0
    %662 = vmatprep.subr.mxu0 0.0
    %663 = vmatpush1.msra.mxu0 0.0
    %664 = vmatprep.subr.mxu0 0.0
    %665 = vmatpush1.msra.mxu0 0.0
    %666 = vmatprep.subr.mxu0 0.0
    %667 = vmatpush1.msra.mxu0 0.0
    %668 = vmatprep.mubr.f32.mxu0 0.0
    %669 = vmatmul.mubr.f32.gmra.mrb[0].mxu0 %v602
    %v670 = vpop.f32.mrb[0].mxu0
    %v671 = vadd.f32 %v56, %v670
    %v672 = vpop.f32.mrb[0].mxu0
    %673 = vdwg.mxu0
    %s674 = scalar_lea.vmem [#allocation2], 14
    %675 = vst [vmem:[%s674] sm:$0x3] %v671
    %v676 = vld [vmem:[%s3] sm:$0xff]
    %v677 = vld [vmem:[%s3 + $0x8] sm:$0xff]
    %v678 = vld [vmem:[%s3 + $0x10] sm:$0xff]
    %v679 = vld [vmem:[%s3 + $0x18] sm:$0xff]
    %v680 = vld [vmem:[%s5] sm:$0x3]
    %v681 = vld [vmem:[%s6] sm:$0x3]
    %v682 = vld [vmem:[#allocation2] sm:$0x3]
    %vm683 = vcmask 261120
    %v685 = vsel %vm683, %v680, 0
    %687 = vmatprep.subr.mxu0 0.0
    %688 = vmatpush1.msra.mxu0 %v676
    %689 = vmatprep.subr.mxu0 0.0
    %690 = vmatpush1.msra.mxu0 %v677
    %691 = vmatprep.subr.mxu0 0.0
    %692 = vmatpush1.msra.mxu0 %v678
    %693 = vmatprep.subr.mxu0 0.0
    %694 = vmatpush1.msra.mxu0 %v679
    %695 = vmatprep.subr.mxu0 0.0
    %696 = vmatpush1.msra.mxu0 0.0
    %697 = vmatprep.subr.mxu0 0.0
    %698 = vmatpush1.msra.mxu0 0.0
    %699 = vmatprep.subr.mxu0 0.0
    %700 = vmatpush1.msra.mxu0 0.0
    %701 = vmatprep.subr.mxu0 0.0
    %702 = vmatpush1.msra.mxu0 0.0
    %703 = vmatprep.subr.mxu0 0.0
    %704 = vmatpush1.msra.mxu0 0.0
    %705 = vmatprep.subr.mxu0 0.0
    %706 = vmatpush1.msra.mxu0 0.0
    %707 = vmatprep.subr.mxu0 0.0
    %708 = vmatpush1.msra.mxu0 0.0
    %709 = vmatprep.subr.mxu0 0.0
    %710 = vmatpush1.msra.mxu0 0.0
    %711 = vmatprep.subr.mxu0 0.0
    %712 = vmatpush1.msra.mxu0 0.0
    %713 = vmatprep.subr.mxu0 0.0
    %714 = vmatpush1.msra.mxu0 0.0
    %715 = vmatprep.subr.mxu0 0.0
    %716 = vmatpush1.msra.mxu0 0.0
    %717 = vmatprep.subr.mxu0 0.0
    %718 = vmatpush1.msra.mxu0 0.0
    %719 = vmatprep.subr.mxu0 0.0
    %720 = vmatpush1.msra.mxu0 0.0
    %721 = vmatprep.subr.mxu0 0.0
    %722 = vmatpush1.msra.mxu0 0.0
    %723 = vmatprep.subr.mxu0 0.0
    %724 = vmatpush1.msra.mxu0 0.0
    %725 = vmatprep.subr.mxu0 0.0
    %726 = vmatpush1.msra.mxu0 0.0
    %727 = vmatprep.subr.mxu0 0.0
    %728 = vmatpush1.msra.mxu0 0.0
    %729 = vmatprep.subr.mxu0 0.0
    %730 = vmatpush1.msra.mxu0 0.0
    %731 = vmatprep.subr.mxu0 0.0
    %732 = vmatpush1.msra.mxu0 0.0
    %733 = vmatprep.subr.mxu0 0.0
    %734 = vmatpush1.msra.mxu0 0.0
    %735 = vmatprep.subr.mxu0 0.0
    %736 = vmatpush1.msra.mxu0 0.0
    %737 = vmatprep.subr.mxu0 0.0
    %738 = vmatpush1.msra.mxu0 0.0
    %739 = vmatprep.subr.mxu0 0.0
    %740 = vmatpush1.msra.mxu0 0.0
    %741 = vmatprep.subr.mxu0 0.0
    %742 = vmatpush1.msra.mxu0 0.0
    %743 = vmatprep.subr.mxu0 0.0
    %744 = vmatpush1.msra.mxu0 0.0
    %745 = vmatprep.subr.mxu0 0.0
    %746 = vmatpush1.msra.mxu0 0.0
    %747 = vmatprep.subr.mxu0 0.0
    %748 = vmatpush1.msra.mxu0 0.0
    %749 = vmatprep.subr.mxu0 0.0
    %750 = vmatpush1.msra.mxu0 0.0
    %751 = vmatprep.mubr.f32.mxu0 0.0
    %752 = vmatmul.mubr.f32.gmra.mrb[0].mxu0 %v685
    %v753 = vpop.f32.mrb[0].mxu0
    %v754 = vadd.f32 0.0, %v753
    %v755 = vpop.f32.mrb[0].mxu0
    %756 = vdwg.mxu0
    %v757 = vadd.f32 %v682, %v754
    %v758 = vxor.u32 %v757, 2147483648
    %v759 = vmul.f32 %v758, 1.442695
    %v760 = vpow.pop %v759
    %v761 = vadd.f32 %v760, 1.0
    %v762 = vrcp.pop %v761
    %v763 = vmul.f32 1.0, %v762
    %v764 = vtanh.pop %v757
    %766 = vrot.lane.b32.xlu0 %v681, 32
    %v767 = vpop.permute.xlu0 %766
    %v769 = vmul.f32 %v763, %v767
    %771 = vrot.lane.b32.xlu0 %v764, 32
    %v772 = vpop.permute.xlu0 %771
    %v774 = vmul.f32 %v763, %v772
    %776 = vrot.lane.b32.xlu0 %v774, 32
    %v777 = vpop.permute.xlu0 %776
    %v779 = vadd.f32 %v769, %v777
    %v780 = vtanh.pop %v779
    %782 = vrot.lane.b32.xlu0 %v780, 32
    %v783 = vpop.permute.xlu0 %782
    %v785 = vmul.f32 %v763, %v783
    %787 = vrot.lane.b32.xlu0 %v785, 64
    %v788 = vpop.permute.xlu0 %787
    %vm790 = vcmask 254976
    %791 = vst.msk [vmem:[#allocation3] sm:$0x3] %vm790, %v788
    %v792 = vld [vmem:[%s212] sm:$0x3]
    %v793 = vsel %vm683, %v788, 0
    %795 = vmatprep.subr.mxu0 0.0
    %796 = vmatpush1.msra.mxu0 %v676
    %797 = vmatprep.subr.mxu0 0.0
    %798 = vmatpush1.msra.mxu0 %v677
    %799 = vmatprep.subr.mxu0 0.0
    %800 = vmatpush1.msra.mxu0 %v678
    %801 = vmatprep.subr.mxu0 0.0
    %802 = vmatpush1.msra.mxu0 %v679
    %803 = vmatprep.subr.mxu0 0.0
    %804 = vmatpush1.msra.mxu0 0.0
    %805 = vmatprep.subr.mxu0 0.0
    %806 = vmatpush1.msra.mxu0 0.0
    %807 = vmatprep.subr.mxu0 0.0
    %808 = vmatpush1.msra.mxu0 0.0
    %809 = vmatprep.subr.mxu0 0.0
    %810 = vmatpush1.msra.mxu0 0.0
    %811 = vmatprep.subr.mxu0 0.0
    %812 = vmatpush1.msra.mxu0 0.0
    %813 = vmatprep.subr.mxu0 0.0
    %814 = vmatpush1.msra.mxu0 0.0
    %815 = vmatprep.subr.mxu0 0.0
    %816 = vmatpush1.msra.mxu0 0.0
    %817 = vmatprep.subr.mxu0 0.0
    %818 = vmatpush1.msra.mxu0 0.0
    %819 = vmatprep.subr.mxu0 0.0
    %820 = vmatpush1.msra.mxu0 0.0
    %821 = vmatprep.subr.mxu0 0.0
    %822 = vmatpush1.msra.mxu0 0.0
    %823 = vmatprep.subr.mxu0 0.0
    %824 = vmatpush1.msra.mxu0 0.0
    %825 = vmatprep.subr.mxu0 0.0
    %826 = vmatpush1.msra.mxu0 0.0
    %827 = vmatprep.subr.mxu0 0.0
    %828 = vmatpush1.msra.mxu0 0.0
    %829 = vmatprep.subr.mxu0 0.0
    %830 = vmatpush1.msra.mxu0 0.0
    %831 = vmatprep.subr.mxu0 0.0
    %832 = vmatpush1.msra.mxu0 0.0
    %833 = vmatprep.subr.mxu0 0.0
    %834 = vmatpush1.msra.mxu0 0.0
    %835 = vmatprep.subr.mxu0 0.0
    %836 = vmatpush1.msra.mxu0 0.0
    %837 = vmatprep.subr.mxu0 0.0
    %838 = vmatpush1.msra.mxu0 0.0
    %839 = vmatprep.subr.mxu0 0.0
    %840 = vmatpush1.msra.mxu0 0.0
    %841 = vmatprep.subr.mxu0 0.0
    %842 = vmatpush1.msra.mxu0 0.0
    %843 = vmatprep.subr.mxu0 0.0
    %844 = vmatpush1.msra.mxu0 0.0
    %845 = vmatprep.subr.mxu0 0.0
    %846 = vmatpush1.msra.mxu0 0.0
    %847 = vmatprep.subr.mxu0 0.0
    %848 = vmatpush1.msra.mxu0 0.0
    %849 = vmatprep.subr.mxu0 0.0
    %850 = vmatpush1.msra.mxu0 0.0
    %851 = vmatprep.subr.mxu0 0.0
    %852 = vmatpush1.msra.mxu0 0.0
    %853 = vmatprep.subr.mxu0 0.0
    %854 = vmatpush1.msra.mxu0 0.0
    %855 = vmatprep.subr.mxu0 0.0
    %856 = vmatpush1.msra.mxu0 0.0
    %857 = vmatprep.subr.mxu0 0.0
    %858 = vmatpush1.msra.mxu0 0.0
    %859 = vmatprep.mubr.f32.mxu0 0.0
    %860 = vmatmul.mubr.f32.gmra.mrb[0].mxu0 %v793
    %v861 = vpop.f32.mrb[0].mxu0
    %v862 = vadd.f32 0.0, %v861
    %v863 = vpop.f32.mrb[0].mxu0
    %864 = vdwg.mxu0
    %v865 = vadd.f32 %v792, %v862
    %v866 = vxor.u32 %v865, 2147483648
    %v867 = vmul.f32 %v866, 1.442695
    %v868 = vpow.pop %v867
    %v869 = vadd.f32 %v868, 1.0
    %v870 = vrcp.pop %v869
    %v871 = vmul.f32 1.0, %v870
    %v872 = vtanh.pop %v865
    %v873 = vmul.f32 %v871, %v779
    %875 = vrot.lane.b32.xlu0 %v872, 32
    %v876 = vpop.permute.xlu0 %875
    %v878 = vmul.f32 %v871, %v876
    %880 = vrot.lane.b32.xlu0 %v878, 32
    %v881 = vpop.permute.xlu0 %880
    %v883 = vadd.f32 %v873, %v881
    %v884 = vtanh.pop %v883
    %886 = vrot.lane.b32.xlu0 %v884, 32
    %v887 = vpop.permute.xlu0 %886
    %v889 = vmul.f32 %v871, %v887
    %891 = vrot.lane.b32.xlu0 %v889, 64
    %v892 = vpop.permute.xlu0 %891
    %s894 = scalar_lea.vmem [#allocation3], 2
    %895 = vst.msk [vmem:[%s894] sm:$0x3] %vm790, %v892
    %v896 = vld [vmem:[%s289] sm:$0x3]
    %v897 = vsel %vm683, %v892, 0
    %899 = vmatprep.subr.mxu0 0.0
    %900 = vmatpush1.msra.mxu0 %v676
    %901 = vmatprep.subr.mxu0 0.0
    %902 = vmatpush1.msra.mxu0 %v677
    %903 = vmatprep.subr.mxu0 0.0
    %904 = vmatpush1.msra.mxu0 %v678
    %905 = vmatprep.subr.mxu0 0.0
    %906 = vmatpush1.msra.mxu0 %v679
    %907 = vmatprep.subr.mxu0 0.0
    %908 = vmatpush1.msra.mxu0 0.0
    %909 = vmatprep.subr.mxu0 0.0
    %910 = vmatpush1.msra.mxu0 0.0
    %911 = vmatprep.subr.mxu0 0.0
    %912 = vmatpush1.msra.mxu0 0.0
    %913 = vmatprep.subr.mxu0 0.0
    %914 = vmatpush1.msra.mxu0 0.0
    %915 = vmatprep.subr.mxu0 0.0
    %916 = vmatpush1.msra.mxu0 0.0
    %917 = vmatprep.subr.mxu0 0.0
    %918 = vmatpush1.msra.mxu0 0.0
    %919 = vmatprep.subr.mxu0 0.0
    %920 = vmatpush1.msra.mxu0 0.0
    %921 = vmatprep.subr.mxu0 0.0
    %922 = vmatpush1.msra.mxu0 0.0
    %923 = vmatprep.subr.mxu0 0.0
    %924 = vmatpush1.msra.mxu0 0.0
    %925 = vmatprep.subr.mxu0 0.0
    %926 = vmatpush1.msra.mxu0 0.0
    %927 = vmatprep.subr.mxu0 0.0
    %928 = vmatpush1.msra.mxu0 0.0
    %929 = vmatprep.subr.mxu0 0.0
    %930 = vmatpush1.msra.mxu0 0.0
    %931 = vmatprep.subr.mxu0 0.0
    %932 = vmatpush1.msra.mxu0 0.0
    %933 = vmatprep.subr.mxu0 0.0
    %934 = vmatpush1.msra.mxu0 0.0
    %935 = vmatprep.subr.mxu0 0.0
    %936 = vmatpush1.msra.mxu0 0.0
    %937 = vmatprep.subr.mxu0 0.0
    %938 = vmatpush1.msra.mxu0 0.0
    %939 = vmatprep.subr.mxu0 0.0
    %940 = vmatpush1.msra.mxu0 0.0
    %941 = vmatprep.subr.mxu0 0.0
    %942 = vmatpush1.msra.mxu0 0.0
    %943 = vmatprep.subr.mxu0 0.0
    %944 = vmatpush1.msra.mxu0 0.0
    %945 = vmatprep.subr.mxu0 0.0
    %946 = vmatpush1.msra.mxu0 0.0
    %947 = vmatprep.subr.mxu0 0.0
    %948 = vmatpush1.msra.mxu0 0.0
    %949 = vmatprep.subr.mxu0 0.0
    %950 = vmatpush1.msra.mxu0 0.0
    %951 = vmatprep.subr.mxu0 0.0
    %952 = vmatpush1.msra.mxu0 0.0
    %953 = vmatprep.subr.mxu0 0.0
    %954 = vmatpush1.msra.mxu0 0.0
    %955 = vmatprep.subr.mxu0 0.0
    %956 = vmatpush1.msra.mxu0 0.0
    %957 = vmatprep.subr.mxu0 0.0
    %958 = vmatpush1.msra.mxu0 0.0
    %959 = vmatprep.subr.mxu0 0.0
    %960 = vmatpush1.msra.mxu0 0.0
    %961 = vmatprep.subr.mxu0 0.0
    %962 = vmatpush1.msra.mxu0 0.0
    %963 = vmatprep.mubr.f32.mxu0 0.0
    %964 = vmatmul.mubr.f32.gmra.mrb[0].mxu0 %v897
    %v965 = vpop.f32.mrb[0].mxu0
    %v966 = vadd.f32 0.0, %v965
    %v967 = vpop.f32.mrb[0].mxu0
    %968 = vdwg.mxu0
    %v969 = vadd.f32 %v896, %v966
    %v970 = vxor.u32 %v969, 2147483648
    %v971 = vmul.f32 %v970, 1.442695
    %v972 = vpow.pop %v971
    %v973 = vadd.f32 %v972, 1.0
    %v974 = vrcp.pop %v973
    %v975 = vmul.f32 1.0, %v974
    %v976 = vtanh.pop %v969
    %v977 = vmul.f32 %v975, %v883
    %979 = vrot.lane.b32.xlu0 %v976, 32
    %v980 = vpop.permute.xlu0 %979
    %v982 = vmul.f32 %v975, %v980
    %984 = vrot.lane.b32.xlu0 %v982, 32
    %v985 = vpop.permute.xlu0 %984
    %v987 = vadd.f32 %v977, %v985
    %v988 = vtanh.pop %v987
    %990 = vrot.lane.b32.xlu0 %v988, 32
    %v991 = vpop.permute.xlu0 %990
    %v993 = vmul.f32 %v975, %v991
    %995 = vrot.lane.b32.xlu0 %v993, 64
    %v996 = vpop.permute.xlu0 %995
    %s998 = scalar_lea.vmem [#allocation3], 4
    %999 = vst.msk [vmem:[%s998] sm:$0x3] %vm790, %v996
    %v1000 = vld [vmem:[%s366] sm:$0x3]
    %v1001 = vsel %vm683, %v996, 0
    %1003 = vmatprep.subr.mxu0 0.0
    %1004 = vmatpush1.msra.mxu0 %v676
    %1005 = vmatprep.subr.mxu0 0.0
    %1006 = vmatpush1.msra.mxu0 %v677
    %1007 = vmatprep.subr.mxu0 0.0
    %1008 = vmatpush1.msra.mxu0 %v678
    %1009 = vmatprep.subr.mxu0 0.0
    %1010 = vmatpush1.msra.mxu0 %v679
    %1011 = vmatprep.subr.mxu0 0.0
    %1012 = vmatpush1.msra.mxu0 0.0
    %1013 = vmatprep.subr.mxu0 0.0
    %1014 = vmatpush1.msra.mxu0 0.0
    %1015 = vmatprep.subr.mxu0 0.0
    %1016 = vmatpush1.msra.mxu0 0.0
    %1017 = vmatprep.subr.mxu0 0.0
    %1018 = vmatpush1.msra.mxu0 0.0
    %1019 = vmatprep.subr.mxu0 0.0
    %1020 = vmatpush1.msra.mxu0 0.0
    %1021 = vmatprep.subr.mxu0 0.0
    %1022 = vmatpush1.msra.mxu0 0.0
    %1023 = vmatprep.subr.mxu0 0.0
    %1024 = vmatpush1.msra.mxu0 0.0
    %1025 = vmatprep.subr.mxu0 0.0
    %1026 = vmatpush1.msra.mxu0 0.0
    %1027 = vmatprep.subr.mxu0 0.0
    %1028 = vmatpush1.msra.mxu0 0.0
    %1029 = vmatprep.subr.mxu0 0.0
    %1030 = vmatpush1.msra.mxu0 0.0
    %1031 = vmatprep.subr.mxu0 0.0
    %1032 = vmatpush1.msra.mxu0 0.0
    %1033 = vmatprep.subr.mxu0 0.0
    %1034 = vmatpush1.msra.mxu0 0.0
    %1035 = vmatprep.subr.mxu0 0.0
    %1036 = vmatpush1.msra.mxu0 0.0
    %1037 = vmatprep.subr.mxu0 0.0
    %1038 = vmatpush1.msra.mxu0 0.0
    %1039 = vmatprep.subr.mxu0 0.0
    %1040 = vmatpush1.msra.mxu0 0.0
    %1041 = vmatprep.subr.mxu0 0.0
    %1042 = vmatpush1.msra.mxu0 0.0
    %1043 = vmatprep.subr.mxu0 0.0
    %1044 = vmatpush1.msra.mxu0 0.0
    %1045 = vmatprep.subr.mxu0 0.0
    %1046 = vmatpush1.msra.mxu0 0.0
    %1047 = vmatprep.subr.mxu0 0.0
    %1048 = vmatpush1.msra.mxu0 0.0
    %1049 = vmatprep.subr.mxu0 0.0
    %1050 = vmatpush1.msra.mxu0 0.0
    %1051 = vmatprep.subr.mxu0 0.0
    %1052 = vmatpush1.msra.mxu0 0.0
    %1053 = vmatprep.subr.mxu0 0.0
    %1054 = vmatpush1.msra.mxu0 0.0
    %1055 = vmatprep.subr.mxu0 0.0
    %1056 = vmatpush1.msra.mxu0 0.0
    %1057 = vmatprep.subr.mxu0 0.0
    %1058 = vmatpush1.msra.mxu0 0.0
    %1059 = vmatprep.subr.mxu0 0.0
    %1060 = vmatpush1.msra.mxu0 0.0
    %1061 = vmatprep.subr.mxu0 0.0
    %1062 = vmatpush1.msra.mxu0 0.0
    %1063 = vmatprep.subr.mxu0 0.0
    %1064 = vmatpush1.msra.mxu0 0.0
    %1065 = vmatprep.subr.mxu0 0.0
    %1066 = vmatpush1.msra.mxu0 0.0
    %1067 = vmatprep.mubr.f32.mxu0 0.0
    %1068 = vmatmul.mubr.f32.gmra.mrb[0].mxu0 %v1001
    %v1069 = vpop.f32.mrb[0].mxu0
    %v1070 = vadd.f32 0.0, %v1069
    %v1071 = vpop.f32.mrb[0].mxu0
    %1072 = vdwg.mxu0
    %v1073 = vadd.f32 %v1000, %v1070
    %v1074 = vxor.u32 %v1073, 2147483648
    %v1075 = vmul.f32 %v1074, 1.442695
    %v1076 = vpow.pop %v1075
    %v1077 = vadd.f32 %v1076, 1.0
    %v1078 = vrcp.pop %v1077
    %v1079 = vmul.f32 1.0, %v1078
    %v1080 = vtanh.pop %v1073
    %v1081 = vmul.f32 %v1079, %v987
    %1083 = vrot.lane.b32.xlu0 %v1080, 32
    %v1084 = vpop.permute.xlu0 %1083
    %v1086 = vmul.f32 %v1079, %v1084
    %1088 = vrot.lane.b32.xlu0 %v1086, 32
    %v1089 = vpop.permute.xlu0 %1088
    %v1091 = vadd.f32 %v1081, %v1089
    %v1092 = vtanh.pop %v1091
    %1094 = vrot.lane.b32.xlu0 %v1092, 32
    %v1095 = vpop.permute.xlu0 %1094
    %v1097 = vmul.f32 %v1079, %v1095
    %1099 = vrot.lane.b32.xlu0 %v1097, 64
    %v1100 = vpop.permute.xlu0 %1099
    %s1102 = scalar_lea.vmem [#allocation3], 6
    %1103 = vst.msk [vmem:[%s1102] sm:$0x3] %vm790, %v1100
    %v1104 = vld [vmem:[%s443] sm:$0x3]
    %v1105 = vsel %vm683, %v1100, 0
    %1107 = vmatprep.subr.mxu0 0.0
    %1108 = vmatpush1.msra.mxu0 %v676
    %1109 = vmatprep.subr.mxu0 0.0
    %1110 = vmatpush1.msra.mxu0 %v677
    %1111 = vmatprep.subr.mxu0 0.0
    %1112 = vmatpush1.msra.mxu0 %v678
    %1113 = vmatprep.subr.mxu0 0.0
    %1114 = vmatpush1.msra.mxu0 %v679
    %1115 = vmatprep.subr.mxu0 0.0
    %1116 = vmatpush1.msra.mxu0 0.0
    %1117 = vmatprep.subr.mxu0 0.0
    %1118 = vmatpush1.msra.mxu0 0.0
    %1119 = vmatprep.subr.mxu0 0.0
    %1120 = vmatpush1.msra.mxu0 0.0
    %1121 = vmatprep.subr.mxu0 0.0
    %1122 = vmatpush1.msra.mxu0 0.0
    %1123 = vmatprep.subr.mxu0 0.0
    %1124 = vmatpush1.msra.mxu0 0.0
    %1125 = vmatprep.subr.mxu0 0.0
    %1126 = vmatpush1.msra.mxu0 0.0
    %1127 = vmatprep.subr.mxu0 0.0
    %1128 = vmatpush1.msra.mxu0 0.0
    %1129 = vmatprep.subr.mxu0 0.0
    %1130 = vmatpush1.msra.mxu0 0.0
    %1131 = vmatprep.subr.mxu0 0.0
    %1132 = vmatpush1.msra.mxu0 0.0
    %1133 = vmatprep.subr.mxu0 0.0
    %1134 = vmatpush1.msra.mxu0 0.0
    %1135 = vmatprep.subr.mxu0 0.0
    %1136 = vmatpush1.msra.mxu0 0.0
    %1137 = vmatprep.subr.mxu0 0.0
    %1138 = vmatpush1.msra.mxu0 0.0
    %1139 = vmatprep.subr.mxu0 0.0
    %1140 = vmatpush1.msra.mxu0 0.0
    %1141 = vmatprep.subr.mxu0 0.0
    %1142 = vmatpush1.msra.mxu0 0.0
    %1143 = vmatprep.subr.mxu0 0.0
    %1144 = vmatpush1.msra.mxu0 0.0
    %1145 = vmatprep.subr.mxu0 0.0
    %1146 = vmatpush1.msra.mxu0 0.0
    %1147 = vmatprep.subr.mxu0 0.0
    %1148 = vmatpush1.msra.mxu0 0.0
    %1149 = vmatprep.subr.mxu0 0.0
    %1150 = vmatpush1.msra.mxu0 0.0
    %1151 = vmatprep.subr.mxu0 0.0
    %1152 = vmatpush1.msra.mxu0 0.0
    %1153 = vmatprep.subr.mxu0 0.0
    %1154 = vmatpush1.msra.mxu0 0.0
    %1155 = vmatprep.subr.mxu0 0.0
    %1156 = vmatpush1.msra.mxu0 0.0
    %1157 = vmatprep.subr.mxu0 0.0
    %1158 = vmatpush1.msra.mxu0 0.0
    %1159 = vmatprep.subr.mxu0 0.0
    %1160 = vmatpush1.msra.mxu0 0.0
    %1161 = vmatprep.subr.mxu0 0.0
    %1162 = vmatpush1.msra.mxu0 0.0
    %1163 = vmatprep.subr.mxu0 0.0
    %1164 = vmatpush1.msra.mxu0 0.0
    %1165 = vmatprep.subr.mxu0 0.0
    %1166 = vmatpush1.msra.mxu0 0.0
    %1167 = vmatprep.subr.mxu0 0.0
    %1168 = vmatpush1.msra.mxu0 0.0
    %1169 = vmatprep.subr.mxu0 0.0
    %1170 = vmatpush1.msra.mxu0 0.0
    %1171 = vmatprep.mubr.f32.mxu0 0.0
    %1172 = vmatmul.mubr.f32.gmra.mrb[0].mxu0 %v1105
    %v1173 = vpop.f32.mrb[0].mxu0
    %v1174 = vadd.f32 0.0, %v1173
    %v1175 = vpop.f32.mrb[0].mxu0
    %1176 = vdwg.mxu0
    %v1177 = vadd.f32 %v1104, %v1174
    %v1178 = vxor.u32 %v1177, 2147483648
    %v1179 = vmul.f32 %v1178, 1.442695
    %v1180 = vpow.pop %v1179
    %v1181 = vadd.f32 %v1180, 1.0
    %v1182 = vrcp.pop %v1181
    %v1183 = vmul.f32 1.0, %v1182
    %v1184 = vtanh.pop %v1177
    %v1185 = vmul.f32 %v1183, %v1091
    %1187 = vrot.lane.b32.xlu0 %v1184, 32
    %v1188 = vpop.permute.xlu0 %1187
    %v1190 = vmul.f32 %v1183, %v1188
    %1192 = vrot.lane.b32.xlu0 %v1190, 32
    %v1193 = vpop.permute.xlu0 %1192
    %v1195 = vadd.f32 %v1185, %v1193
    %v1196 = vtanh.pop %v1195
    %1198 = vrot.lane.b32.xlu0 %v1196, 32
    %v1199 = vpop.permute.xlu0 %1198
    %v1201 = vmul.f32 %v1183, %v1199
    %1203 = vrot.lane.b32.xlu0 %v1201, 64
    %v1204 = vpop.permute.xlu0 %1203
    %s1206 = scalar_lea.vmem [#allocation3], 8
    %1207 = vst.msk [vmem:[%s1206] sm:$0x3] %vm790, %v1204
    %v1208 = vld [vmem:[%s520] sm:$0x3]
    %v1209 = vsel %vm683, %v1204, 0
    %1211 = vmatprep.subr.mxu0 0.0
    %1212 = vmatpush1.msra.mxu0 %v676
    %1213 = vmatprep.subr.mxu0 0.0
    %1214 = vmatpush1.msra.mxu0 %v677
    %1215 = vmatprep.subr.mxu0 0.0
    %1216 = vmatpush1.msra.mxu0 %v678
    %1217 = vmatprep.subr.mxu0 0.0
    %1218 = vmatpush1.msra.mxu0 %v679
    %1219 = vmatprep.subr.mxu0 0.0
    %1220 = vmatpush1.msra.mxu0 0.0
    %1221 = vmatprep.subr.mxu0 0.0
    %1222 = vmatpush1.msra.mxu0 0.0
    %1223 = vmatprep.subr.mxu0 0.0
    %1224 = vmatpush1.msra.mxu0 0.0
    %1225 = vmatprep.subr.mxu0 0.0
    %1226 = vmatpush1.msra.mxu0 0.0
    %1227 = vmatprep.subr.mxu0 0.0
    %1228 = vmatpush1.msra.mxu0 0.0
    %1229 = vmatprep.subr.mxu0 0.0
    %1230 = vmatpush1.msra.mxu0 0.0
    %1231 = vmatprep.subr.mxu0 0.0
    %1232 = vmatpush1.msra.mxu0 0.0
    %1233 = vmatprep.subr.mxu0 0.0
    %1234 = vmatpush1.msra.mxu0 0.0
    %1235 = vmatprep.subr.mxu0 0.0
    %1236 = vmatpush1.msra.mxu0 0.0
    %1237 = vmatprep.subr.mxu0 0.0
    %1238 = vmatpush1.msra.mxu0 0.0
    %1239 = vmatprep.subr.mxu0 0.0
    %1240 = vmatpush1.msra.mxu0 0.0
    %1241 = vmatprep.subr.mxu0 0.0
    %1242 = vmatpush1.msra.mxu0 0.0
    %1243 = vmatprep.subr.mxu0 0.0
    %1244 = vmatpush1.msra.mxu0 0.0
    %1245 = vmatprep.subr.mxu0 0.0
    %1246 = vmatpush1.msra.mxu0 0.0
    %1247 = vmatprep.subr.mxu0 0.0
    %1248 = vmatpush1.msra.mxu0 0.0
    %1249 = vmatprep.subr.mxu0 0.0
    %1250 = vmatpush1.msra.mxu0 0.0
    %1251 = vmatprep.subr.mxu0 0.0
    %1252 = vmatpush1.msra.mxu0 0.0
    %1253 = vmatprep.subr.mxu0 0.0
    %1254 = vmatpush1.msra.mxu0 0.0
    %1255 = vmatprep.subr.mxu0 0.0
    %1256 = vmatpush1.msra.mxu0 0.0
    %1257 = vmatprep.subr.mxu0 0.0
    %1258 = vmatpush1.msra.mxu0 0.0
    %1259 = vmatprep.subr.mxu0 0.0
    %1260 = vmatpush1.msra.mxu0 0.0
    %1261 = vmatprep.subr.mxu0 0.0
    %1262 = vmatpush1.msra.mxu0 0.0
    %1263 = vmatprep.subr.mxu0 0.0
    %1264 = vmatpush1.msra.mxu0 0.0
    %1265 = vmatprep.subr.mxu0 0.0
    %1266 = vmatpush1.msra.mxu0 0.0
    %1267 = vmatprep.subr.mxu0 0.0
    %1268 = vmatpush1.msra.mxu0 0.0
    %1269 = vmatprep.subr.mxu0 0.0
    %1270 = vmatpush1.msra.mxu0 0.0
    %1271 = vmatprep.subr.mxu0 0.0
    %1272 = vmatpush1.msra.mxu0 0.0
    %1273 = vmatprep.subr.mxu0 0.0
    %1274 = vmatpush1.msra.mxu0 0.0
    %1275 = vmatprep.mubr.f32.mxu0 0.0
    %1276 = vmatmul.mubr.f32.gmra.mrb[0].mxu0 %v1209
    %v1277 = vpop.f32.mrb[0].mxu0
    %v1278 = vadd.f32 0.0, %v1277
    %v1279 = vpop.f32.mrb[0].mxu0
    %1280 = vdwg.mxu0
    %v1281 = vadd.f32 %v1208, %v1278
    %v1282 = vxor.u32 %v1281, 2147483648
    %v1283 = vmul.f32 %v1282, 1.442695
    %v1284 = vpow.pop %v1283
    %v1285 = vadd.f32 %v1284, 1.0
    %v1286 = vrcp.pop %v1285
    %v1287 = vmul.f32 1.0, %v1286
    %v1288 = vtanh.pop %v1281
    %v1289 = vmul.f32 %v1287, %v1195
    %1291 = vrot.lane.b32.xlu0 %v1288, 32
    %v1292 = vpop.permute.xlu0 %1291
    %v1294 = vmul.f32 %v1287, %v1292
    %1296 = vrot.lane.b32.xlu0 %v1294, 32
    %v1297 = vpop.permute.xlu0 %1296
    %v1299 = vadd.f32 %v1289, %v1297
    %v1300 = vtanh.pop %v1299
    %1302 = vrot.lane.b32.xlu0 %v1300, 32
    %v1303 = vpop.permute.xlu0 %1302
    %v1305 = vmul.f32 %v1287, %v1303
    %1307 = vrot.lane.b32.xlu0 %v1305, 64
    %v1308 = vpop.permute.xlu0 %1307
    %s1310 = scalar_lea.vmem [#allocation3], 10
    %1311 = vst.msk [vmem:[%s1310] sm:$0x3] %vm790, %v1308
    %v1312 = vld [vmem:[%s597] sm:$0x3]
    %v1313 = vsel %vm683, %v1308, 0
    %1315 = vmatprep.subr.mxu0 0.0
    %1316 = vmatpush1.msra.mxu0 %v676
    %1317 = vmatprep.subr.mxu0 0.0
    %1318 = vmatpush1.msra.mxu0 %v677
    %1319 = vmatprep.subr.mxu0 0.0
    %1320 = vmatpush1.msra.mxu0 %v678
    %1321 = vmatprep.subr.mxu0 0.0
    %1322 = vmatpush1.msra.mxu0 %v679
    %1323 = vmatprep.subr.mxu0 0.0
    %1324 = vmatpush1.msra.mxu0 0.0
    %1325 = vmatprep.subr.mxu0 0.0
    %1326 = vmatpush1.msra.mxu0 0.0
    %1327 = vmatprep.subr.mxu0 0.0
    %1328 = vmatpush1.msra.mxu0 0.0
    %1329 = vmatprep.subr.mxu0 0.0
    %1330 = vmatpush1.msra.mxu0 0.0
    %1331 = vmatprep.subr.mxu0 0.0
    %1332 = vmatpush1.msra.mxu0 0.0
    %1333 = vmatprep.subr.mxu0 0.0
    %1334 = vmatpush1.msra.mxu0 0.0
    %1335 = vmatprep.subr.mxu0 0.0
    %1336 = vmatpush1.msra.mxu0 0.0
    %1337 = vmatprep.subr.mxu0 0.0
    %1338 = vmatpush1.msra.mxu0 0.0
    %1339 = vmatprep.subr.mxu0 0.0
    %1340 = vmatpush1.msra.mxu0 0.0
    %1341 = vmatprep.subr.mxu0 0.0
    %1342 = vmatpush1.msra.mxu0 0.0
    %1343 = vmatprep.subr.mxu0 0.0
    %1344 = vmatpush1.msra.mxu0 0.0
    %1345 = vmatprep.subr.mxu0 0.0
    %1346 = vmatpush1.msra.mxu0 0.0
    %1347 = vmatprep.subr.mxu0 0.0
    %1348 = vmatpush1.msra.mxu0 0.0
    %1349 = vmatprep.subr.mxu0 0.0
    %1350 = vmatpush1.msra.mxu0 0.0
    %1351 = vmatprep.subr.mxu0 0.0
    %1352 = vmatpush1.msra.mxu0 0.0
    %1353 = vmatprep.subr.mxu0 0.0
    %1354 = vmatpush1.msra.mxu0 0.0
    %1355 = vmatprep.subr.mxu0 0.0
    %1356 = vmatpush1.msra.mxu0 0.0
    %1357 = vmatprep.subr.mxu0 0.0
    %1358 = vmatpush1.msra.mxu0 0.0
    %1359 = vmatprep.subr.mxu0 0.0
    %1360 = vmatpush1.msra.mxu0 0.0
    %1361 = vmatprep.subr.mxu0 0.0
    %1362 = vmatpush1.msra.mxu0 0.0
    %1363 = vmatprep.subr.mxu0 0.0
    %1364 = vmatpush1.msra.mxu0 0.0
    %1365 = vmatprep.subr.mxu0 0.0
    %1366 = vmatpush1.msra.mxu0 0.0
    %1367 = vmatprep.subr.mxu0 0.0
    %1368 = vmatpush1.msra.mxu0 0.0
    %1369 = vmatprep.subr.mxu0 0.0
    %1370 = vmatpush1.msra.mxu0 0.0
    %1371 = vmatprep.subr.mxu0 0.0
    %1372 = vmatpush1.msra.mxu0 0.0
    %1373 = vmatprep.subr.mxu0 0.0
    %1374 = vmatpush1.msra.mxu0 0.0
    %1375 = vmatprep.subr.mxu0 0.0
    %1376 = vmatpush1.msra.mxu0 0.0
    %1377 = vmatprep.subr.mxu0 0.0
    %1378 = vmatpush1.msra.mxu0 0.0
    %1379 = vmatprep.mubr.f32.mxu0 0.0
    %1380 = vmatmul.mubr.f32.gmra.mrb[0].mxu0 %v1313
    %v1381 = vpop.f32.mrb[0].mxu0
    %v1382 = vadd.f32 0.0, %v1381
    %v1383 = vpop.f32.mrb[0].mxu0
    %1384 = vdwg.mxu0
    %v1385 = vadd.f32 %v1312, %v1382
    %v1386 = vxor.u32 %v1385, 2147483648
    %v1387 = vmul.f32 %v1386, 1.442695
    %v1388 = vpow.pop %v1387
    %v1389 = vadd.f32 %v1388, 1.0
    %v1390 = vrcp.pop %v1389
    %v1391 = vmul.f32 1.0, %v1390
    %v1392 = vtanh.pop %v1385
    %v1393 = vmul.f32 %v1391, %v1299
    %1395 = vrot.lane.b32.xlu0 %v1392, 32
    %v1396 = vpop.permute.xlu0 %1395
    %v1398 = vmul.f32 %v1391, %v1396
    %1400 = vrot.lane.b32.xlu0 %v1398, 32
    %v1401 = vpop.permute.xlu0 %1400
    %v1403 = vadd.f32 %v1393, %v1401
    %v1404 = vtanh.pop %v1403
    %1406 = vrot.lane.b32.xlu0 %v1404, 32
    %v1407 = vpop.permute.xlu0 %1406
    %v1409 = vmul.f32 %v1391, %v1407
    %1411 = vrot.lane.b32.xlu0 %v1409, 64
    %v1412 = vpop.permute.xlu0 %1411
    %s1414 = scalar_lea.vmem [#allocation3], 12
    %1415 = vst.msk [vmem:[%s1414] sm:$0x3] %vm790, %v1412
    %v1416 = vld [vmem:[%s674] sm:$0x3]
    %v1417 = vsel %vm683, %v1412, 0
    %1419 = vmatprep.subr.mxu0 0.0
    %1420 = vmatpush1.msra.mxu0 %v676
    %1421 = vmatprep.subr.mxu0 0.0
    %1422 = vmatpush1.msra.mxu0 %v677
    %1423 = vmatprep.subr.mxu0 0.0
    %1424 = vmatpush1.msra.mxu0 %v678
    %1425 = vmatprep.subr.mxu0 0.0
    %1426 = vmatpush1.msra.mxu0 %v679
    %1427 = vmatprep.subr.mxu0 0.0
    %1428 = vmatpush1.msra.mxu0 0.0
    %1429 = vmatprep.subr.mxu0 0.0
    %1430 = vmatpush1.msra.mxu0 0.0
    %1431 = vmatprep.subr.mxu0 0.0
    %1432 = vmatpush1.msra.mxu0 0.0
    %1433 = vmatprep.subr.mxu0 0.0
    %1434 = vmatpush1.msra.mxu0 0.0
    %1435 = vmatprep.subr.mxu0 0.0
    %1436 = vmatpush1.msra.mxu0 0.0
    %1437 = vmatprep.subr.mxu0 0.0
    %1438 = vmatpush1.msra.mxu0 0.0
    %1439 = vmatprep.subr.mxu0 0.0
    %1440 = vmatpush1.msra.mxu0 0.0
    %1441 = vmatprep.subr.mxu0 0.0
    %1442 = vmatpush1.msra.mxu0 0.0
    %1443 = vmatprep.subr.mxu0 0.0
    %1444 = vmatpush1.msra.mxu0 0.0
    %1445 = vmatprep.subr.mxu0 0.0
    %1446 = vmatpush1.msra.mxu0 0.0
    %1447 = vmatprep.subr.mxu0 0.0
    %1448 = vmatpush1.msra.mxu0 0.0
    %1449 = vmatprep.subr.mxu0 0.0
    %1450 = vmatpush1.msra.mxu0 0.0
    %1451 = vmatprep.subr.mxu0 0.0
    %1452 = vmatpush1.msra.mxu0 0.0
    %1453 = vmatprep.subr.mxu0 0.0
    %1454 = vmatpush1.msra.mxu0 0.0
    %1455 = vmatprep.subr.mxu0 0.0
    %1456 = vmatpush1.msra.mxu0 0.0
    %1457 = vmatprep.subr.mxu0 0.0
    %1458 = vmatpush1.msra.mxu0 0.0
    %1459 = vmatprep.subr.mxu0 0.0
    %1460 = vmatpush1.msra.mxu0 0.0
    %1461 = vmatprep.subr.mxu0 0.0
    %1462 = vmatpush1.msra.mxu0 0.0
    %1463 = vmatprep.subr.mxu0 0.0
    %1464 = vmatpush1.msra.mxu0 0.0
    %1465 = vmatprep.subr.mxu0 0.0
    %1466 = vmatpush1.msra.mxu0 0.0
    %1467 = vmatprep.subr.mxu0 0.0
    %1468 = vmatpush1.msra.mxu0 0.0
    %1469 = vmatprep.subr.mxu0 0.0
    %1470 = vmatpush1.msra.mxu0 0.0
    %1471 = vmatprep.subr.mxu0 0.0
    %1472 = vmatpush1.msra.mxu0 0.0
    %1473 = vmatprep.subr.mxu0 0.0
    %1474 = vmatpush1.msra.mxu0 0.0
    %1475 = vmatprep.subr.mxu0 0.0
    %1476 = vmatpush1.msra.mxu0 0.0
    %1477 = vmatprep.subr.mxu0 0.0
    %1478 = vmatpush1.msra.mxu0 0.0
    %1479 = vmatprep.subr.mxu0 0.0
    %1480 = vmatpush1.msra.mxu0 0.0
    %1481 = vmatprep.subr.mxu0 0.0
    %1482 = vmatpush1.msra.mxu0 0.0
    %1483 = vmatprep.mubr.f32.mxu0 0.0
    %1484 = vmatmul.mubr.f32.gmra.mrb[0].mxu0 %v1417
    %v1485 = vpop.f32.mrb[0].mxu0
    %v1486 = vadd.f32 0.0, %v1485
    %v1487 = vpop.f32.mrb[0].mxu0
    %1488 = vdwg.mxu0
    %v1489 = vadd.f32 %v1416, %v1486
    %v1490 = vxor.u32 %v1489, 2147483648
    %v1491 = vmul.f32 %v1490, 1.442695
    %v1492 = vpow.pop %v1491
    %v1493 = vadd.f32 %v1492, 1.0
    %v1494 = vrcp.pop %v1493
    %v1495 = vmul.f32 1.0, %v1494
    %v1496 = vtanh.pop %v1489
    %v1497 = vmul.f32 %v1495, %v1403
    %1499 = vrot.lane.b32.xlu0 %v1496, 32
    %v1500 = vpop.permute.xlu0 %1499
    %v1502 = vmul.f32 %v1495, %v1500
    %1504 = vrot.lane.b32.xlu0 %v1502, 32
    %v1505 = vpop.permute.xlu0 %1504
    %v1507 = vadd.f32 %v1497, %v1505
    %v1508 = vtanh.pop %v1507
    %1510 = vrot.lane.b32.xlu0 %v1508, 32
    %v1511 = vpop.permute.xlu0 %1510
    %v1513 = vmul.f32 %v1495, %v1511
    %1515 = vrot.lane.b32.xlu0 %v1513, 64
    %v1516 = vpop.permute.xlu0 %1515
    %s1518 = scalar_lea.vmem [#allocation3], 14
    %1519 = vst.msk [vmem:[%s1518] sm:$0x3] %vm790, %v1516
    %1520 = vst.msk [vmem:[#allocation7] sm:$0x3] %vm790, %v1516
    %1522 = vrot.lane.b32.xlu0 %v1507, 96
    %v1523 = vpop.permute.xlu0 %1522
    %1525 = vst.msk [vmem:[#allocation8] sm:$0x3] %vm790, %v1523
    %s1526 = scalar_lea.vmem %s4, 1
    %v1527 = vld [vmem:[%s1526] sm:$0x1]
    %v1528 = vld [vmem:[#allocation4] sm:$0xff]
    %v1529 = vld [vmem:[#allocation4 + $0x8] sm:$0xff]
    %v1530 = vld [vmem:[#allocation4 + $0x10] sm:$0xff]
    %v1531 = vld [vmem:[#allocation4 + $0x18] sm:$0xff]
    %v1532 = vld [vmem:[#allocation3] sm:$0x3]
    %v1534 = vlaneseq
    %v1535 = vshrl.u32 %v1534, 7
    %v1536 = vsub.s32 0, %v1535
    %v1537 = vrot.slane %v1527, %v1536
    %v1540 = vsel %vm683, %v1532, 0
    %1542 = vmatprep.subr.mxu0 0.0
    %1543 = vmatpush1.msra.mxu0 %v1528
    %1544 = vmatprep.subr.mxu0 0.0
    %1545 = vmatpush1.msra.mxu0 %v1529
    %1546 = vmatprep.subr.mxu0 0.0
    %1547 = vmatpush1.msra.mxu0 %v1530
    %1548 = vmatprep.subr.mxu0 0.0
    %1549 = vmatpush1.msra.mxu0 %v1531
    %1550 = vmatprep.subr.mxu0 0.0
    %1551 = vmatpush1.msra.mxu0 0.0
    %1552 = vmatprep.subr.mxu0 0.0
    %1553 = vmatpush1.msra.mxu0 0.0
    %1554 = vmatprep.subr.mxu0 0.0
    %1555 = vmatpush1.msra.mxu0 0.0
    %1556 = vmatprep.subr.mxu0 0.0
    %1557 = vmatpush1.msra.mxu0 0.0
    %1558 = vmatprep.subr.mxu0 0.0
    %1559 = vmatpush1.msra.mxu0 0.0
    %1560 = vmatprep.subr.mxu0 0.0
    %1561 = vmatpush1.msra.mxu0 0.0
    %1562 = vmatprep.subr.mxu0 0.0
    %1563 = vmatpush1.msra.mxu0 0.0
    %1564 = vmatprep.subr.mxu0 0.0
    %1565 = vmatpush1.msra.mxu0 0.0
    %1566 = vmatprep.subr.mxu0 0.0
    %1567 = vmatpush1.msra.mxu0 0.0
    %1568 = vmatprep.subr.mxu0 0.0
    %1569 = vmatpush1.msra.mxu0 0.0
    %1570 = vmatprep.subr.mxu0 0.0
    %1571 = vmatpush1.msra.mxu0 0.0
    %1572 = vmatprep.subr.mxu0 0.0
    %1573 = vmatpush1.msra.mxu0 0.0
    %1574 = vmatprep.subr.mxu0 0.0
    %1575 = vmatpush1.msra.mxu0 0.0
    %1576 = vmatprep.subr.mxu0 0.0
    %1577 = vmatpush1.msra.mxu0 0.0
    %1578 = vmatprep.subr.mxu0 0.0
    %1579 = vmatpush1.msra.mxu0 0.0
    %1580 = vmatprep.subr.mxu0 0.0
    %1581 = vmatpush1.msra.mxu0 0.0
    %1582 = vmatprep.subr.mxu0 0.0
    %1583 = vmatpush1.msra.mxu0 0.0
    %1584 = vmatprep.subr.mxu0 0.0
    %1585 = vmatpush1.msra.mxu0 0.0
    %1586 = vmatprep.subr.mxu0 0.0
    %1587 = vmatpush1.msra.mxu0 0.0
    %1588 = vmatprep.subr.mxu0 0.0
    %1589 = vmatpush1.msra.mxu0 0.0
    %1590 = vmatprep.subr.mxu0 0.0
    %1591 = vmatpush1.msra.mxu0 0.0
    %1592 = vmatprep.subr.mxu0 0.0
    %1593 = vmatpush1.msra.mxu0 0.0
    %1594 = vmatprep.subr.mxu0 0.0
    %1595 = vmatpush1.msra.mxu0 0.0
    %1596 = vmatprep.subr.mxu0 0.0
    %1597 = vmatpush1.msra.mxu0 0.0
    %1598 = vmatprep.subr.mxu0 0.0
    %1599 = vmatpush1.msra.mxu0 0.0
    %1600 = vmatprep.subr.mxu0 0.0
    %1601 = vmatpush1.msra.mxu0 0.0
    %1602 = vmatprep.subr.mxu0 0.0
    %1603 = vmatpush1.msra.mxu0 0.0
    %1604 = vmatprep.subr.mxu0 0.0
    %1605 = vmatpush1.msra.mxu0 0.0
    %1606 = vmatprep.mubr.f32.mxu0 0.0
    %1607 = vmatmul.mubr.f32.gmra.mrb[0].mxu0 %v1540
    %v1608 = vpop.f32.mrb[0].mxu0
    %v1609 = vadd.f32 %v1537, %v1608
    %v1610 = vpop.f32.mrb[0].mxu0
    %1611 = vdwg.mxu0
    %1612 = vst [vmem:[#allocation2] sm:$0x3] %v1609
    %v1613 = vld [vmem:[%s894] sm:$0x3]
    %v1615 = vsel %vm683, %v1613, 0
    %1617 = vmatprep.subr.mxu0 0.0
    %1618 = vmatpush1.msra.mxu0 %v1528
    %1619 = vmatprep.subr.mxu0 0.0
    %1620 = vmatpush1.msra.mxu0 %v1529
    %1621 = vmatprep.subr.mxu0 0.0
    %1622 = vmatpush1.msra.mxu0 %v1530
    %1623 = vmatprep.subr.mxu0 0.0
    %1624 = vmatpush1.msra.mxu0 %v1531
    %1625 = vmatprep.subr.mxu0 0.0
    %1626 = vmatpush1.msra.mxu0 0.0
    %1627 = vmatprep.subr.mxu0 0.0
    %1628 = vmatpush1.msra.mxu0 0.0
    %1629 = vmatprep.subr.mxu0 0.0
    %1630 = vmatpush1.msra.mxu0 0.0
    %1631 = vmatprep.subr.mxu0 0.0
    %1632 = vmatpush1.msra.mxu0 0.0
    %1633 = vmatprep.subr.mxu0 0.0
    %1634 = vmatpush1.msra.mxu0 0.0
    %1635 = vmatprep.subr.mxu0 0.0
    %1636 = vmatpush1.msra.mxu0 0.0
    %1637 = vmatprep.subr.mxu0 0.0
    %1638 = vmatpush1.msra.mxu0 0.0
    %1639 = vmatprep.subr.mxu0 0.0
    %1640 = vmatpush1.msra.mxu0 0.0
    %1641 = vmatprep.subr.mxu0 0.0
    %1642 = vmatpush1.msra.mxu0 0.0
    %1643 = vmatprep.subr.mxu0 0.0
    %1644 = vmatpush1.msra.mxu0 0.0
    %1645 = vmatprep.subr.mxu0 0.0
    %1646 = vmatpush1.msra.mxu0 0.0
    %1647 = vmatprep.subr.mxu0 0.0
    %1648 = vmatpush1.msra.mxu0 0.0
    %1649 = vmatprep.subr.mxu0 0.0
    %1650 = vmatpush1.msra.mxu0 0.0
    %1651 = vmatprep.subr.mxu0 0.0
    %1652 = vmatpush1.msra.mxu0 0.0
    %1653 = vmatprep.subr.mxu0 0.0
    %1654 = vmatpush1.msra.mxu0 0.0
    %1655 = vmatprep.subr.mxu0 0.0
    %1656 = vmatpush1.msra.mxu0 0.0
    %1657 = vmatprep.subr.mxu0 0.0
    %1658 = vmatpush1.msra.mxu0 0.0
    %1659 = vmatprep.subr.mxu0 0.0
    %1660 = vmatpush1.msra.mxu0 0.0
    %1661 = vmatprep.subr.mxu0 0.0
    %1662 = vmatpush1.msra.mxu0 0.0
    %1663 = vmatprep.subr.mxu0 0.0
    %1664 = vmatpush1.msra.mxu0 0.0
    %1665 = vmatprep.subr.mxu0 0.0
    %1666 = vmatpush1.msra.mxu0 0.0
    %1667 = vmatprep.subr.mxu0 0.0
    %1668 = vmatpush1.msra.mxu0 0.0
    %1669 = vmatprep.subr.mxu0 0.0
    %1670 = vmatpush1.msra.mxu0 0.0
    %1671 = vmatprep.subr.mxu0 0.0
    %1672 = vmatpush1.msra.mxu0 0.0
    %1673 = vmatprep.subr.mxu0 0.0
    %1674 = vmatpush1.msra.mxu0 0.0
    %1675 = vmatprep.subr.mxu0 0.0
    %1676 = vmatpush1.msra.mxu0 0.0
    %1677 = vmatprep.subr.mxu0 0.0
    %1678 = vmatpush1.msra.mxu0 0.0
    %1679 = vmatprep.subr.mxu0 0.0
    %1680 = vmatpush1.msra.mxu0 0.0
    %1681 = vmatprep.mubr.f32.mxu0 0.0
    %1682 = vmatmul.mubr.f32.gmra.mrb[0].mxu0 %v1615
    %v1683 = vpop.f32.mrb[0].mxu0
    %v1684 = vadd.f32 %v1537, %v1683
    %v1685 = vpop.f32.mrb[0].mxu0
    %1686 = vdwg.mxu0
    %1687 = vst [vmem:[%s212] sm:$0x3] %v1684
    %v1688 = vld [vmem:[%s998] sm:$0x3]
    %v1690 = vsel %vm683, %v1688, 0
    %1692 = vmatprep.subr.mxu0 0.0
    %1693 = vmatpush1.msra.mxu0 %v1528
    %1694 = vmatprep.subr.mxu0 0.0
    %1695 = vmatpush1.msra.mxu0 %v1529
    %1696 = vmatprep.subr.mxu0 0.0
    %1697 = vmatpush1.msra.mxu0 %v1530
    %1698 = vmatprep.subr.mxu0 0.0
    %1699 = vmatpush1.msra.mxu0 %v1531
    %1700 = vmatprep.subr.mxu0 0.0
    %1701 = vmatpush1.msra.mxu0 0.0
    %1702 = vmatprep.subr.mxu0 0.0
    %1703 = vmatpush1.msra.mxu0 0.0
    %1704 = vmatprep.subr.mxu0 0.0
    %1705 = vmatpush1.msra.mxu0 0.0
    %1706 = vmatprep.subr.mxu0 0.0
    %1707 = vmatpush1.msra.mxu0 0.0
    %1708 = vmatprep.subr.mxu0 0.0
    %1709 = vmatpush1.msra.mxu0 0.0
    %1710 = vmatprep.subr.mxu0 0.0
    %1711 = vmatpush1.msra.mxu0 0.0
    %1712 = vmatprep.subr.mxu0 0.0
    %1713 = vmatpush1.msra.mxu0 0.0
    %1714 = vmatprep.subr.mxu0 0.0
    %1715 = vmatpush1.msra.mxu0 0.0
    %1716 = vmatprep.subr.mxu0 0.0
    %1717 = vmatpush1.msra.mxu0 0.0
    %1718 = vmatprep.subr.mxu0 0.0
    %1719 = vmatpush1.msra.mxu0 0.0
    %1720 = vmatprep.subr.mxu0 0.0
    %1721 = vmatpush1.msra.mxu0 0.0
    %1722 = vmatprep.subr.mxu0 0.0
    %1723 = vmatpush1.msra.mxu0 0.0
    %1724 = vmatprep.subr.mxu0 0.0
    %1725 = vmatpush1.msra.mxu0 0.0
    %1726 = vmatprep.subr.mxu0 0.0
    %1727 = vmatpush1.msra.mxu0 0.0
    %1728 = vmatprep.subr.mxu0 0.0
    %1729 = vmatpush1.msra.mxu0 0.0
    %1730 = vmatprep.subr.mxu0 0.0
    %1731 = vmatpush1.msra.mxu0 0.0
    %1732 = vmatprep.subr.mxu0 0.0
    %1733 = vmatpush1.msra.mxu0 0.0
    %1734 = vmatprep.subr.mxu0 0.0
    %1735 = vmatpush1.msra.mxu0 0.0
    %1736 = vmatprep.subr.mxu0 0.0
    %1737 = vmatpush1.msra.mxu0 0.0
    %1738 = vmatprep.subr.mxu0 0.0
    %1739 = vmatpush1.msra.mxu0 0.0
    %1740 = vmatprep.subr.mxu0 0.0
    %1741 = vmatpush1.msra.mxu0 0.0
    %1742 = vmatprep.subr.mxu0 0.0
    %1743 = vmatpush1.msra.mxu0 0.0
    %1744 = vmatprep.subr.mxu0 0.0
    %1745 = vmatpush1.msra.mxu0 0.0
    %1746 = vmatprep.subr.mxu0 0.0
    %1747 = vmatpush1.msra.mxu0 0.0
    %1748 = vmatprep.subr.mxu0 0.0
    %1749 = vmatpush1.msra.mxu0 0.0
    %1750 = vmatprep.subr.mxu0 0.0
    %1751 = vmatpush1.msra.mxu0 0.0
    %1752 = vmatprep.subr.mxu0 0.0
    %1753 = vmatpush1.msra.mxu0 0.0
    %1754 = vmatprep.subr.mxu0 0.0
    %1755 = vmatpush1.msra.mxu0 0.0
    %1756 = vmatprep.mubr.f32.mxu0 0.0
    %1757 = vmatmul.mubr.f32.gmra.mrb[0].mxu0 %v1690
    %v1758 = vpop.f32.mrb[0].mxu0
    %v1759 = vadd.f32 %v1537, %v1758
    %v1760 = vpop.f32.mrb[0].mxu0
    %1761 = vdwg.mxu0
    %1762 = vst [vmem:[%s289] sm:$0x3] %v1759
    %v1763 = vld [vmem:[%s1102] sm:$0x3]
    %v1765 = vsel %vm683, %v1763, 0
    %1767 = vmatprep.subr.mxu0 0.0
    %1768 = vmatpush1.msra.mxu0 %v1528
    %1769 = vmatprep.subr.mxu0 0.0
    %1770 = vmatpush1.msra.mxu0 %v1529
    %1771 = vmatprep.subr.mxu0 0.0
    %1772 = vmatpush1.msra.mxu0 %v1530
    %1773 = vmatprep.subr.mxu0 0.0
    %1774 = vmatpush1.msra.mxu0 %v1531
    %1775 = vmatprep.subr.mxu0 0.0
    %1776 = vmatpush1.msra.mxu0 0.0
    %1777 = vmatprep.subr.mxu0 0.0
    %1778 = vmatpush1.msra.mxu0 0.0
    %1779 = vmatprep.subr.mxu0 0.0
    %1780 = vmatpush1.msra.mxu0 0.0
    %1781 = vmatprep.subr.mxu0 0.0
    %1782 = vmatpush1.msra.mxu0 0.0
    %1783 = vmatprep.subr.mxu0 0.0
    %1784 = vmatpush1.msra.mxu0 0.0
    %1785 = vmatprep.subr.mxu0 0.0
    %1786 = vmatpush1.msra.mxu0 0.0
    %1787 = vmatprep.subr.mxu0 0.0
    %1788 = vmatpush1.msra.mxu0 0.0
    %1789 = vmatprep.subr.mxu0 0.0
    %1790 = vmatpush1.msra.mxu0 0.0
    %1791 = vmatprep.subr.mxu0 0.0
    %1792 = vmatpush1.msra.mxu0 0.0
    %1793 = vmatprep.subr.mxu0 0.0
    %1794 = vmatpush1.msra.mxu0 0.0
    %1795 = vmatprep.subr.mxu0 0.0
    %1796 = vmatpush1.msra.mxu0 0.0
    %1797 = vmatprep.subr.mxu0 0.0
    %1798 = vmatpush1.msra.mxu0 0.0
    %1799 = vmatprep.subr.mxu0 0.0
    %1800 = vmatpush1.msra.mxu0 0.0
    %1801 = vmatprep.subr.mxu0 0.0
    %1802 = vmatpush1.msra.mxu0 0.0
    %1803 = vmatprep.subr.mxu0 0.0
    %1804 = vmatpush1.msra.mxu0 0.0
    %1805 = vmatprep.subr.mxu0 0.0
    %1806 = vmatpush1.msra.mxu0 0.0
    %1807 = vmatprep.subr.mxu0 0.0
    %1808 = vmatpush1.msra.mxu0 0.0
    %1809 = vmatprep.subr.mxu0 0.0
    %1810 = vmatpush1.msra.mxu0 0.0
    %1811 = vmatprep.subr.mxu0 0.0
    %1812 = vmatpush1.msra.mxu0 0.0
    %1813 = vmatprep.subr.mxu0 0.0
    %1814 = vmatpush1.msra.mxu0 0.0
    %1815 = vmatprep.subr.mxu0 0.0
    %1816 = vmatpush1.msra.mxu0 0.0
    %1817 = vmatprep.subr.mxu0 0.0
    %1818 = vmatpush1.msra.mxu0 0.0
    %1819 = vmatprep.subr.mxu0 0.0
    %1820 = vmatpush1.msra.mxu0 0.0
    %1821 = vmatprep.subr.mxu0 0.0
    %1822 = vmatpush1.msra.mxu0 0.0
    %1823 = vmatprep.subr.mxu0 0.0
    %1824 = vmatpush1.msra.mxu0 0.0
    %1825 = vmatprep.subr.mxu0 0.0
    %1826 = vmatpush1.msra.mxu0 0.0
    %1827 = vmatprep.subr.mxu0 0.0
    %1828 = vmatpush1.msra.mxu0 0.0
    %1829 = vmatprep.subr.mxu0 0.0
    %1830 = vmatpush1.msra.mxu0 0.0
    %1831 = vmatprep.mubr.f32.mxu0 0.0
    %1832 = vmatmul.mubr.f32.gmra.mrb[0].mxu0 %v1765
    %v1833 = vpop.f32.mrb[0].mxu0
    %v1834 = vadd.f32 %v1537, %v1833
    %v1835 = vpop.f32.mrb[0].mxu0
    %1836 = vdwg.mxu0
    %1837 = vst [vmem:[%s366] sm:$0x3] %v1834
    %v1838 = vld [vmem:[%s1206] sm:$0x3]
    %v1840 = vsel %vm683, %v1838, 0
    %1842 = vmatprep.subr.mxu0 0.0
    %1843 = vmatpush1.msra.mxu0 %v1528
    %1844 = vmatprep.subr.mxu0 0.0
    %1845 = vmatpush1.msra.mxu0 %v1529
    %1846 = vmatprep.subr.mxu0 0.0
    %1847 = vmatpush1.msra.mxu0 %v1530
    %1848 = vmatprep.subr.mxu0 0.0
    %1849 = vmatpush1.msra.mxu0 %v1531
    %1850 = vmatprep.subr.mxu0 0.0
    %1851 = vmatpush1.msra.mxu0 0.0
    %1852 = vmatprep.subr.mxu0 0.0
    %1853 = vmatpush1.msra.mxu0 0.0
    %1854 = vmatprep.subr.mxu0 0.0
    %1855 = vmatpush1.msra.mxu0 0.0
    %1856 = vmatprep.subr.mxu0 0.0
    %1857 = vmatpush1.msra.mxu0 0.0
    %1858 = vmatprep.subr.mxu0 0.0
    %1859 = vmatpush1.msra.mxu0 0.0
    %1860 = vmatprep.subr.mxu0 0.0
    %1861 = vmatpush1.msra.mxu0 0.0
    %1862 = vmatprep.subr.mxu0 0.0
    %1863 = vmatpush1.msra.mxu0 0.0
    %1864 = vmatprep.subr.mxu0 0.0
    %1865 = vmatpush1.msra.mxu0 0.0
    %1866 = vmatprep.subr.mxu0 0.0
    %1867 = vmatpush1.msra.mxu0 0.0
    %1868 = vmatprep.subr.mxu0 0.0
    %1869 = vmatpush1.msra.mxu0 0.0
    %1870 = vmatprep.subr.mxu0 0.0
    %1871 = vmatpush1.msra.mxu0 0.0
    %1872 = vmatprep.subr.mxu0 0.0
    %1873 = vmatpush1.msra.mxu0 0.0
    %1874 = vmatprep.subr.mxu0 0.0
    %1875 = vmatpush1.msra.mxu0 0.0
    %1876 = vmatprep.subr.mxu0 0.0
    %1877 = vmatpush1.msra.mxu0 0.0
    %1878 = vmatprep.subr.mxu0 0.0
    %1879 = vmatpush1.msra.mxu0 0.0
    %1880 = vmatprep.subr.mxu0 0.0
    %1881 = vmatpush1.msra.mxu0 0.0
    %1882 = vmatprep.subr.mxu0 0.0
    %1883 = vmatpush1.msra.mxu0 0.0
    %1884 = vmatprep.subr.mxu0 0.0
    %1885 = vmatpush1.msra.mxu0 0.0
    %1886 = vmatprep.subr.mxu0 0.0
    %1887 = vmatpush1.msra.mxu0 0.0
    %1888 = vmatprep.subr.mxu0 0.0
    %1889 = vmatpush1.msra.mxu0 0.0
    %1890 = vmatprep.subr.mxu0 0.0
    %1891 = vmatpush1.msra.mxu0 0.0
    %1892 = vmatprep.subr.mxu0 0.0
    %1893 = vmatpush1.msra.mxu0 0.0
    %1894 = vmatprep.subr.mxu0 0.0
    %1895 = vmatpush1.msra.mxu0 0.0
    %1896 = vmatprep.subr.mxu0 0.0
    %1897 = vmatpush1.msra.mxu0 0.0
    %1898 = vmatprep.subr.mxu0 0.0
    %1899 = vmatpush1.msra.mxu0 0.0
    %1900 = vmatprep.subr.mxu0 0.0
    %1901 = vmatpush1.msra.mxu0 0.0
    %1902 = vmatprep.subr.mxu0 0.0
    %1903 = vmatpush1.msra.mxu0 0.0
    %1904 = vmatprep.subr.mxu0 0.0
    %1905 = vmatpush1.msra.mxu0 0.0
    %1906 = vmatprep.mubr.f32.mxu0 0.0
    %1907 = vmatmul.mubr.f32.gmra.mrb[0].mxu0 %v1840
    %v1908 = vpop.f32.mrb[0].mxu0
    %v1909 = vadd.f32 %v1537, %v1908
    %v1910 = vpop.f32.mrb[0].mxu0
    %1911 = vdwg.mxu0
    %1912 = vst [vmem:[%s443] sm:$0x3] %v1909
    %v1913 = vld [vmem:[%s1310] sm:$0x3]
    %v1915 = vsel %vm683, %v1913, 0
    %1917 = vmatprep.subr.mxu0 0.0
    %1918 = vmatpush1.msra.mxu0 %v1528
    %1919 = vmatprep.subr.mxu0 0.0
    %1920 = vmatpush1.msra.mxu0 %v1529
    %1921 = vmatprep.subr.mxu0 0.0
    %1922 = vmatpush1.msra.mxu0 %v1530
    %1923 = vmatprep.subr.mxu0 0.0
    %1924 = vmatpush1.msra.mxu0 %v1531
    %1925 = vmatprep.subr.mxu0 0.0
    %1926 = vmatpush1.msra.mxu0 0.0
    %1927 = vmatprep.subr.mxu0 0.0
    %1928 = vmatpush1.msra.mxu0 0.0
    %1929 = vmatprep.subr.mxu0 0.0
    %1930 = vmatpush1.msra.mxu0 0.0
    %1931 = vmatprep.subr.mxu0 0.0
    %1932 = vmatpush1.msra.mxu0 0.0
    %1933 = vmatprep.subr.mxu0 0.0
    %1934 = vmatpush1.msra.mxu0 0.0
    %1935 = vmatprep.subr.mxu0 0.0
    %1936 = vmatpush1.msra.mxu0 0.0
    %1937 = vmatprep.subr.mxu0 0.0
    %1938 = vmatpush1.msra.mxu0 0.0
    %1939 = vmatprep.subr.mxu0 0.0
    %1940 = vmatpush1.msra.mxu0 0.0
    %1941 = vmatprep.subr.mxu0 0.0
    %1942 = vmatpush1.msra.mxu0 0.0
    %1943 = vmatprep.subr.mxu0 0.0
    %1944 = vmatpush1.msra.mxu0 0.0
    %1945 = vmatprep.subr.mxu0 0.0
    %1946 = vmatpush1.msra.mxu0 0.0
    %1947 = vmatprep.subr.mxu0 0.0
    %1948 = vmatpush1.msra.mxu0 0.0
    %1949 = vmatprep.subr.mxu0 0.0
    %1950 = vmatpush1.msra.mxu0 0.0
    %1951 = vmatprep.subr.mxu0 0.0
    %1952 = vmatpush1.msra.mxu0 0.0
    %1953 = vmatprep.subr.mxu0 0.0
    %1954 = vmatpush1.msra.mxu0 0.0
    %1955 = vmatprep.subr.mxu0 0.0
    %1956 = vmatpush1.msra.mxu0 0.0
    %1957 = vmatprep.subr.mxu0 0.0
    %1958 = vmatpush1.msra.mxu0 0.0
    %1959 = vmatprep.subr.mxu0 0.0
    %1960 = vmatpush1.msra.mxu0 0.0
    %1961 = vmatprep.subr.mxu0 0.0
    %1962 = vmatpush1.msra.mxu0 0.0
    %1963 = vmatprep.subr.mxu0 0.0
    %1964 = vmatpush1.msra.mxu0 0.0
    %1965 = vmatprep.subr.mxu0 0.0
    %1966 = vmatpush1.msra.mxu0 0.0
    %1967 = vmatprep.subr.mxu0 0.0
    %1968 = vmatpush1.msra.mxu0 0.0
    %1969 = vmatprep.subr.mxu0 0.0
    %1970 = vmatpush1.msra.mxu0 0.0
    %1971 = vmatprep.subr.mxu0 0.0
    %1972 = vmatpush1.msra.mxu0 0.0
    %1973 = vmatprep.subr.mxu0 0.0
    %1974 = vmatpush1.msra.mxu0 0.0
    %1975 = vmatprep.subr.mxu0 0.0
    %1976 = vmatpush1.msra.mxu0 0.0
    %1977 = vmatprep.subr.mxu0 0.0
    %1978 = vmatpush1.msra.mxu0 0.0
    %1979 = vmatprep.subr.mxu0 0.0
    %1980 = vmatpush1.msra.mxu0 0.0
    %1981 = vmatprep.mubr.f32.mxu0 0.0
    %1982 = vmatmul.mubr.f32.gmra.mrb[0].mxu0 %v1915
    %v1983 = vpop.f32.mrb[0].mxu0
    %v1984 = vadd.f32 %v1537, %v1983
    %v1985 = vpop.f32.mrb[0].mxu0
    %1986 = vdwg.mxu0
    %1987 = vst [vmem:[%s520] sm:$0x3] %v1984
    %v1988 = vld [vmem:[%s1414] sm:$0x3]
    %v1990 = vsel %vm683, %v1988, 0
    %1992 = vmatprep.subr.mxu0 0.0
    %1993 = vmatpush1.msra.mxu0 %v1528
    %1994 = vmatprep.subr.mxu0 0.0
    %1995 = vmatpush1.msra.mxu0 %v1529
    %1996 = vmatprep.subr.mxu0 0.0
    %1997 = vmatpush1.msra.mxu0 %v1530
    %1998 = vmatprep.subr.mxu0 0.0
    %1999 = vmatpush1.msra.mxu0 %v1531
    %2000 = vmatprep.subr.mxu0 0.0
    %2001 = vmatpush1.msra.mxu0 0.0
    %2002 = vmatprep.subr.mxu0 0.0
    %2003 = vmatpush1.msra.mxu0 0.0
    %2004 = vmatprep.subr.mxu0 0.0
    %2005 = vmatpush1.msra.mxu0 0.0
    %2006 = vmatprep.subr.mxu0 0.0
    %2007 = vmatpush1.msra.mxu0 0.0
    %2008 = vmatprep.subr.mxu0 0.0
    %2009 = vmatpush1.msra.mxu0 0.0
    %2010 = vmatprep.subr.mxu0 0.0
    %2011 = vmatpush1.msra.mxu0 0.0
    %2012 = vmatprep.subr.mxu0 0.0
    %2013 = vmatpush1.msra.mxu0 0.0
    %2014 = vmatprep.subr.mxu0 0.0
    %2015 = vmatpush1.msra.mxu0 0.0
    %2016 = vmatprep.subr.mxu0 0.0
    %2017 = vmatpush1.msra.mxu0 0.0
    %2018 = vmatprep.subr.mxu0 0.0
    %2019 = vmatpush1.msra.mxu0 0.0
    %2020 = vmatprep.subr.mxu0 0.0
    %2021 = vmatpush1.msra.mxu0 0.0
    %2022 = vmatprep.subr.mxu0 0.0
    %2023 = vmatpush1.msra.mxu0 0.0
    %2024 = vmatprep.subr.mxu0 0.0
    %2025 = vmatpush1.msra.mxu0 0.0
    %2026 = vmatprep.subr.mxu0 0.0
    %2027 = vmatpush1.msra.mxu0 0.0
    %2028 = vmatprep.subr.mxu0 0.0
    %2029 = vmatpush1.msra.mxu0 0.0
    %2030 = vmatprep.subr.mxu0 0.0
    %2031 = vmatpush1.msra.mxu0 0.0
    %2032 = vmatprep.subr.mxu0 0.0
    %2033 = vmatpush1.msra.mxu0 0.0
    %2034 = vmatprep.subr.mxu0 0.0
    %2035 = vmatpush1.msra.mxu0 0.0
    %2036 = vmatprep.subr.mxu0 0.0
    %2037 = vmatpush1.msra.mxu0 0.0
    %2038 = vmatprep.subr.mxu0 0.0
    %2039 = vmatpush1.msra.mxu0 0.0
    %2040 = vmatprep.subr.mxu0 0.0
    %2041 = vmatpush1.msra.mxu0 0.0
    %2042 = vmatprep.subr.mxu0 0.0
    %2043 = vmatpush1.msra.mxu0 0.0
    %2044 = vmatprep.subr.mxu0 0.0
    %2045 = vmatpush1.msra.mxu0 0.0
    %2046 = vmatprep.subr.mxu0 0.0
    %2047 = vmatpush1.msra.mxu0 0.0
    %2048 = vmatprep.subr.mxu0 0.0
    %2049 = vmatpush1.msra.mxu0 0.0
    %2050 = vmatprep.subr.mxu0 0.0
    %2051 = vmatpush1.msra.mxu0 0.0
    %2052 = vmatprep.subr.mxu0 0.0
    %2053 = vmatpush1.msra.mxu0 0.0
    %2054 = vmatprep.subr.mxu0 0.0
    %2055 = vmatpush1.msra.mxu0 0.0
    %2056 = vmatprep.mubr.f32.mxu0 0.0
    %2057 = vmatmul.mubr.f32.gmra.mrb[0].mxu0 %v1990
    %v2058 = vpop.f32.mrb[0].mxu0
    %v2059 = vadd.f32 %v1537, %v2058
    %v2060 = vpop.f32.mrb[0].mxu0
    %2061 = vdwg.mxu0
    %2062 = vst [vmem:[%s597] sm:$0x3] %v2059
    %v2063 = vld [vmem:[%s1518] sm:$0x3]
    %v2065 = vsel %vm683, %v2063, 0
    %2067 = vmatprep.subr.mxu0 0.0
    %2068 = vmatpush1.msra.mxu0 %v1528
    %2069 = vmatprep.subr.mxu0 0.0
    %2070 = vmatpush1.msra.mxu0 %v1529
    %2071 = vmatprep.subr.mxu0 0.0
    %2072 = vmatpush1.msra.mxu0 %v1530
    %2073 = vmatprep.subr.mxu0 0.0
    %2074 = vmatpush1.msra.mxu0 %v1531
    %2075 = vmatprep.subr.mxu0 0.0
    %2076 = vmatpush1.msra.mxu0 0.0
    %2077 = vmatprep.subr.mxu0 0.0
    %2078 = vmatpush1.msra.mxu0 0.0
    %2079 = vmatprep.subr.mxu0 0.0
    %2080 = vmatpush1.msra.mxu0 0.0
    %2081 = vmatprep.subr.mxu0 0.0
    %2082 = vmatpush1.msra.mxu0 0.0
    %2083 = vmatprep.subr.mxu0 0.0
    %2084 = vmatpush1.msra.mxu0 0.0
    %2085 = vmatprep.subr.mxu0 0.0
    %2086 = vmatpush1.msra.mxu0 0.0
    %2087 = vmatprep.subr.mxu0 0.0
    %2088 = vmatpush1.msra.mxu0 0.0
    %2089 = vmatprep.subr.mxu0 0.0
    %2090 = vmatpush1.msra.mxu0 0.0
    %2091 = vmatprep.subr.mxu0 0.0
    %2092 = vmatpush1.msra.mxu0 0.0
    %2093 = vmatprep.subr.mxu0 0.0
    %2094 = vmatpush1.msra.mxu0 0.0
    %2095 = vmatprep.subr.mxu0 0.0
    %2096 = vmatpush1.msra.mxu0 0.0
    %2097 = vmatprep.subr.mxu0 0.0
    %2098 = vmatpush1.msra.mxu0 0.0
    %2099 = vmatprep.subr.mxu0 0.0
    %2100 = vmatpush1.msra.mxu0 0.0
    %2101 = vmatprep.subr.mxu0 0.0
    %2102 = vmatpush1.msra.mxu0 0.0
    %2103 = vmatprep.subr.mxu0 0.0
    %2104 = vmatpush1.msra.mxu0 0.0
    %2105 = vmatprep.subr.mxu0 0.0
    %2106 = vmatpush1.msra.mxu0 0.0
    %2107 = vmatprep.subr.mxu0 0.0
    %2108 = vmatpush1.msra.mxu0 0.0
    %2109 = vmatprep.subr.mxu0 0.0
    %2110 = vmatpush1.msra.mxu0 0.0
    %2111 = vmatprep.subr.mxu0 0.0
    %2112 = vmatpush1.msra.mxu0 0.0
    %2113 = vmatprep.subr.mxu0 0.0
    %2114 = vmatpush1.msra.mxu0 0.0
    %2115 = vmatprep.subr.mxu0 0.0
    %2116 = vmatpush1.msra.mxu0 0.0
    %2117 = vmatprep.subr.mxu0 0.0
    %2118 = vmatpush1.msra.mxu0 0.0
    %2119 = vmatprep.subr.mxu0 0.0
    %2120 = vmatpush1.msra.mxu0 0.0
    %2121 = vmatprep.subr.mxu0 0.0
    %2122 = vmatpush1.msra.mxu0 0.0
    %2123 = vmatprep.subr.mxu0 0.0
    %2124 = vmatpush1.msra.mxu0 0.0
    %2125 = vmatprep.subr.mxu0 0.0
    %2126 = vmatpush1.msra.mxu0 0.0
    %2127 = vmatprep.subr.mxu0 0.0
    %2128 = vmatpush1.msra.mxu0 0.0
    %2129 = vmatprep.subr.mxu0 0.0
    %2130 = vmatpush1.msra.mxu0 0.0
    %2131 = vmatprep.mubr.f32.mxu0 0.0
    %2132 = vmatmul.mubr.f32.gmra.mrb[0].mxu0 %v2065
    %v2133 = vpop.f32.mrb[0].mxu0
    %v2134 = vadd.f32 %v1537, %v2133
    %v2135 = vpop.f32.mrb[0].mxu0
    %2136 = vdwg.mxu0
    %2137 = vst [vmem:[%s674] sm:$0x3] %v2134
    %s2138 = scalar_lea.vmem %s3, 32
    %v2139 = vld [vmem:[%s2138] sm:$0xff]
    %v2140 = vld [vmem:[%s2138 + $0x8] sm:$0xff]
    %v2141 = vld [vmem:[%s2138 + $0x10] sm:$0xff]
    %v2142 = vld [vmem:[%s2138 + $0x18] sm:$0xff]
    %s2143 = scalar_lea.vmem %s5, 2
    %v2144 = vld [vmem:[%s2143] sm:$0x3]
    %s2145 = scalar_lea.vmem %s6, 2
    %v2146 = vld [vmem:[%s2145] sm:$0x3]
    %v2147 = vld [vmem:[#allocation2] sm:$0x3]
    %v2149 = vsel %vm683, %v2144, 0
    %2151 = vmatprep.subr.mxu0 0.0
    %2152 = vmatpush1.msra.mxu0 %v2139
    %2153 = vmatprep.subr.mxu0 0.0
    %2154 = vmatpush1.msra.mxu0 %v2140
    %2155 = vmatprep.subr.mxu0 0.0
    %2156 = vmatpush1.msra.mxu0 %v2141
    %2157 = vmatprep.subr.mxu0 0.0
    %2158 = vmatpush1.msra.mxu0 %v2142
    %2159 = vmatprep.subr.mxu0 0.0
    %2160 = vmatpush1.msra.mxu0 0.0
    %2161 = vmatprep.subr.mxu0 0.0
    %2162 = vmatpush1.msra.mxu0 0.0
    %2163 = vmatprep.subr.mxu0 0.0
    %2164 = vmatpush1.msra.mxu0 0.0
    %2165 = vmatprep.subr.mxu0 0.0
    %2166 = vmatpush1.msra.mxu0 0.0
    %2167 = vmatprep.subr.mxu0 0.0
    %2168 = vmatpush1.msra.mxu0 0.0
    %2169 = vmatprep.subr.mxu0 0.0
    %2170 = vmatpush1.msra.mxu0 0.0
    %2171 = vmatprep.subr.mxu0 0.0
    %2172 = vmatpush1.msra.mxu0 0.0
    %2173 = vmatprep.subr.mxu0 0.0
    %2174 = vmatpush1.msra.mxu0 0.0
    %2175 = vmatprep.subr.mxu0 0.0
    %2176 = vmatpush1.msra.mxu0 0.0
    %2177 = vmatprep.subr.mxu0 0.0
    %2178 = vmatpush1.msra.mxu0 0.0
    %2179 = vmatprep.subr.mxu0 0.0
    %2180 = vmatpush1.msra.mxu0 0.0
    %2181 = vmatprep.subr.mxu0 0.0
    %2182 = vmatpush1.msra.mxu0 0.0
    %2183 = vmatprep.subr.mxu0 0.0
    %2184 = vmatpush1.msra.mxu0 0.0
    %2185 = vmatprep.subr.mxu0 0.0
    %2186 = vmatpush1.msra.mxu0 0.0
    %2187 = vmatprep.subr.mxu0 0.0
    %2188 = vmatpush1.msra.mxu0 0.0
    %2189 = vmatprep.subr.mxu0 0.0
    %2190 = vmatpush1.msra.mxu0 0.0
    %2191 = vmatprep.subr.mxu0 0.0
    %2192 = vmatpush1.msra.mxu0 0.0
    %2193 = vmatprep.subr.mxu0 0.0
    %2194 = vmatpush1.msra.mxu0 0.0
    %2195 = vmatprep.subr.mxu0 0.0
    %2196 = vmatpush1.msra.mxu0 0.0
    %2197 = vmatprep.subr.mxu0 0.0
    %2198 = vmatpush1.msra.mxu0 0.0
    %2199 = vmatprep.subr.mxu0 0.0
    %2200 = vmatpush1.msra.mxu0 0.0
    %2201 = vmatprep.subr.mxu0 0.0
    %2202 = vmatpush1.msra.mxu0 0.0
    %2203 = vmatprep.subr.mxu0 0.0
    %2204 = vmatpush1.msra.mxu0 0.0
    %2205 = vmatprep.subr.mxu0 0.0
    %2206 = vmatpush1.msra.mxu0 0.0
    %2207 = vmatprep.subr.mxu0 0.0
    %2208 = vmatpush1.msra.mxu0 0.0
    %2209 = vmatprep.subr.mxu0 0.0
    %2210 = vmatpush1.msra.mxu0 0.0
    %2211 = vmatprep.subr.mxu0 0.0
    %2212 = vmatpush1.msra.mxu0 0.0
    %2213 = vmatprep.subr.mxu0 0.0
    %2214 = vmatpush1.msra.mxu0 0.0
    %2215 = vmatprep.mubr.f32.mxu0 0.0
    %2216 = vmatmul.mubr.f32.gmra.mrb[0].mxu0 %v2149
    %v2217 = vpop.f32.mrb[0].mxu0
    %v2218 = vadd.f32 0.0, %v2217
    %v2219 = vpop.f32.mrb[0].mxu0
    %2220 = vdwg.mxu0
    %v2221 = vadd.f32 %v2147, %v2218
    %v2222 = vxor.u32 %v2221, 2147483648
    %v2223 = vmul.f32 %v2222, 1.442695
    %v2224 = vpow.pop %v2223
    %v2225 = vadd.f32 %v2224, 1.0
    %v2226 = vrcp.pop %v2225
    %v2227 = vmul.f32 1.0, %v2226
    %v2228 = vtanh.pop %v2221
    %2230 = vrot.lane.b32.xlu0 %v2146, 32
    %v2231 = vpop.permute.xlu0 %2230
    %v2233 = vmul.f32 %v2227, %v2231
    %2235 = vrot.lane.b32.xlu0 %v2228, 32
    %v2236 = vpop.permute.xlu0 %2235
    %v2238 = vmul.f32 %v2227, %v2236
    %2240 = vrot.lane.b32.xlu0 %v2238, 32
    %v2241 = vpop.permute.xlu0 %2240
    %v2243 = vadd.f32 %v2233, %v2241
    %v2244 = vtanh.pop %v2243
    %2246 = vrot.lane.b32.xlu0 %v2244, 32
    %v2247 = vpop.permute.xlu0 %2246
    %v2249 = vmul.f32 %v2227, %v2247
    %2251 = vrot.lane.b32.xlu0 %v2249, 64
    %v2252 = vpop.permute.xlu0 %2251
    %2254 = vst.msk [vmem:[%s7] sm:$0x3] %vm790, %v2252
    %v2255 = vld [vmem:[%s212] sm:$0x3]
    %v2256 = vsel %vm683, %v2252, 0
    %2258 = vmatprep.subr.mxu0 0.0
    %2259 = vmatpush1.msra.mxu0 %v2139
    %2260 = vmatprep.subr.mxu0 0.0
    %2261 = vmatpush1.msra.mxu0 %v2140
    %2262 = vmatprep.subr.mxu0 0.0
    %2263 = vmatpush1.msra.mxu0 %v2141
    %2264 = vmatprep.subr.mxu0 0.0
    %2265 = vmatpush1.msra.mxu0 %v2142
    %2266 = vmatprep.subr.mxu0 0.0
    %2267 = vmatpush1.msra.mxu0 0.0
    %2268 = vmatprep.subr.mxu0 0.0
    %2269 = vmatpush1.msra.mxu0 0.0
    %2270 = vmatprep.subr.mxu0 0.0
    %2271 = vmatpush1.msra.mxu0 0.0
    %2272 = vmatprep.subr.mxu0 0.0
    %2273 = vmatpush1.msra.mxu0 0.0
    %2274 = vmatprep.subr.mxu0 0.0
    %2275 = vmatpush1.msra.mxu0 0.0
    %2276 = vmatprep.subr.mxu0 0.0
    %2277 = vmatpush1.msra.mxu0 0.0
    %2278 = vmatprep.subr.mxu0 0.0
    %2279 = vmatpush1.msra.mxu0 0.0
    %2280 = vmatprep.subr.mxu0 0.0
    %2281 = vmatpush1.msra.mxu0 0.0
    %2282 = vmatprep.subr.mxu0 0.0
    %2283 = vmatpush1.msra.mxu0 0.0
    %2284 = vmatprep.subr.mxu0 0.0
    %2285 = vmatpush1.msra.mxu0 0.0
    %2286 = vmatprep.subr.mxu0 0.0
    %2287 = vmatpush1.msra.mxu0 0.0
    %2288 = vmatprep.subr.mxu0 0.0
    %2289 = vmatpush1.msra.mxu0 0.0
    %2290 = vmatprep.subr.mxu0 0.0
    %2291 = vmatpush1.msra.mxu0 0.0
    %2292 = vmatprep.subr.mxu0 0.0
    %2293 = vmatpush1.msra.mxu0 0.0
    %2294 = vmatprep.subr.mxu0 0.0
    %2295 = vmatpush1.msra.mxu0 0.0
    %2296 = vmatprep.subr.mxu0 0.0
    %2297 = vmatpush1.msra.mxu0 0.0
    %2298 = vmatprep.subr.mxu0 0.0
    %2299 = vmatpush1.msra.mxu0 0.0
    %2300 = vmatprep.subr.mxu0 0.0
    %2301 = vmatpush1.msra.mxu0 0.0
    %2302 = vmatprep.subr.mxu0 0.0
    %2303 = vmatpush1.msra.mxu0 0.0
    %2304 = vmatprep.subr.mxu0 0.0
    %2305 = vmatpush1.msra.mxu0 0.0
    %2306 = vmatprep.subr.mxu0 0.0
    %2307 = vmatpush1.msra.mxu0 0.0
    %2308 = vmatprep.subr.mxu0 0.0
    %2309 = vmatpush1.msra.mxu0 0.0
    %2310 = vmatprep.subr.mxu0 0.0
    %2311 = vmatpush1.msra.mxu0 0.0
    %2312 = vmatprep.subr.mxu0 0.0
    %2313 = vmatpush1.msra.mxu0 0.0
    %2314 = vmatprep.subr.mxu0 0.0
    %2315 = vmatpush1.msra.mxu0 0.0
    %2316 = vmatprep.subr.mxu0 0.0
    %2317 = vmatpush1.msra.mxu0 0.0
    %2318 = vmatprep.subr.mxu0 0.0
    %2319 = vmatpush1.msra.mxu0 0.0
    %2320 = vmatprep.subr.mxu0 0.0
    %2321 = vmatpush1.msra.mxu0 0.0
    %2322 = vmatprep.mubr.f32.mxu0 0.0
    %2323 = vmatmul.mubr.f32.gmra.mrb[0].mxu0 %v2256
    %v2324 = vpop.f32.mrb[0].mxu0
    %v2325 = vadd.f32 0.0, %v2324
    %v2326 = vpop.f32.mrb[0].mxu0
    %2327 = vdwg.mxu0
    %v2328 = vadd.f32 %v2255, %v2325
    %v2329 = vxor.u32 %v2328, 2147483648
    %v2330 = vmul.f32 %v2329, 1.442695
    %v2331 = vpow.pop %v2330
    %v2332 = vadd.f32 %v2331, 1.0
    %v2333 = vrcp.pop %v2332
    %v2334 = vmul.f32 1.0, %v2333
    %v2335 = vtanh.pop %v2328
    %v2336 = vmul.f32 %v2334, %v2243
    %2338 = vrot.lane.b32.xlu0 %v2335, 32
    %v2339 = vpop.permute.xlu0 %2338
    %v2341 = vmul.f32 %v2334, %v2339
    %2343 = vrot.lane.b32.xlu0 %v2341, 32
    %v2344 = vpop.permute.xlu0 %2343
    %v2346 = vadd.f32 %v2336, %v2344
    %v2347 = vtanh.pop %v2346
    %2349 = vrot.lane.b32.xlu0 %v2347, 32
    %v2350 = vpop.permute.xlu0 %2349
    %v2352 = vmul.f32 %v2334, %v2350
    %2354 = vrot.lane.b32.xlu0 %v2352, 64
    %v2355 = vpop.permute.xlu0 %2354
    %s2357 = scalar_lea.vmem %s7, 2
    %2358 = vst.msk [vmem:[%s2357] sm:$0x3] %vm790, %v2355
    %v2359 = vld [vmem:[%s289] sm:$0x3]
    %v2360 = vsel %vm683, %v2355, 0
    %2362 = vmatprep.subr.mxu0 0.0
    %2363 = vmatpush1.msra.mxu0 %v2139
    %2364 = vmatprep.subr.mxu0 0.0
    %2365 = vmatpush1.msra.mxu0 %v2140
    %2366 = vmatprep.subr.mxu0 0.0
    %2367 = vmatpush1.msra.mxu0 %v2141
    %2368 = vmatprep.subr.mxu0 0.0
    %2369 = vmatpush1.msra.mxu0 %v2142
    %2370 = vmatprep.subr.mxu0 0.0
    %2371 = vmatpush1.msra.mxu0 0.0
    %2372 = vmatprep.subr.mxu0 0.0
    %2373 = vmatpush1.msra.mxu0 0.0
    %2374 = vmatprep.subr.mxu0 0.0
    %2375 = vmatpush1.msra.mxu0 0.0
    %2376 = vmatprep.subr.mxu0 0.0
    %2377 = vmatpush1.msra.mxu0 0.0
    %2378 = vmatprep.subr.mxu0 0.0
    %2379 = vmatpush1.msra.mxu0 0.0
    %2380 = vmatprep.subr.mxu0 0.0
    %2381 = vmatpush1.msra.mxu0 0.0
    %2382 = vmatprep.subr.mxu0 0.0
    %2383 = vmatpush1.msra.mxu0 0.0
    %2384 = vmatprep.subr.mxu0 0.0
    %2385 = vmatpush1.msra.mxu0 0.0
    %2386 = vmatprep.subr.mxu0 0.0
    %2387 = vmatpush1.msra.mxu0 0.0
    %2388 = vmatprep.subr.mxu0 0.0
    %2389 = vmatpush1.msra.mxu0 0.0
    %2390 = vmatprep.subr.mxu0 0.0
    %2391 = vmatpush1.msra.mxu0 0.0
    %2392 = vmatprep.subr.mxu0 0.0
    %2393 = vmatpush1.msra.mxu0 0.0
    %2394 = vmatprep.subr.mxu0 0.0
    %2395 = vmatpush1.msra.mxu0 0.0
    %2396 = vmatprep.subr.mxu0 0.0
    %2397 = vmatpush1.msra.mxu0 0.0
    %2398 = vmatprep.subr.mxu0 0.0
    %2399 = vmatpush1.msra.mxu0 0.0
    %2400 = vmatprep.subr.mxu0 0.0
    %2401 = vmatpush1.msra.mxu0 0.0
    %2402 = vmatprep.subr.mxu0 0.0
    %2403 = vmatpush1.msra.mxu0 0.0
    %2404 = vmatprep.subr.mxu0 0.0
    %2405 = vmatpush1.msra.mxu0 0.0
    %2406 = vmatprep.subr.mxu0 0.0
    %2407 = vmatpush1.msra.mxu0 0.0
    %2408 = vmatprep.subr.mxu0 0.0
    %2409 = vmatpush1.msra.mxu0 0.0
    %2410 = vmatprep.subr.mxu0 0.0
    %2411 = vmatpush1.msra.mxu0 0.0
    %2412 = vmatprep.subr.mxu0 0.0
    %2413 = vmatpush1.msra.mxu0 0.0
    %2414 = vmatprep.subr.mxu0 0.0
    %2415 = vmatpush1.msra.mxu0 0.0
    %2416 = vmatprep.subr.mxu0 0.0
    %2417 = vmatpush1.msra.mxu0 0.0
    %2418 = vmatprep.subr.mxu0 0.0
    %2419 = vmatpush1.msra.mxu0 0.0
    %2420 = vmatprep.subr.mxu0 0.0
    %2421 = vmatpush1.msra.mxu0 0.0
    %2422 = vmatprep.subr.mxu0 0.0
    %2423 = vmatpush1.msra.mxu0 0.0
    %2424 = vmatprep.subr.mxu0 0.0
    %2425 = vmatpush1.msra.mxu0 0.0
    %2426 = vmatprep.mubr.f32.mxu0 0.0
    %2427 = vmatmul.mubr.f32.gmra.mrb[0].mxu0 %v2360
    %v2428 = vpop.f32.mrb[0].mxu0
    %v2429 = vadd.f32 0.0, %v2428
    %v2430 = vpop.f32.mrb[0].mxu0
    %2431 = vdwg.mxu0
    %v2432 = vadd.f32 %v2359, %v2429
    %v2433 = vxor.u32 %v2432, 2147483648
    %v2434 = vmul.f32 %v2433, 1.442695
    %v2435 = vpow.pop %v2434
    %v2436 = vadd.f32 %v2435, 1.0
    %v2437 = vrcp.pop %v2436
    %v2438 = vmul.f32 1.0, %v2437
    %v2439 = vtanh.pop %v2432
    %v2440 = vmul.f32 %v2438, %v2346
    %2442 = vrot.lane.b32.xlu0 %v2439, 32
    %v2443 = vpop.permute.xlu0 %2442
    %v2445 = vmul.f32 %v2438, %v2443
    %2447 = vrot.lane.b32.xlu0 %v2445, 32
    %v2448 = vpop.permute.xlu0 %2447
    %v2450 = vadd.f32 %v2440, %v2448
    %v2451 = vtanh.pop %v2450
    %2453 = vrot.lane.b32.xlu0 %v2451, 32
    %v2454 = vpop.permute.xlu0 %2453
    %v2456 = vmul.f32 %v2438, %v2454
    %2458 = vrot.lane.b32.xlu0 %v2456, 64
    %v2459 = vpop.permute.xlu0 %2458
    %s2461 = scalar_lea.vmem %s7, 4
    %2462 = vst.msk [vmem:[%s2461] sm:$0x3] %vm790, %v2459
    %v2463 = vld [vmem:[%s366] sm:$0x3]
    %v2464 = vsel %vm683, %v2459, 0
    %2466 = vmatprep.subr.mxu0 0.0
    %2467 = vmatpush1.msra.mxu0 %v2139
    %2468 = vmatprep.subr.mxu0 0.0
    %2469 = vmatpush1.msra.mxu0 %v2140
    %2470 = vmatprep.subr.mxu0 0.0
    %2471 = vmatpush1.msra.mxu0 %v2141
    %2472 = vmatprep.subr.mxu0 0.0
    %2473 = vmatpush1.msra.mxu0 %v2142
    %2474 = vmatprep.subr.mxu0 0.0
    %2475 = vmatpush1.msra.mxu0 0.0
    %2476 = vmatprep.subr.mxu0 0.0
    %2477 = vmatpush1.msra.mxu0 0.0
    %2478 = vmatprep.subr.mxu0 0.0
    %2479 = vmatpush1.msra.mxu0 0.0
    %2480 = vmatprep.subr.mxu0 0.0
    %2481 = vmatpush1.msra.mxu0 0.0
    %2482 = vmatprep.subr.mxu0 0.0
    %2483 = vmatpush1.msra.mxu0 0.0
    %2484 = vmatprep.subr.mxu0 0.0
    %2485 = vmatpush1.msra.mxu0 0.0
    %2486 = vmatprep.subr.mxu0 0.0
    %2487 = vmatpush1.msra.mxu0 0.0
    %2488 = vmatprep.subr.mxu0 0.0
    %2489 = vmatpush1.msra.mxu0 0.0
    %2490 = vmatprep.subr.mxu0 0.0
    %2491 = vmatpush1.msra.mxu0 0.0
    %2492 = vmatprep.subr.mxu0 0.0
    %2493 = vmatpush1.msra.mxu0 0.0
    %2494 = vmatprep.subr.mxu0 0.0
    %2495 = vmatpush1.msra.mxu0 0.0
    %2496 = vmatprep.subr.mxu0 0.0
    %2497 = vmatpush1.msra.mxu0 0.0
    %2498 = vmatprep.subr.mxu0 0.0
    %2499 = vmatpush1.msra.mxu0 0.0
    %2500 = vmatprep.subr.mxu0 0.0
    %2501 = vmatpush1.msra.mxu0 0.0
    %2502 = vmatprep.subr.mxu0 0.0
    %2503 = vmatpush1.msra.mxu0 0.0
    %2504 = vmatprep.subr.mxu0 0.0
    %2505 = vmatpush1.msra.mxu0 0.0
    %2506 = vmatprep.subr.mxu0 0.0
    %2507 = vmatpush1.msra.mxu0 0.0
    %2508 = vmatprep.subr.mxu0 0.0
    %2509 = vmatpush1.msra.mxu0 0.0
    %2510 = vmatprep.subr.mxu0 0.0
    %2511 = vmatpush1.msra.mxu0 0.0
    %2512 = vmatprep.subr.mxu0 0.0
    %2513 = vmatpush1.msra.mxu0 0.0
    %2514 = vmatprep.subr.mxu0 0.0
    %2515 = vmatpush1.msra.mxu0 0.0
    %2516 = vmatprep.subr.mxu0 0.0
    %2517 = vmatpush1.msra.mxu0 0.0
    %2518 = vmatprep.subr.mxu0 0.0
    %2519 = vmatpush1.msra.mxu0 0.0
    %2520 = vmatprep.subr.mxu0 0.0
    %2521 = vmatpush1.msra.mxu0 0.0
    %2522 = vmatprep.subr.mxu0 0.0
    %2523 = vmatpush1.msra.mxu0 0.0
    %2524 = vmatprep.subr.mxu0 0.0
    %2525 = vmatpush1.msra.mxu0 0.0
    %2526 = vmatprep.subr.mxu0 0.0
    %2527 = vmatpush1.msra.mxu0 0.0
    %2528 = vmatprep.subr.mxu0 0.0
    %2529 = vmatpush1.msra.mxu0 0.0
    %2530 = vmatprep.mubr.f32.mxu0 0.0
    %2531 = vmatmul.mubr.f32.gmra.mrb[0].mxu0 %v2464
    %v2532 = vpop.f32.mrb[0].mxu0
    %v2533 = vadd.f32 0.0, %v2532
    %v2534 = vpop.f32.mrb[0].mxu0
    %2535 = vdwg.mxu0
    %v2536 = vadd.f32 %v2463, %v2533
    %v2537 = vxor.u32 %v2536, 2147483648
    %v2538 = vmul.f32 %v2537, 1.442695
    %v2539 = vpow.pop %v2538
    %v2540 = vadd.f32 %v2539, 1.0
    %v2541 = vrcp.pop %v2540
    %v2542 = vmul.f32 1.0, %v2541
    %v2543 = vtanh.pop %v2536
    %v2544 = vmul.f32 %v2542, %v2450
    %2546 = vrot.lane.b32.xlu0 %v2543, 32
    %v2547 = vpop.permute.xlu0 %2546
    %v2549 = vmul.f32 %v2542, %v2547
    %2551 = vrot.lane.b32.xlu0 %v2549, 32
    %v2552 = vpop.permute.xlu0 %2551
    %v2554 = vadd.f32 %v2544, %v2552
    %v2555 = vtanh.pop %v2554
    %2557 = vrot.lane.b32.xlu0 %v2555, 32
    %v2558 = vpop.permute.xlu0 %2557
    %v2560 = vmul.f32 %v2542, %v2558
    %2562 = vrot.lane.b32.xlu0 %v2560, 64
    %v2563 = vpop.permute.xlu0 %2562
    %s2565 = scalar_lea.vmem %s7, 6
    %2566 = vst.msk [vmem:[%s2565] sm:$0x3] %vm790, %v2563
    %v2567 = vld [vmem:[%s443] sm:$0x3]
    %v2568 = vsel %vm683, %v2563, 0
    %2570 = vmatprep.subr.mxu0 0.0
    %2571 = vmatpush1.msra.mxu0 %v2139
    %2572 = vmatprep.subr.mxu0 0.0
    %2573 = vmatpush1.msra.mxu0 %v2140
    %2574 = vmatprep.subr.mxu0 0.0
    %2575 = vmatpush1.msra.mxu0 %v2141
    %2576 = vmatprep.subr.mxu0 0.0
    %2577 = vmatpush1.msra.mxu0 %v2142
    %2578 = vmatprep.subr.mxu0 0.0
    %2579 = vmatpush1.msra.mxu0 0.0
    %2580 = vmatprep.subr.mxu0 0.0
    %2581 = vmatpush1.msra.mxu0 0.0
    %2582 = vmatprep.subr.mxu0 0.0
    %2583 = vmatpush1.msra.mxu0 0.0
    %2584 = vmatprep.subr.mxu0 0.0
    %2585 = vmatpush1.msra.mxu0 0.0
    %2586 = vmatprep.subr.mxu0 0.0
    %2587 = vmatpush1.msra.mxu0 0.0
    %2588 = vmatprep.subr.mxu0 0.0
    %2589 = vmatpush1.msra.mxu0 0.0
    %2590 = vmatprep.subr.mxu0 0.0
    %2591 = vmatpush1.msra.mxu0 0.0
    %2592 = vmatprep.subr.mxu0 0.0
    %2593 = vmatpush1.msra.mxu0 0.0
    %2594 = vmatprep.subr.mxu0 0.0
    %2595 = vmatpush1.msra.mxu0 0.0
    %2596 = vmatprep.subr.mxu0 0.0
    %2597 = vmatpush1.msra.mxu0 0.0
    %2598 = vmatprep.subr.mxu0 0.0
    %2599 = vmatpush1.msra.mxu0 0.0
    %2600 = vmatprep.subr.mxu0 0.0
    %2601 = vmatpush1.msra.mxu0 0.0
    %2602 = vmatprep.subr.mxu0 0.0
    %2603 = vmatpush1.msra.mxu0 0.0
    %2604 = vmatprep.subr.mxu0 0.0
    %2605 = vmatpush1.msra.mxu0 0.0
    %2606 = vmatprep.subr.mxu0 0.0
    %2607 = vmatpush1.msra.mxu0 0.0
    %2608 = vmatprep.subr.mxu0 0.0
    %2609 = vmatpush1.msra.mxu0 0.0
    %2610 = vmatprep.subr.mxu0 0.0
    %2611 = vmatpush1.msra.mxu0 0.0
    %2612 = vmatprep.subr.mxu0 0.0
    %2613 = vmatpush1.msra.mxu0 0.0
    %2614 = vmatprep.subr.mxu0 0.0
    %2615 = vmatpush1.msra.mxu0 0.0
    %2616 = vmatprep.subr.mxu0 0.0
    %2617 = vmatpush1.msra.mxu0 0.0
    %2618 = vmatprep.subr.mxu0 0.0
    %2619 = vmatpush1.msra.mxu0 0.0
    %2620 = vmatprep.subr.mxu0 0.0
    %2621 = vmatpush1.msra.mxu0 0.0
    %2622 = vmatprep.subr.mxu0 0.0
    %2623 = vmatpush1.msra.mxu0 0.0
    %2624 = vmatprep.subr.mxu0 0.0
    %2625 = vmatpush1.msra.mxu0 0.0
    %2626 = vmatprep.subr.mxu0 0.0
    %2627 = vmatpush1.msra.mxu0 0.0
    %2628 = vmatprep.subr.mxu0 0.0
    %2629 = vmatpush1.msra.mxu0 0.0
    %2630 = vmatprep.subr.mxu0 0.0
    %2631 = vmatpush1.msra.mxu0 0.0
    %2632 = vmatprep.subr.mxu0 0.0
    %2633 = vmatpush1.msra.mxu0 0.0
    %2634 = vmatprep.mubr.f32.mxu0 0.0
    %2635 = vmatmul.mubr.f32.gmra.mrb[0].mxu0 %v2568
    %v2636 = vpop.f32.mrb[0].mxu0
    %v2637 = vadd.f32 0.0, %v2636
    %v2638 = vpop.f32.mrb[0].mxu0
    %2639 = vdwg.mxu0
    %v2640 = vadd.f32 %v2567, %v2637
    %v2641 = vxor.u32 %v2640, 2147483648
    %v2642 = vmul.f32 %v2641, 1.442695
    %v2643 = vpow.pop %v2642
    %v2644 = vadd.f32 %v2643, 1.0
    %v2645 = vrcp.pop %v2644
    %v2646 = vmul.f32 1.0, %v2645
    %v2647 = vtanh.pop %v2640
    %v2648 = vmul.f32 %v2646, %v2554
    %2650 = vrot.lane.b32.xlu0 %v2647, 32
    %v2651 = vpop.permute.xlu0 %2650
    %v2653 = vmul.f32 %v2646, %v2651
    %2655 = vrot.lane.b32.xlu0 %v2653, 32
    %v2656 = vpop.permute.xlu0 %2655
    %v2658 = vadd.f32 %v2648, %v2656
    %v2659 = vtanh.pop %v2658
    %2661 = vrot.lane.b32.xlu0 %v2659, 32
    %v2662 = vpop.permute.xlu0 %2661
    %v2664 = vmul.f32 %v2646, %v2662
    %2666 = vrot.lane.b32.xlu0 %v2664, 64
    %v2667 = vpop.permute.xlu0 %2666
    %s2669 = scalar_lea.vmem %s7, 8
    %2670 = vst.msk [vmem:[%s2669] sm:$0x3] %vm790, %v2667
    %v2671 = vld [vmem:[%s520] sm:$0x3]
    %v2672 = vsel %vm683, %v2667, 0
    %2674 = vmatprep.subr.mxu0 0.0
    %2675 = vmatpush1.msra.mxu0 %v2139
    %2676 = vmatprep.subr.mxu0 0.0
    %2677 = vmatpush1.msra.mxu0 %v2140
    %2678 = vmatprep.subr.mxu0 0.0
    %2679 = vmatpush1.msra.mxu0 %v2141
    %2680 = vmatprep.subr.mxu0 0.0
    %2681 = vmatpush1.msra.mxu0 %v2142
    %2682 = vmatprep.subr.mxu0 0.0
    %2683 = vmatpush1.msra.mxu0 0.0
    %2684 = vmatprep.subr.mxu0 0.0
    %2685 = vmatpush1.msra.mxu0 0.0
    %2686 = vmatprep.subr.mxu0 0.0
    %2687 = vmatpush1.msra.mxu0 0.0
    %2688 = vmatprep.subr.mxu0 0.0
    %2689 = vmatpush1.msra.mxu0 0.0
    %2690 = vmatprep.subr.mxu0 0.0
    %2691 = vmatpush1.msra.mxu0 0.0
    %2692 = vmatprep.subr.mxu0 0.0
    %2693 = vmatpush1.msra.mxu0 0.0
    %2694 = vmatprep.subr.mxu0 0.0
    %2695 = vmatpush1.msra.mxu0 0.0
    %2696 = vmatprep.subr.mxu0 0.0
    %2697 = vmatpush1.msra.mxu0 0.0
    %2698 = vmatprep.subr.mxu0 0.0
    %2699 = vmatpush1.msra.mxu0 0.0
    %2700 = vmatprep.subr.mxu0 0.0
    %2701 = vmatpush1.msra.mxu0 0.0
    %2702 = vmatprep.subr.mxu0 0.0
    %2703 = vmatpush1.msra.mxu0 0.0
    %2704 = vmatprep.subr.mxu0 0.0
    %2705 = vmatpush1.msra.mxu0 0.0
    %2706 = vmatprep.subr.mxu0 0.0
    %2707 = vmatpush1.msra.mxu0 0.0
    %2708 = vmatprep.subr.mxu0 0.0
    %2709 = vmatpush1.msra.mxu0 0.0
    %2710 = vmatprep.subr.mxu0 0.0
    %2711 = vmatpush1.msra.mxu0 0.0
    %2712 = vmatprep.subr.mxu0 0.0
    %2713 = vmatpush1.msra.mxu0 0.0
    %2714 = vmatprep.subr.mxu0 0.0
    %2715 = vmatpush1.msra.mxu0 0.0
    %2716 = vmatprep.subr.mxu0 0.0
    %2717 = vmatpush1.msra.mxu0 0.0
    %2718 = vmatprep.subr.mxu0 0.0
    %2719 = vmatpush1.msra.mxu0 0.0
    %2720 = vmatprep.subr.mxu0 0.0
    %2721 = vmatpush1.msra.mxu0 0.0
    %2722 = vmatprep.subr.mxu0 0.0
    %2723 = vmatpush1.msra.mxu0 0.0
    %2724 = vmatprep.subr.mxu0 0.0
    %2725 = vmatpush1.msra.mxu0 0.0
    %2726 = vmatprep.subr.mxu0 0.0
    %2727 = vmatpush1.msra.mxu0 0.0
    %2728 = vmatprep.subr.mxu0 0.0
    %2729 = vmatpush1.msra.mxu0 0.0
    %2730 = vmatprep.subr.mxu0 0.0
    %2731 = vmatpush1.msra.mxu0 0.0
    %2732 = vmatprep.subr.mxu0 0.0
    %2733 = vmatpush1.msra.mxu0 0.0
    %2734 = vmatprep.subr.mxu0 0.0
    %2735 = vmatpush1.msra.mxu0 0.0
    %2736 = vmatprep.subr.mxu0 0.0
    %2737 = vmatpush1.msra.mxu0 0.0
    %2738 = vmatprep.mubr.f32.mxu0 0.0
    %2739 = vmatmul.mubr.f32.gmra.mrb[0].mxu0 %v2672
    %v2740 = vpop.f32.mrb[0].mxu0
    %v2741 = vadd.f32 0.0, %v2740
    %v2742 = vpop.f32.mrb[0].mxu0
    %2743 = vdwg.mxu0
    %v2744 = vadd.f32 %v2671, %v2741
    %v2745 = vxor.u32 %v2744, 2147483648
    %v2746 = vmul.f32 %v2745, 1.442695
    %v2747 = vpow.pop %v2746
    %v2748 = vadd.f32 %v2747, 1.0
    %v2749 = vrcp.pop %v2748
    %v2750 = vmul.f32 1.0, %v2749
    %v2751 = vtanh.pop %v2744
    %v2752 = vmul.f32 %v2750, %v2658
    %2754 = vrot.lane.b32.xlu0 %v2751, 32
    %v2755 = vpop.permute.xlu0 %2754
    %v2757 = vmul.f32 %v2750, %v2755
    %2759 = vrot.lane.b32.xlu0 %v2757, 32
    %v2760 = vpop.permute.xlu0 %2759
    %v2762 = vadd.f32 %v2752, %v2760
    %v2763 = vtanh.pop %v2762
    %2765 = vrot.lane.b32.xlu0 %v2763, 32
    %v2766 = vpop.permute.xlu0 %2765
    %v2768 = vmul.f32 %v2750, %v2766
    %2770 = vrot.lane.b32.xlu0 %v2768, 64
    %v2771 = vpop.permute.xlu0 %2770
    %s2773 = scalar_lea.vmem %s7, 10
    %2774 = vst.msk [vmem:[%s2773] sm:$0x3] %vm790, %v2771
    %v2775 = vld [vmem:[%s597] sm:$0x3]
    %v2776 = vsel %vm683, %v2771, 0
    %2778 = vmatprep.subr.mxu0 0.0
    %2779 = vmatpush1.msra.mxu0 %v2139
    %2780 = vmatprep.subr.mxu0 0.0
    %2781 = vmatpush1.msra.mxu0 %v2140
    %2782 = vmatprep.subr.mxu0 0.0
    %2783 = vmatpush1.msra.mxu0 %v2141
    %2784 = vmatprep.subr.mxu0 0.0
    %2785 = vmatpush1.msra.mxu0 %v2142
    %2786 = vmatprep.subr.mxu0 0.0
    %2787 = vmatpush1.msra.mxu0 0.0
    %2788 = vmatprep.subr.mxu0 0.0
    %2789 = vmatpush1.msra.mxu0 0.0
    %2790 = vmatprep.subr.mxu0 0.0
    %2791 = vmatpush1.msra.mxu0 0.0
    %2792 = vmatprep.subr.mxu0 0.0
    %2793 = vmatpush1.msra.mxu0 0.0
    %2794 = vmatprep.subr.mxu0 0.0
    %2795 = vmatpush1.msra.mxu0 0.0
    %2796 = vmatprep.subr.mxu0 0.0
    %2797 = vmatpush1.msra.mxu0 0.0
    %2798 = vmatprep.subr.mxu0 0.0
    %2799 = vmatpush1.msra.mxu0 0.0
    %2800 = vmatprep.subr.mxu0 0.0
    %2801 = vmatpush1.msra.mxu0 0.0
    %2802 = vmatprep.subr.mxu0 0.0
    %2803 = vmatpush1.msra.mxu0 0.0
    %2804 = vmatprep.subr.mxu0 0.0
    %2805 = vmatpush1.msra.mxu0 0.0
    %2806 = vmatprep.subr.mxu0 0.0
    %2807 = vmatpush1.msra.mxu0 0.0
    %2808 = vmatprep.subr.mxu0 0.0
    %2809 = vmatpush1.msra.mxu0 0.0
    %2810 = vmatprep.subr.mxu0 0.0
    %2811 = vmatpush1.msra.mxu0 0.0
    %2812 = vmatprep.subr.mxu0 0.0
    %2813 = vmatpush1.msra.mxu0 0.0
    %2814 = vmatprep.subr.mxu0 0.0
    %2815 = vmatpush1.msra.mxu0 0.0
    %2816 = vmatprep.subr.mxu0 0.0
    %2817 = vmatpush1.msra.mxu0 0.0
    %2818 = vmatprep.subr.mxu0 0.0
    %2819 = vmatpush1.msra.mxu0 0.0
    %2820 = vmatprep.subr.mxu0 0.0
    %2821 = vmatpush1.msra.mxu0 0.0
    %2822 = vmatprep.subr.mxu0 0.0
    %2823 = vmatpush1.msra.mxu0 0.0
    %2824 = vmatprep.subr.mxu0 0.0
    %2825 = vmatpush1.msra.mxu0 0.0
    %2826 = vmatprep.subr.mxu0 0.0
    %2827 = vmatpush1.msra.mxu0 0.0
    %2828 = vmatprep.subr.mxu0 0.0
    %2829 = vmatpush1.msra.mxu0 0.0
    %2830 = vmatprep.subr.mxu0 0.0
    %2831 = vmatpush1.msra.mxu0 0.0
    %2832 = vmatprep.subr.mxu0 0.0
    %2833 = vmatpush1.msra.mxu0 0.0
    %2834 = vmatprep.subr.mxu0 0.0
    %2835 = vmatpush1.msra.mxu0 0.0
    %2836 = vmatprep.subr.mxu0 0.0
    %2837 = vmatpush1.msra.mxu0 0.0
    %2838 = vmatprep.subr.mxu0 0.0
    %2839 = vmatpush1.msra.mxu0 0.0
    %2840 = vmatprep.subr.mxu0 0.0
    %2841 = vmatpush1.msra.mxu0 0.0
    %2842 = vmatprep.mubr.f32.mxu0 0.0
    %2843 = vmatmul.mubr.f32.gmra.mrb[0].mxu0 %v2776
    %v2844 = vpop.f32.mrb[0].mxu0
    %v2845 = vadd.f32 0.0, %v2844
    %v2846 = vpop.f32.mrb[0].mxu0
    %2847 = vdwg.mxu0
    %v2848 = vadd.f32 %v2775, %v2845
    %v2849 = vxor.u32 %v2848, 2147483648
    %v2850 = vmul.f32 %v2849, 1.442695
    %v2851 = vpow.pop %v2850
    %v2852 = vadd.f32 %v2851, 1.0
    %v2853 = vrcp.pop %v2852
    %v2854 = vmul.f32 1.0, %v2853
    %v2855 = vtanh.pop %v2848
    %v2856 = vmul.f32 %v2854, %v2762
    %2858 = vrot.lane.b32.xlu0 %v2855, 32
    %v2859 = vpop.permute.xlu0 %2858
    %v2861 = vmul.f32 %v2854, %v2859
    %2863 = vrot.lane.b32.xlu0 %v2861, 32
    %v2864 = vpop.permute.xlu0 %2863
    %v2866 = vadd.f32 %v2856, %v2864
    %v2867 = vtanh.pop %v2866
    %2869 = vrot.lane.b32.xlu0 %v2867, 32
    %v2870 = vpop.permute.xlu0 %2869
    %v2872 = vmul.f32 %v2854, %v2870
    %2874 = vrot.lane.b32.xlu0 %v2872, 64
    %v2875 = vpop.permute.xlu0 %2874
    %s2877 = scalar_lea.vmem %s7, 12
    %2878 = vst.msk [vmem:[%s2877] sm:$0x3] %vm790, %v2875
    %v2879 = vld [vmem:[%s674] sm:$0x3]
    %v2880 = vsel %vm683, %v2875, 0
    %2882 = vmatprep.subr.mxu0 0.0
    %2883 = vmatpush1.msra.mxu0 %v2139
    %2884 = vmatprep.subr.mxu0 0.0
    %2885 = vmatpush1.msra.mxu0 %v2140
    %2886 = vmatprep.subr.mxu0 0.0
    %2887 = vmatpush1.msra.mxu0 %v2141
    %2888 = vmatprep.subr.mxu0 0.0
    %2889 = vmatpush1.msra.mxu0 %v2142
    %2890 = vmatprep.subr.mxu0 0.0
    %2891 = vmatpush1.msra.mxu0 0.0
    %2892 = vmatprep.subr.mxu0 0.0
    %2893 = vmatpush1.msra.mxu0 0.0
    %2894 = vmatprep.subr.mxu0 0.0
    %2895 = vmatpush1.msra.mxu0 0.0
    %2896 = vmatprep.subr.mxu0 0.0
    %2897 = vmatpush1.msra.mxu0 0.0
    %2898 = vmatprep.subr.mxu0 0.0
    %2899 = vmatpush1.msra.mxu0 0.0
    %2900 = vmatprep.subr.mxu0 0.0
    %2901 = vmatpush1.msra.mxu0 0.0
    %2902 = vmatprep.subr.mxu0 0.0
    %2903 = vmatpush1.msra.mxu0 0.0
    %2904 = vmatprep.subr.mxu0 0.0
    %2905 = vmatpush1.msra.mxu0 0.0
    %2906 = vmatprep.subr.mxu0 0.0
    %2907 = vmatpush1.msra.mxu0 0.0
    %2908 = vmatprep.subr.mxu0 0.0
    %2909 = vmatpush1.msra.mxu0 0.0
    %2910 = vmatprep.subr.mxu0 0.0
    %2911 = vmatpush1.msra.mxu0 0.0
    %2912 = vmatprep.subr.mxu0 0.0
    %2913 = vmatpush1.msra.mxu0 0.0
    %2914 = vmatprep.subr.mxu0 0.0
    %2915 = vmatpush1.msra.mxu0 0.0
    %2916 = vmatprep.subr.mxu0 0.0
    %2917 = vmatpush1.msra.mxu0 0.0
    %2918 = vmatprep.subr.mxu0 0.0
    %2919 = vmatpush1.msra.mxu0 0.0
    %2920 = vmatprep.subr.mxu0 0.0
    %2921 = vmatpush1.msra.mxu0 0.0
    %2922 = vmatprep.subr.mxu0 0.0
    %2923 = vmatpush1.msra.mxu0 0.0
    %2924 = vmatprep.subr.mxu0 0.0
    %2925 = vmatpush1.msra.mxu0 0.0
    %2926 = vmatprep.subr.mxu0 0.0
    %2927 = vmatpush1.msra.mxu0 0.0
    %2928 = vmatprep.subr.mxu0 0.0
    %2929 = vmatpush1.msra.mxu0 0.0
    %2930 = vmatprep.subr.mxu0 0.0
    %2931 = vmatpush1.msra.mxu0 0.0
    %2932 = vmatprep.subr.mxu0 0.0
    %2933 = vmatpush1.msra.mxu0 0.0
    %2934 = vmatprep.subr.mxu0 0.0
    %2935 = vmatpush1.msra.mxu0 0.0
    %2936 = vmatprep.subr.mxu0 0.0
    %2937 = vmatpush1.msra.mxu0 0.0
    %2938 = vmatprep.subr.mxu0 0.0
    %2939 = vmatpush1.msra.mxu0 0.0
    %2940 = vmatprep.subr.mxu0 0.0
    %2941 = vmatpush1.msra.mxu0 0.0
    %2942 = vmatprep.subr.mxu0 0.0
    %2943 = vmatpush1.msra.mxu0 0.0
    %2944 = vmatprep.subr.mxu0 0.0
    %2945 = vmatpush1.msra.mxu0 0.0
    %2946 = vmatprep.mubr.f32.mxu0 0.0
    %2947 = vmatmul.mubr.f32.gmra.mrb[0].mxu0 %v2880
    %v2948 = vpop.f32.mrb[0].mxu0
    %v2949 = vadd.f32 0.0, %v2948
    %v2950 = vpop.f32.mrb[0].mxu0
    %2951 = vdwg.mxu0
    %v2952 = vadd.f32 %v2879, %v2949
    %v2953 = vxor.u32 %v2952, 2147483648
    %v2954 = vmul.f32 %v2953, 1.442695
    %v2955 = vpow.pop %v2954
    %v2956 = vadd.f32 %v2955, 1.0
    %v2957 = vrcp.pop %v2956
    %v2958 = vmul.f32 1.0, %v2957
    %v2959 = vtanh.pop %v2952
    %v2960 = vmul.f32 %v2958, %v2866
    %2962 = vrot.lane.b32.xlu0 %v2959, 32
    %v2963 = vpop.permute.xlu0 %2962
    %v2965 = vmul.f32 %v2958, %v2963
    %2967 = vrot.lane.b32.xlu0 %v2965, 32
    %v2968 = vpop.permute.xlu0 %2967
    %v2970 = vadd.f32 %v2960, %v2968
    %v2971 = vtanh.pop %v2970
    %2973 = vrot.lane.b32.xlu0 %v2971, 32
    %v2974 = vpop.permute.xlu0 %2973
    %v2976 = vmul.f32 %v2958, %v2974
    %2978 = vrot.lane.b32.xlu0 %v2976, 64
    %v2979 = vpop.permute.xlu0 %2978
    %s2981 = scalar_lea.vmem %s7, 14
    %2982 = vst.msk [vmem:[%s2981] sm:$0x3] %vm790, %v2979
    %s2983 = scalar_lea.vmem [#allocation7], 2
    %2984 = vst.msk [vmem:[%s2983] sm:$0x3] %vm790, %v2979
    %2986 = vrot.lane.b32.xlu0 %v2970, 96
    %v2987 = vpop.permute.xlu0 %2986
    %s2989 = scalar_lea.vmem [#allocation8], 2
    %2990 = vst.msk [vmem:[%s2989] sm:$0x3] %vm790, %v2987
    // Predicated region
    $region34: #{_state_action_lstm_forward.1} parent=1 // pred_check
      _
    $region35: #{_state_action_lstm_forward.1} parent=1 // pred_check_branch
      %2992 = sbr.rel (0) target = $region37
    $region36: #{_state_action_lstm_forward.1} parent=1 // pred_region
      _
    $region37: #{_state_action_lstm_forward.1} parent=1 // pred_fallthru
      _
    // Predicated region
    $region38: #{_state_action_lstm_forward.1} parent=1 // pred_check
      _
    $region39: #{_state_action_lstm_forward.1} parent=1 // pred_check_branch
      %2994 = sbr.rel (0) target = $region41
    $region40: #{_state_action_lstm_forward.1} parent=1 // pred_region
      %s2996 = ssub.s32 64, 64
      %2997 = vsyncadd [#allocation6], %s2996
      %s2998 = sshll.u32 [#allocation7], 4
      %s2999 = int_to_ptr.vmem [resolvable:$true] %s2998
      %3004 = dma.vmem_to_hbm [thread:$0]  %s2999, 64, %s8, [#allocation6], 32, 32, 2
    $region41: #{_state_action_lstm_forward.1} parent=1 // pred_fallthru
      _
    // Predicated region
    $region42: #{_state_action_lstm_forward.1} parent=1 // pred_check
      _
    $region43: #{_state_action_lstm_forward.1} parent=1 // pred_check_branch
      %3006 = sbr.rel (0) target = $region45
    $region44: #{_state_action_lstm_forward.1} parent=1 // pred_region
      %s3008 = ssub.s32 64, 64
      %3009 = vsyncadd [#allocation9], %s3008
      %s3010 = sshll.u32 [#allocation8], 4
      %s3011 = int_to_ptr.vmem [resolvable:$true] %s3010
      %3016 = dma.vmem_to_hbm [thread:$0]  %s3011, 64, %s9, [#allocation9], 32, 32, 2
    $region45: #{_state_action_lstm_forward.1} parent=1 // pred_fallthru
      _
    // Predicated region
    $region46: #{_state_action_lstm_forward.1} parent=1 // pred_check
      _
    $region47: #{_state_action_lstm_forward.1} parent=1 // pred_check_branch
      %3018 = sbr.rel (0) target = $region49
    $region48: #{_state_action_lstm_forward.1} parent=1 // pred_region
      _
    $region49: #{_state_action_lstm_forward.1} parent=1 // pred_fallthru
      _
    // Predicated region
    $region50: #{_state_action_lstm_forward.1} parent=1 // pred_check
      _
    $region51: #{_state_action_lstm_forward.1} parent=1 // pred_check_branch
      %3020 = sbr.rel (0) target = $region53
    $region52: #{_state_action_lstm_forward.1} parent=1 // pred_region
      %3021 = dma.done [#allocation6], 64
    $region53: #{_state_action_lstm_forward.1} parent=1 // pred_fallthru
      _
    // Predicated region
    $region54: #{_state_action_lstm_forward.1} parent=1 // pred_check
      _
    $region55: #{_state_action_lstm_forward.1} parent=1 // pred_check_branch
      %3023 = sbr.rel (0) target = $region57
    $region56: #{_state_action_lstm_forward.1} parent=1 // pred_region
      %3024 = dma.done [#allocation9], 64
    $region57: #{_state_action_lstm_forward.1} parent=1 // pred_fallthru
      _
    %3025 = vsyncpa [#allocation5], 1
    %3026 = vsyncpa [#allocation6], 1
    %3027 = vsyncpa [#allocation9], 1

</llo_original>
